<compile_context>
chip_gen: v7x
topology: tpu7x:2x2x1
jax: 0.10.0
libtpu: 0.0.40
codegen_flags: <defaults>
</compile_context>

<pallas_src>
import functools
import math

import jax
import jax.numpy as jnp
from jax.experimental import pallas as pl
from jax.experimental.pallas import tpu as pltpu

# ---- hyper-parameters (SelfAttention(n_heads, input_dim)) ----
N_HEADS = 4
H_SIZE = 32                 # input_dim / h_size
D_K = H_SIZE // N_HEADS     # k_size == v_size == d_k == 8
LN_EPS = 1e-5


# --------------------------------------------------------------------------------------
# Fused multi-head self-attention kernel.  One grid step processes a block of `bs`
# batch elements; everything (Q/K/V, scores, per-head context, projection, LayerNorm)
# stays in VMEM / vregs.
# --------------------------------------------------------------------------------------
def _self_attention_kernel(ctx_ref, qst_ref, wq_ref, wk_ref, wv_ref, wout_ref,
                           bout_ref, gamma_ref, beta_ref, out_ref,
                           *, n_heads, scale, eps):
    bs, l_q, hdim = ctx_ref.shape
    l_k = qst_ref.shape[1]

    wq = wq_ref[...]        # (n, H, dk)   torch q_proj layout
    wk = wk_ref[...]        # (n, H, dk)   torch k_proj layout
    wv = wv_ref[...]        # (n, H, dv)   torch v_proj layout
    wo = wout_ref[...]      # (n, dv, H)   out.weight[:, h*dv:(h+1)*dv].T per head
    b_out = bout_ref[...]   # (1, H)
    gamma = gamma_ref[...]  # (1, H)
    beta = beta_ref[...]    # (1, H)

    # Static (unrolled) loop over the batch elements in this block; bs is tiny (1-2).
    for b in range(bs):
        xq = ctx_ref[b]      # (Lq, H)  query input == residual (already f32)
        xkv = qst_ref[b]     # (Lk, H)  key/value input

        # Head-batched projections: one batched dot_general each, leading batch
        # dim = heads, no slicing of the results.
        xq_h = jnp.broadcast_to(xq, (n_heads, l_q, hdim))
        xkv_h = jnp.broadcast_to(xkv, (n_heads, l_k, hdim))
        q = jnp.einsum("nqh,nhd->nqd", xq_h, wq, preferred_element_type=jnp.float32)
        k = jnp.einsum("nkh,nhd->nkd", xkv_h, wk, preferred_element_type=jnp.float32)
        v = jnp.einsum("nkh,nhd->nkd", xkv_h, wv, preferred_element_type=jnp.float32)

        # Scaled dot-product attention (stable softmax), all heads batched.
        s = jnp.einsum("nqd,nkd->nqk", q, k, preferred_element_type=jnp.float32) * scale
        s = s - jnp.max(s, axis=-1, keepdims=True)
        p = jnp.exp(s)
        # EUP approx reciprocal for the denominator (otherwise-idle unit).
        p = p * pl.reciprocal(jnp.sum(p, axis=-1, keepdims=True), approx=True)
        o = jnp.einsum("nqk,nkd->nqd", p, v, preferred_element_type=jnp.float32)  # (n,Lq,dv)

        # Concat-free output projection: head-batched dot_general + head-sum.
        proj = jnp.einsum("nqd,ndh->nqh", o, wo, preferred_element_type=jnp.float32)
        y = jnp.sum(proj, axis=0) + b_out + xq          # out-proj bias + residual

        # LayerNorm (f32 VPU math), affine.
        mu = jnp.mean(y, axis=-1, keepdims=True)
        var = jnp.mean((y - mu) * (y - mu), axis=-1, keepdims=True)
        y = (y - mu) * jax.lax.rsqrt(var + eps)
        out_ref[b] = y * gamma + beta


def _default_batch_blocks(batch):
    # v7x has 2 TensorCores per chip -> give each a grid step.  v5e/v6e have one
    # TC, where a single big step avoids ~0.35-0.6 us/step pipeline overhead.
    try:
        kind = jax.devices()[0].device_kind.lower()
    except Exception:
        kind = ""
    if "v7" in kind and batch % 2 == 0:
        return 2
    return 1


def self_attention_forward(params, context, questions, *, num_batch_blocks=None):
    B, Lq, H = context.shape
    _, Lk, _ = questions.shape
    n, dk, dv = N_HEADS, D_K, D_K
    if num_batch_blocks is None:
        num_batch_blocks = _default_batch_blocks(B)
    assert B % num_batch_blocks == 0
    bs = B // num_batch_blocks

    kern = functools.partial(_self_attention_kernel, n_heads=n,
                             scale=1.0 / math.sqrt(dk), eps=LN_EPS)
    return pl.pallas_call(
        kern,
        out_shape=jax.ShapeDtypeStruct((B, Lq, H), jnp.float32),
        grid=(num_batch_blocks,),
        in_specs=[
            pl.BlockSpec((bs, Lq, H), lambda i: (i, 0, 0)),      # context block
            pl.BlockSpec((bs, Lk, H), lambda i: (i, 0, 0)),      # questions block
            pl.BlockSpec((n, H, dk), lambda i: (0, 0, 0)),       # Wq
            pl.BlockSpec((n, H, dk), lambda i: (0, 0, 0)),       # Wk (split from Wv)
            pl.BlockSpec((n, H, dv), lambda i: (0, 0, 0)),       # Wv
            pl.BlockSpec((n, dv, H), lambda i: (0, 0, 0)),       # Wout per head
            pl.BlockSpec((1, H), lambda i: (0, 0)),              # out bias
            pl.BlockSpec((1, H), lambda i: (0, 0)),              # LN gamma
            pl.BlockSpec((1, H), lambda i: (0, 0)),              # LN beta
        ],
        out_specs=pl.BlockSpec((bs, Lq, H), lambda i: (i, 0, 0)),
        compiler_params=pltpu.CompilerParams(dimension_semantics=("parallel",)),
    )(context, questions, params["wq"], params["wk"], params["wv"],
      params["wout"], params["b_out"], params["gamma"], params["beta"])


# --------------------------------------------------------------------------------------
# Deterministic parameter init.  Layouts (relative to the PyTorch module):
#   wq / wk / wv (n, H, dk|dv) : exactly q_proj / k_proj / v_proj
#   wout (n, dv, H)            : wout[h] == out.weight[:, h*dv:(h+1)*dv].T
#                                (folds the head-major torch.cat)
# --------------------------------------------------------------------------------------
def init_params(key):
    ks = jax.random.split(key, 7)
    s = 0.2
    H, n, dk, dv = H_SIZE, N_HEADS, D_K, D_K
    return dict(
        wq=jax.random.normal(ks[0], (n, H, dk), jnp.float32) * s,
        wk=jax.random.normal(ks[1], (n, H, dk), jnp.float32) * s,
        wv=jax.random.normal(ks[2], (n, H, dv), jnp.float32) * s,
        wout=jax.random.normal(ks[3], (n, dv, H), jnp.float32) * s,
        b_out=jax.random.normal(ks[4], (1, H), jnp.float32) * s,
        gamma=1.0 + jax.random.normal(ks[5], (1, H), jnp.float32) * s,
        beta=jax.random.normal(ks[6], (1, H), jnp.float32) * s,
    )


# --------------------------------------------------------------------------------------
# Pure-JAX reference (same math as the PyTorch module, head-major concat) for checking.
# --------------------------------------------------------------------------------------
def ref_forward(params, context, questions):
    B, Lq, H = context.shape
    n, dk, dv = N_HEADS, D_K, D_K
    scale = 1.0 / math.sqrt(dk)
    q = jnp.einsum("blh,nhd->bnld", context, params["wq"])
    k = jnp.einsum("blh,nhd->bnld", questions, params["wk"])
    v = jnp.einsum("blh,nhd->bnld", questions, params["wv"])
    s = jnp.einsum("bnqd,bnkd->bnqk", q, k) * scale
    p = jax.nn.softmax(s, axis=-1)
    o = jnp.einsum("bnqk,bnkd->bnqd", p, v)                   # (B, n, Lq, dv)
    oc = jnp.transpose(o, (0, 2, 1, 3)).reshape(B, Lq, n * dv)  # head-major concat
    w_full = params["wout"].reshape(n * dv, H)                # == out.weight.T
    y = oc @ w_full + params["b_out"] + context               # out Linear + residual
    mu = y.mean(-1, keepdims=True)
    var = ((y - mu) ** 2).mean(-1, keepdims=True)
    y = (y - mu) / jnp.sqrt(var + LN_EPS)
    return y * params["gamma"] + params["beta"]


if __name__ == "__main__":
    key = jax.random.PRNGKey(0)
    k_params, k_ctx, k_qst = jax.random.split(key, 3)
    params = init_params(k_params)

    B, L_CTX, L_QST = 2, 8, 16        # batch, context length, questions length
    context = jax.random.normal(k_ctx, (B, L_CTX, H_SIZE), jnp.float32)
    questions = jax.random.normal(k_qst, (B, L_QST, H_SIZE), jnp.float32)

    out = jax.block_until_ready(self_attention_forward(params, context, questions))
    ref = jax.block_until_ready(ref_forward(params, context, questions))

    assert out.shape == (B, L_CTX, H_SIZE), out.shape
    # Tolerance accounts for the ~12-bit EUP approx reciprocal in the softmax denom.
    err = float(jnp.max(jnp.abs(out - ref)))
    assert jnp.allclose(out, ref, atol=2e-3, rtol=2e-3), err
    print("KERNEL_OK")
</pallas_src>

<mosaic_0001>
module attributes {stable_mosaic.version = 11 : i64} {
  func.func @_self_attention_kernel(%arg0: i32, %arg1: memref<2x8x32xf32, #tpu.memory_space<vmem>>, %arg2: memref<2x16x32xf32, #tpu.memory_space<vmem>>, %arg3: memref<4x32x8xf32, #tpu.memory_space<vmem>>, %arg4: memref<4x32x8xf32, #tpu.memory_space<vmem>>, %arg5: memref<4x32x8xf32, #tpu.memory_space<vmem>>, %arg6: memref<4x8x32xf32, #tpu.memory_space<vmem>>, %arg7: memref<1x32xf32, #tpu.memory_space<vmem>>, %arg8: memref<1x32xf32, #tpu.memory_space<vmem>>, %arg9: memref<1x32xf32, #tpu.memory_space<vmem>>, %arg10: memref<2x8x32xf32, #tpu.memory_space<vmem>>) attributes {dimension_semantics = [#tpu.dimension_semantics<parallel>], iteration_bounds = array<i64: 1>, scalar_prefetch = 0 : i64, scratch_operands = 0 : i64, tpu.core_type = #tpu.core_type<tc>, window_params = [{transform_indices = @transform_0, window_bounds = array<i64: 2, 8, 32>}, {transform_indices = @transform_1, window_bounds = array<i64: 2, 16, 32>}, {pipeline_mode = #tpu.pipeline_mode<synchronous>, transform_indices = @transform_2, window_bounds = array<i64: 4, 32, 8>}, {pipeline_mode = #tpu.pipeline_mode<synchronous>, transform_indices = @transform_3, window_bounds = array<i64: 4, 32, 8>}, {pipeline_mode = #tpu.pipeline_mode<synchronous>, transform_indices = @transform_4, window_bounds = array<i64: 4, 32, 8>}, {pipeline_mode = #tpu.pipeline_mode<synchronous>, transform_indices = @transform_5, window_bounds = array<i64: 4, 8, 32>}, {pipeline_mode = #tpu.pipeline_mode<synchronous>, transform_indices = @transform_6, window_bounds = array<i64: 1, 32>}, {pipeline_mode = #tpu.pipeline_mode<synchronous>, transform_indices = @transform_7, window_bounds = array<i64: 1, 32>}, {pipeline_mode = #tpu.pipeline_mode<synchronous>, transform_indices = @transform_8, window_bounds = array<i64: 1, 32>}, {transform_indices = @transform_9, window_bounds = array<i64: 2, 8, 32>}]} {
    %c0 = arith.constant 0 : index
    %c0_0 = arith.constant 0 : index
    %c0_1 = arith.constant 0 : index
    %0 = vector.load %arg3[%c0, %c0_0, %c0_1] : memref<4x32x8xf32, #tpu.memory_space<vmem>>, vector<4x32x8xf32>
    %c0_2 = arith.constant 0 : index
    %c0_3 = arith.constant 0 : index
    %c0_4 = arith.constant 0 : index
    %1 = vector.load %arg4[%c0_2, %c0_3, %c0_4] : memref<4x32x8xf32, #tpu.memory_space<vmem>>, vector<4x32x8xf32>
    %c0_5 = arith.constant 0 : index
    %c0_6 = arith.constant 0 : index
    %c0_7 = arith.constant 0 : index
    %2 = vector.load %arg5[%c0_5, %c0_6, %c0_7] : memref<4x32x8xf32, #tpu.memory_space<vmem>>, vector<4x32x8xf32>
    %c0_8 = arith.constant 0 : index
    %c0_9 = arith.constant 0 : index
    %c0_10 = arith.constant 0 : index
    %3 = vector.load %arg6[%c0_8, %c0_9, %c0_10] : memref<4x8x32xf32, #tpu.memory_space<vmem>>, vector<4x8x32xf32>
    %c0_11 = arith.constant 0 : index
    %c0_12 = arith.constant 0 : index
    %4 = vector.load %arg7[%c0_11, %c0_12] : memref<1x32xf32, #tpu.memory_space<vmem>>, vector<1x32xf32>
    %c0_13 = arith.constant 0 : index
    %c0_14 = arith.constant 0 : index
    %5 = vector.load %arg8[%c0_13, %c0_14] : memref<1x32xf32, #tpu.memory_space<vmem>>, vector<1x32xf32>
    %c0_15 = arith.constant 0 : index
    %c0_16 = arith.constant 0 : index
    %6 = vector.load %arg9[%c0_15, %c0_16] : memref<1x32xf32, #tpu.memory_space<vmem>>, vector<1x32xf32>
    %c0_17 = arith.constant 0 : index
    %c0_18 = arith.constant 0 : index
    %c0_19 = arith.constant 0 : index
    %7 = vector.load %arg1[%c0_17, %c0_18, %c0_19] : memref<2x8x32xf32, #tpu.memory_space<vmem>>, vector<1x8x32xf32>
    %8 = vector.shape_cast %7 : vector<1x8x32xf32> to vector<8x32xf32>
    %c0_20 = arith.constant 0 : index
    %c0_21 = arith.constant 0 : index
    %c0_22 = arith.constant 0 : index
    %9 = vector.load %arg2[%c0_20, %c0_21, %c0_22] : memref<2x16x32xf32, #tpu.memory_space<vmem>>, vector<1x16x32xf32>
    %10 = vector.shape_cast %9 : vector<1x16x32xf32> to vector<16x32xf32>
    %11 = vector.shape_cast %8 : vector<8x32xf32> to vector<1x8x32xf32>
    %12 = vector.broadcast %11 : vector<1x8x32xf32> to vector<4x8x32xf32>
    %13 = vector.shape_cast %10 : vector<16x32xf32> to vector<1x16x32xf32>
    %14 = vector.broadcast %13 : vector<1x16x32xf32> to vector<4x16x32xf32>
    "tpu.trace_start"() <{level = 10 : i32, message = "nqh,nhd->nqd"}> : () -> ()
    %cst = arith.constant dense<0.000000e+00> : vector<4x8x8xf32>
    %15 = tpu.matmul %12, %0, %cst {dimension_numbers = #tpu.dot_dimension_numbers<[2], [1], [1], [2], [0, 0, 0, 1, 1, 2], [0], [0]>} : vector<4x8x32xf32>, vector<4x32x8xf32>, vector<4x8x8xf32> -> vector<4x8x8xf32>
    "tpu.trace_stop"() : () -> ()
    "tpu.trace_start"() <{level = 10 : i32, message = "nkh,nhd->nkd"}> : () -> ()
    %cst_23 = arith.constant dense<0.000000e+00> : vector<4x16x8xf32>
    %16 = tpu.matmul %14, %1, %cst_23 {dimension_numbers = #tpu.dot_dimension_numbers<[2], [1], [1], [2], [0, 0, 0, 1, 1, 2], [0], [0]>} : vector<4x16x32xf32>, vector<4x32x8xf32>, vector<4x16x8xf32> -> vector<4x16x8xf32>
    %cst_24 = arith.constant dense<0.000000e+00> : vector<4x16x8xf32>
    %17 = tpu.matmul %14, %2, %cst_24 {dimension_numbers = #tpu.dot_dimension_numbers<[2], [1], [1], [2], [0, 0, 0, 1, 1, 2], [0], [0]>} : vector<4x16x32xf32>, vector<4x32x8xf32>, vector<4x16x8xf32> -> vector<4x16x8xf32>
    "tpu.trace_stop"() : () -> ()
    "tpu.trace_start"() <{level = 10 : i32, message = "nqd,nkd->nqk"}> : () -> ()
    %cst_25 = arith.constant dense<0.000000e+00> : vector<4x8x16xf32>
    %18 = tpu.matmul %15, %16, %cst_25 {dimension_numbers = #tpu.dot_dimension_numbers<[2], [2], [1], [1], [0, 0, 0, 1, 1, 1], [0], [0]>} : vector<4x8x8xf32>, vector<4x16x8xf32>, vector<4x8x16xf32> -> vector<4x8x16xf32>
    "tpu.trace_stop"() : () -> ()
    %cst_26 = arith.constant 0.353553385 : f32
    %19 = vector.broadcast %cst_26 : f32 to vector<4x8x16xf32>
    %20 = arith.mulf %18, %19 : vector<4x8x16xf32>
    %cst_27 = arith.constant dense<0xFF800000> : vector<4x8xf32>
    %21 = vector.multi_reduction <maximumf>, %20, %cst_27 [2] : vector<4x8x16xf32> to vector<4x8xf32>
    %22 = vector.shape_cast %21 : vector<4x8xf32> to vector<4x8x1xf32>
    %23 = vector.broadcast %22 : vector<4x8x1xf32> to vector<4x8x16xf32>
    %24 = arith.subf %20, %23 : vector<4x8x16xf32>
    %25 = math.exp %24 : vector<4x8x16xf32>
    %cst_28 = arith.constant dense<0.000000e+00> : vector<4x8xf32>
    %26 = vector.multi_reduction <add>, %25, %cst_28 [2] : vector<4x8x16xf32> to vector<4x8xf32>
    %27 = vector.shape_cast %26 : vector<4x8xf32> to vector<4x8x1xf32>
    %28 = tpu.reciprocal %27 {approx = true} : vector<4x8x1xf32> -> vector<4x8x1xf32>
    %29 = vector.broadcast %28 : vector<4x8x1xf32> to vector<4x8x16xf32>
    %30 = arith.mulf %25, %29 : vector<4x8x16xf32>
    "tpu.trace_start"() <{level = 10 : i32, message = "nqk,nkd->nqd"}> : () -> ()
    %cst_29 = arith.constant dense<0.000000e+00> : vector<4x8x8xf32>
    %31 = tpu.matmul %30, %17, %cst_29 {dimension_numbers = #tpu.dot_dimension_numbers<[2], [1], [1], [2], [0, 0, 0, 1, 1, 2], [0], [0]>} : vector<4x8x16xf32>, vector<4x16x8xf32>, vector<4x8x8xf32> -> vector<4x8x8xf32>
    "tpu.trace_stop"() : () -> ()
    "tpu.trace_start"() <{level = 10 : i32, message = "nqd,ndh->nqh"}> : () -> ()
    %cst_30 = arith.constant dense<0.000000e+00> : vector<4x8x32xf32>
    %32 = tpu.matmul %31, %3, %cst_30 {dimension_numbers = #tpu.dot_dimension_numbers<[2], [1], [1], [2], [0, 0, 0, 1, 1, 2], [0], [0]>} : vector<4x8x8xf32>, vector<4x8x32xf32>, vector<4x8x32xf32> -> vector<4x8x32xf32>
    "tpu.trace_stop"() : () -> ()
    %cst_31 = arith.constant dense<0.000000e+00> : vector<8x32xf32>
    %33 = vector.multi_reduction <add>, %32, %cst_31 [0] : vector<4x8x32xf32> to vector<8x32xf32>
    %34 = vector.broadcast %4 : vector<1x32xf32> to vector<8x32xf32>
    %35 = arith.addf %33, %34 : vector<8x32xf32>
    %36 = arith.addf %35, %8 : vector<8x32xf32>
    %cst_32 = arith.constant dense<0.000000e+00> : vector<8xf32>
    %37 = vector.multi_reduction <add>, %36, %cst_32 [1] : vector<8x32xf32> to vector<8xf32>
    %38 = vector.shape_cast %37 : vector<8xf32> to vector<8x1xf32>
    %cst_33 = arith.constant 3.200000e+01 : f32
    %39 = vector.broadcast %cst_33 : f32 to vector<8x1xf32>
    %40 = arith.divf %38, %39 : vector<8x1xf32>
    %41 = vector.broadcast %40 : vector<8x1xf32> to vector<8x32xf32>
    %42 = arith.subf %36, %41 : vector<8x32xf32>
    %43 = vector.broadcast %40 : vector<8x1xf32> to vector<8x32xf32>
    %44 = arith.subf %36, %43 : vector<8x32xf32>
    %45 = arith.mulf %42, %44 : vector<8x32xf32>
    %cst_34 = arith.constant dense<0.000000e+00> : vector<8xf32>
    %46 = vector.multi_reduction <add>, %45, %cst_34 [1] : vector<8x32xf32> to vector<8xf32>
    %47 = vector.shape_cast %46 : vector<8xf32> to vector<8x1xf32>
    %cst_35 = arith.constant 3.200000e+01 : f32
    %48 = vector.broadcast %cst_35 : f32 to vector<8x1xf32>
    %49 = arith.divf %47, %48 : vector<8x1xf32>
    %50 = vector.broadcast %40 : vector<8x1xf32> to vector<8x32xf32>
    %51 = arith.subf %36, %50 : vector<8x32xf32>
    %cst_36 = arith.constant 9.99999974E-6 : f32
    %52 = vector.broadcast %cst_36 : f32 to vector<8x1xf32>
    %53 = arith.addf %49, %52 : vector<8x1xf32>
    %54 = math.rsqrt %53 : vector<8x1xf32>
    %55 = vector.broadcast %54 : vector<8x1xf32> to vector<8x32xf32>
    %56 = arith.mulf %51, %55 : vector<8x32xf32>
    %57 = vector.broadcast %5 : vector<1x32xf32> to vector<8x32xf32>
    %58 = arith.mulf %56, %57 : vector<8x32xf32>
    %59 = vector.broadcast %6 : vector<1x32xf32> to vector<8x32xf32>
    %60 = arith.addf %58, %59 : vector<8x32xf32>
    %c0_37 = arith.constant 0 : index
    %c0_38 = arith.constant 0 : index
    %c0_39 = arith.constant 0 : index
    %61 = vector.load %arg10[%c0_37, %c0_38, %c0_39] : memref<2x8x32xf32, #tpu.memory_space<vmem>>, vector<1x8x32xf32>
    %62 = vector.shape_cast %61 : vector<1x8x32xf32> to vector<8x32xf32>
    %63 = vector.shape_cast %60 : vector<8x32xf32> to vector<1x8x32xf32>
    tpu.vector_store %arg10[%c0_37, %c0_38, %c0_39], %63 {strides = array<i32>} : memref<2x8x32xf32, #tpu.memory_space<vmem>>, vector<1x8x32xf32>,
    %c1 = arith.constant 1 : index
    %c0_40 = arith.constant 0 : index
    %c0_41 = arith.constant 0 : index
    %64 = vector.load %arg1[%c1, %c0_40, %c0_41] : memref<2x8x32xf32, #tpu.memory_space<vmem>>, vector<1x8x32xf32>
    %65 = vector.shape_cast %64 : vector<1x8x32xf32> to vector<8x32xf32>
    %c1_42 = arith.constant 1 : index
    %c0_43 = arith.constant 0 : index
    %c0_44 = arith.constant 0 : index
    %66 = vector.load %arg2[%c1_42, %c0_43, %c0_44] : memref<2x16x32xf32, #tpu.memory_space<vmem>>, vector<1x16x32xf32>
    %67 = vector.shape_cast %66 : vector<1x16x32xf32> to vector<16x32xf32>
    %68 = vector.shape_cast %65 : vector<8x32xf32> to vector<1x8x32xf32>
    %69 = vector.broadcast %68 : vector<1x8x32xf32> to vector<4x8x32xf32>
    %70 = vector.shape_cast %67 : vector<16x32xf32> to vector<1x16x32xf32>
    %71 = vector.broadcast %70 : vector<1x16x32xf32> to vector<4x16x32xf32>
    "tpu.trace_start"() <{level = 10 : i32, message = "nqh,nhd->nqd"}> : () -> ()
    %cst_45 = arith.constant dense<0.000000e+00> : vector<4x8x8xf32>
    %72 = tpu.matmul %69, %0, %cst_45 {dimension_numbers = #tpu.dot_dimension_numbers<[2], [1], [1], [2], [0, 0, 0, 1, 1, 2], [0], [0]>} : vector<4x8x32xf32>, vector<4x32x8xf32>, vector<4x8x8xf32> -> vector<4x8x8xf32>
    "tpu.trace_stop"() : () -> ()
    "tpu.trace_start"() <{level = 10 : i32, message = "nkh,nhd->nkd"}> : () -> ()
    %cst_46 = arith.constant dense<0.000000e+00> : vector<4x16x8xf32>
    %73 = tpu.matmul %71, %1, %cst_46 {dimension_numbers = #tpu.dot_dimension_numbers<[2], [1], [1], [2], [0, 0, 0, 1, 1, 2], [0], [0]>} : vector<4x16x32xf32>, vector<4x32x8xf32>, vector<4x16x8xf32> -> vector<4x16x8xf32>
    %cst_47 = arith.constant dense<0.000000e+00> : vector<4x16x8xf32>
    %74 = tpu.matmul %71, %2, %cst_47 {dimension_numbers = #tpu.dot_dimension_numbers<[2], [1], [1], [2], [0, 0, 0, 1, 1, 2], [0], [0]>} : vector<4x16x32xf32>, vector<4x32x8xf32>, vector<4x16x8xf32> -> vector<4x16x8xf32>
    "tpu.trace_stop"() : () -> ()
    "tpu.trace_start"() <{level = 10 : i32, message = "nqd,nkd->nqk"}> : () -> ()
    %cst_48 = arith.constant dense<0.000000e+00> : vector<4x8x16xf32>
    %75 = tpu.matmul %72, %73, %cst_48 {dimension_numbers = #tpu.dot_dimension_numbers<[2], [2], [1], [1], [0, 0, 0, 1, 1, 1], [0], [0]>} : vector<4x8x8xf32>, vector<4x16x8xf32>, vector<4x8x16xf32> -> vector<4x8x16xf32>
    "tpu.trace_stop"() : () -> ()
    %cst_49 = arith.constant 0.353553385 : f32
    %76 = vector.broadcast %cst_49 : f32 to vector<4x8x16xf32>
    %77 = arith.mulf %75, %76 : vector<4x8x16xf32>
    %cst_50 = arith.constant dense<0xFF800000> : vector<4x8xf32>
    %78 = vector.multi_reduction <maximumf>, %77, %cst_50 [2] : vector<4x8x16xf32> to vector<4x8xf32>
    %79 = vector.shape_cast %78 : vector<4x8xf32> to vector<4x8x1xf32>
    %80 = vector.broadcast %79 : vector<4x8x1xf32> to vector<4x8x16xf32>
    %81 = arith.subf %77, %80 : vector<4x8x16xf32>
    %82 = math.exp %81 : vector<4x8x16xf32>
    %cst_51 = arith.constant dense<0.000000e+00> : vector<4x8xf32>
    %83 = vector.multi_reduction <add>, %82, %cst_51 [2] : vector<4x8x16xf32> to vector<4x8xf32>
    %84 = vector.shape_cast %83 : vector<4x8xf32> to vector<4x8x1xf32>
    %85 = tpu.reciprocal %84 {approx = true} : vector<4x8x1xf32> -> vector<4x8x1xf32>
    %86 = vector.broadcast %85 : vector<4x8x1xf32> to vector<4x8x16xf32>
    %87 = arith.mulf %82, %86 : vector<4x8x16xf32>
    "tpu.trace_start"() <{level = 10 : i32, message = "nqk,nkd->nqd"}> : () -> ()
    %cst_52 = arith.constant dense<0.000000e+00> : vector<4x8x8xf32>
    %88 = tpu.matmul %87, %74, %cst_52 {dimension_numbers = #tpu.dot_dimension_numbers<[2], [1], [1], [2], [0, 0, 0, 1, 1, 2], [0], [0]>} : vector<4x8x16xf32>, vector<4x16x8xf32>, vector<4x8x8xf32> -> vector<4x8x8xf32>
    "tpu.trace_stop"() : () -> ()
    "tpu.trace_start"() <{level = 10 : i32, message = "nqd,ndh->nqh"}> : () -> ()
    %cst_53 = arith.constant dense<0.000000e+00> : vector<4x8x32xf32>
    %89 = tpu.matmul %88, %3, %cst_53 {dimension_numbers = #tpu.dot_dimension_numbers<[2], [1], [1], [2], [0, 0, 0, 1, 1, 2], [0], [0]>} : vector<4x8x8xf32>, vector<4x8x32xf32>, vector<4x8x32xf32> -> vector<4x8x32xf32>
    "tpu.trace_stop"() : () -> ()
    %cst_54 = arith.constant dense<0.000000e+00> : vector<8x32xf32>
    %90 = vector.multi_reduction <add>, %89, %cst_54 [0] : vector<4x8x32xf32> to vector<8x32xf32>
    %91 = vector.broadcast %4 : vector<1x32xf32> to vector<8x32xf32>
    %92 = arith.addf %90, %91 : vector<8x32xf32>
    %93 = arith.addf %92, %65 : vector<8x32xf32>
    %cst_55 = arith.constant dense<0.000000e+00> : vector<8xf32>
    %94 = vector.multi_reduction <add>, %93, %cst_55 [1] : vector<8x32xf32> to vector<8xf32>
    %95 = vector.shape_cast %94 : vector<8xf32> to vector<8x1xf32>
    %cst_56 = arith.constant 3.200000e+01 : f32
    %96 = vector.broadcast %cst_56 : f32 to vector<8x1xf32>
    %97 = arith.divf %95, %96 : vector<8x1xf32>
    %98 = vector.broadcast %97 : vector<8x1xf32> to vector<8x32xf32>
    %99 = arith.subf %93, %98 : vector<8x32xf32>
    %100 = vector.broadcast %97 : vector<8x1xf32> to vector<8x32xf32>
    %101 = arith.subf %93, %100 : vector<8x32xf32>
    %102 = arith.mulf %99, %101 : vector<8x32xf32>
    %cst_57 = arith.constant dense<0.000000e+00> : vector<8xf32>
    %103 = vector.multi_reduction <add>, %102, %cst_57 [1] : vector<8x32xf32> to vector<8xf32>
    %104 = vector.shape_cast %103 : vector<8xf32> to vector<8x1xf32>
    %cst_58 = arith.constant 3.200000e+01 : f32
    %105 = vector.broadcast %cst_58 : f32 to vector<8x1xf32>
    %106 = arith.divf %104, %105 : vector<8x1xf32>
    %107 = vector.broadcast %97 : vector<8x1xf32> to vector<8x32xf32>
    %108 = arith.subf %93, %107 : vector<8x32xf32>
    %cst_59 = arith.constant 9.99999974E-6 : f32
    %109 = vector.broadcast %cst_59 : f32 to vector<8x1xf32>
    %110 = arith.addf %106, %109 : vector<8x1xf32>
    %111 = math.rsqrt %110 : vector<8x1xf32>
    %112 = vector.broadcast %111 : vector<8x1xf32> to vector<8x32xf32>
    %113 = arith.mulf %108, %112 : vector<8x32xf32>
    %114 = vector.broadcast %5 : vector<1x32xf32> to vector<8x32xf32>
    %115 = arith.mulf %113, %114 : vector<8x32xf32>
    %116 = vector.broadcast %6 : vector<1x32xf32> to vector<8x32xf32>
    %117 = arith.addf %115, %116 : vector<8x32xf32>
    %c1_60 = arith.constant 1 : index
    %c0_61 = arith.constant 0 : index
    %c0_62 = arith.constant 0 : index
    %118 = vector.load %arg10[%c1_60, %c0_61, %c0_62] : memref<2x8x32xf32, #tpu.memory_space<vmem>>, vector<1x8x32xf32>
    %119 = vector.shape_cast %118 : vector<1x8x32xf32> to vector<8x32xf32>
    %120 = vector.shape_cast %117 : vector<8x32xf32> to vector<1x8x32xf32>
    tpu.vector_store %arg10[%c1_60, %c0_61, %c0_62], %120 {strides = array<i32>} : memref<2x8x32xf32, #tpu.memory_space<vmem>>, vector<1x8x32xf32>,
    return
  }
  func.func @transform_0(%arg0: i32) -> (i32, i32, i32) {
    %c0_i32 = arith.constant 0 : i32
    %c0_i32_0 = arith.constant 0 : i32
    %c0_i32_1 = arith.constant 0 : i32
    return %arg0, %c0_i32, %c0_i32_0 : i32, i32, i32
  }
  func.func @transform_1(%arg0: i32) -> (i32, i32, i32) {
    %c0_i32 = arith.constant 0 : i32
    %c0_i32_0 = arith.constant 0 : i32
    %c0_i32_1 = arith.constant 0 : i32
    return %arg0, %c0_i32, %c0_i32_0 : i32, i32, i32
  }
  func.func @transform_2(%arg0: i32) -> (i32, i32, i32) {
    %c0_i32 = arith.constant 0 : i32
    %c0_i32_0 = arith.constant 0 : i32
    %c0_i32_1 = arith.constant 0 : i32
    %c0_i32_2 = arith.constant 0 : i32
    return %c0_i32, %c0_i32_0, %c0_i32_1 : i32, i32, i32
  }
  func.func @transform_3(%arg0: i32) -> (i32, i32, i32) {
    %c0_i32 = arith.constant 0 : i32
    %c0_i32_0 = arith.constant 0 : i32
    %c0_i32_1 = arith.constant 0 : i32
    %c0_i32_2 = arith.constant 0 : i32
    return %c0_i32, %c0_i32_0, %c0_i32_1 : i32, i32, i32
  }
  func.func @transform_4(%arg0: i32) -> (i32, i32, i32) {
    %c0_i32 = arith.constant 0 : i32
    %c0_i32_0 = arith.constant 0 : i32
    %c0_i32_1 = arith.constant 0 : i32
    %c0_i32_2 = arith.constant 0 : i32
    return %c0_i32, %c0_i32_0, %c0_i32_1 : i32, i32, i32
  }
  func.func @transform_5(%arg0: i32) -> (i32, i32, i32) {
    %c0_i32 = arith.constant 0 : i32
    %c0_i32_0 = arith.constant 0 : i32
    %c0_i32_1 = arith.constant 0 : i32
    %c0_i32_2 = arith.constant 0 : i32
    return %c0_i32, %c0_i32_0, %c0_i32_1 : i32, i32, i32
  }
  func.func @transform_6(%arg0: i32) -> (i32, i32) {
    %c0_i32 = arith.constant 0 : i32
    %c0_i32_0 = arith.constant 0 : i32
    %c0_i32_1 = arith.constant 0 : i32
    return %c0_i32, %c0_i32_0 : i32, i32
  }
  func.func @transform_7(%arg0: i32) -> (i32, i32) {
    %c0_i32 = arith.constant 0 : i32
    %c0_i32_0 = arith.constant 0 : i32
    %c0_i32_1 = arith.constant 0 : i32
    return %c0_i32, %c0_i32_0 : i32, i32
  }
  func.func @transform_8(%arg0: i32) -> (i32, i32) {
    %c0_i32 = arith.constant 0 : i32
    %c0_i32_0 = arith.constant 0 : i32
    %c0_i32_1 = arith.constant 0 : i32
    return %c0_i32, %c0_i32_0 : i32, i32
  }
  func.func @transform_9(%arg0: i32) -> (i32, i32, i32) {
    %c0_i32 = arith.constant 0 : i32
    %c0_i32_0 = arith.constant 0 : i32
    %c0_i32_1 = arith.constant 0 : i32
    return %arg0, %c0_i32, %c0_i32_0 : i32, i32, i32
  }
}

</mosaic_0001>

<llo_original>
// kernel: tpu_custom_call.1
$region0: #{tpu_custom_call.1}
  #allocation0 [shape = 'u32[]', space=smem, size = 0x4, offset = 0x4, fixed_abs, tag = 'smem constant byte address 0x4 - core index']
  #allocation1 [shape = 'u32[144,128]{1,0:T(1,128)}', space=vmem, size = 0x12000, scoped, tag = 'internal scratch']
  %s0 = inlined_call_operand.vmem [shape: f32[2,8,32], index: 0, kind: input, shape index: {}]
  %s1 = inlined_call_operand.vmem [shape: f32[2,16,32], index: 1, kind: input, shape index: {}]
  %s2 = inlined_call_operand.vmem [shape: f32[4,32,8], index: 2, kind: input, shape index: {}]
  %s3 = inlined_call_operand.vmem [shape: f32[4,32,8], index: 3, kind: input, shape index: {}]
  %s4 = inlined_call_operand.vmem [shape: f32[4,32,8], index: 4, kind: input, shape index: {}]
  %s5 = inlined_call_operand.vmem [shape: f32[4,8,32], index: 5, kind: input, shape index: {}]
  %s6 = inlined_call_operand.vmem [shape: f32[1,32], index: 6, kind: input, shape index: {}]
  %s7 = inlined_call_operand.vmem [shape: f32[1,32], index: 7, kind: input, shape index: {}]
  %s8 = inlined_call_operand.vmem [shape: f32[1,32], index: 8, kind: input, shape index: {}]
  %s9 = inlined_call_operand.hbm [shape: f32[2,8,32], index: 9, kind: output, shape index: {}]
  %s10 = sld [smem:[#allocation0]]
  $region46: #{tpu_custom_call.1} parent=0
    _
  %s12 = ssub.s32 1, %s10
  %s13 = scalar_select 0, %s12, %s10
  $region1: #{tpu_custom_call.1} parent=0
    #allocation2 [shape = 'u8[8192]{0}', space=vmem, size = 0x2000, scoped, tag = 'output window, operand 0, single buffered']
    #allocation3 [shape = 's32[1]{0}', space=sflag, size = 0x4, scoped, tag = 'scoped memory for tpu_custom_call.1']
    %14 = vsyncpa [#allocation3], 0
    // Predicated region
    $region2: #{tpu_custom_call.1} parent=1 // pred_check
      _
    $region3: #{tpu_custom_call.1} parent=1 // pred_check_branch
      %16 = sbr.rel (0) target = $region5
    $region4: #{tpu_custom_call.1} parent=1 // pred_region
      _
    $region5: #{tpu_custom_call.1} parent=1 // pred_fallthru
      _
    // Predicated region
    $region6: #{tpu_custom_call.1} parent=1 // pred_check
      _
    $region7: #{tpu_custom_call.1} parent=1 // pred_check_branch
      %18 = sbr.rel (0) target = $region9
    $region8: #{tpu_custom_call.1} parent=1 // pred_region
      _
    $region9: #{tpu_custom_call.1} parent=1 // pred_fallthru
      _
    // Predicated region
    $region10: #{tpu_custom_call.1} parent=1 // pred_check
      _
    $region11: #{tpu_custom_call.1} parent=1 // pred_check_branch
      %20 = sbr.rel (0) target = $region13
    $region12: #{tpu_custom_call.1} parent=1 // pred_region
      _
    $region13: #{tpu_custom_call.1} parent=1 // pred_fallthru
      _
    // Predicated region
    $region14: #{tpu_custom_call.1} parent=1 // pred_check
      _
    $region15: #{tpu_custom_call.1} parent=1 // pred_check_branch
      %22 = sbr.rel (0) target = $region17
    $region16: #{tpu_custom_call.1} parent=1 // pred_region
      _
    $region17: #{tpu_custom_call.1} parent=1 // pred_fallthru
      _
    // Predicated region
    $region18: #{tpu_custom_call.1} parent=1 // pred_check
      _
    $region19: #{tpu_custom_call.1} parent=1 // pred_check_branch
      %24 = sbr.rel (0) target = $region21
    $region20: #{tpu_custom_call.1} parent=1 // pred_region
      _
    $region21: #{tpu_custom_call.1} parent=1 // pred_fallthru
      _
    // Predicated region
    $region22: #{tpu_custom_call.1} parent=1 // pred_check
      _
    $region23: #{tpu_custom_call.1} parent=1 // pred_check_branch
      %26 = sbr.rel (0) target = $region25
    $region24: #{tpu_custom_call.1} parent=1 // pred_region
      _
    $region25: #{tpu_custom_call.1} parent=1 // pred_fallthru
      _
    // Predicated region
    $region26: #{tpu_custom_call.1} parent=1 // pred_check
      _
    $region27: #{tpu_custom_call.1} parent=1 // pred_check_branch
      %28 = sbr.rel (0) target = $region29
    $region28: #{tpu_custom_call.1} parent=1 // pred_region
      _
    $region29: #{tpu_custom_call.1} parent=1 // pred_fallthru
      _
    // Predicated region
    $region30: #{tpu_custom_call.1} parent=1 // pred_check
      _
    $region31: #{tpu_custom_call.1} parent=1 // pred_check_branch
      %30 = sbr.rel (0) target = $region33
    $region32: #{tpu_custom_call.1} parent=1 // pred_region
      _
    $region33: #{tpu_custom_call.1} parent=1 // pred_fallthru
      _
    // Predicated region
    $region34: #{tpu_custom_call.1} parent=1 // pred_check
      _
    $region35: #{tpu_custom_call.1} parent=1 // pred_check_branch
      %32 = sbr.rel (0) target = $region37
    $region36: #{tpu_custom_call.1} parent=1 // pred_region
      _
    $region37: #{tpu_custom_call.1} parent=1 // pred_fallthru
      _
    %v33 = vld [vmem:[%s2] sm:$0xff]
    %v34 = vld [vmem:[%s2 + $0x8] sm:$0xff]
    %v35 = vld [vmem:[%s2 + $0x10] sm:$0xff]
    %v36 = vld [vmem:[%s2 + $0x18] sm:$0xff]
    %v37 = vld [vmem:[%s2 + $0x20] sm:$0xff]
    %v38 = vld [vmem:[%s2 + $0x28] sm:$0xff]
    %v39 = vld [vmem:[%s2 + $0x30] sm:$0xff]
    %v40 = vld [vmem:[%s2 + $0x38] sm:$0xff]
    %v41 = vld [vmem:[%s2 + $0x40] sm:$0xff]
    %v42 = vld [vmem:[%s2 + $0x48] sm:$0xff]
    %v43 = vld [vmem:[%s2 + $0x50] sm:$0xff]
    %v44 = vld [vmem:[%s2 + $0x58] sm:$0xff]
    %v45 = vld [vmem:[%s2 + $0x60] sm:$0xff]
    %v46 = vld [vmem:[%s2 + $0x68] sm:$0xff]
    %v47 = vld [vmem:[%s2 + $0x70] sm:$0xff]
    %v48 = vld [vmem:[%s2 + $0x78] sm:$0xff]
    %v49 = vld [vmem:[%s3] sm:$0xff]
    %v50 = vld [vmem:[%s3 + $0x8] sm:$0xff]
    %v51 = vld [vmem:[%s3 + $0x10] sm:$0xff]
    %v52 = vld [vmem:[%s3 + $0x18] sm:$0xff]
    %v53 = vld [vmem:[%s3 + $0x20] sm:$0xff]
    %v54 = vld [vmem:[%s3 + $0x28] sm:$0xff]
    %v55 = vld [vmem:[%s3 + $0x30] sm:$0xff]
    %v56 = vld [vmem:[%s3 + $0x38] sm:$0xff]
    %v57 = vld [vmem:[%s3 + $0x40] sm:$0xff]
    %v58 = vld [vmem:[%s3 + $0x48] sm:$0xff]
    %v59 = vld [vmem:[%s3 + $0x50] sm:$0xff]
    %v60 = vld [vmem:[%s3 + $0x58] sm:$0xff]
    %v61 = vld [vmem:[%s3 + $0x60] sm:$0xff]
    %v62 = vld [vmem:[%s3 + $0x68] sm:$0xff]
    %v63 = vld [vmem:[%s3 + $0x70] sm:$0xff]
    %v64 = vld [vmem:[%s3 + $0x78] sm:$0xff]
    %v65 = vld [vmem:[%s4] sm:$0xff]
    %v66 = vld [vmem:[%s4 + $0x8] sm:$0xff]
    %v67 = vld [vmem:[%s4 + $0x10] sm:$0xff]
    %v68 = vld [vmem:[%s4 + $0x18] sm:$0xff]
    %v69 = vld [vmem:[%s4 + $0x20] sm:$0xff]
    %v70 = vld [vmem:[%s4 + $0x28] sm:$0xff]
    %v71 = vld [vmem:[%s4 + $0x30] sm:$0xff]
    %v72 = vld [vmem:[%s4 + $0x38] sm:$0xff]
    %v73 = vld [vmem:[%s4 + $0x40] sm:$0xff]
    %v74 = vld [vmem:[%s4 + $0x48] sm:$0xff]
    %v75 = vld [vmem:[%s4 + $0x50] sm:$0xff]
    %v76 = vld [vmem:[%s4 + $0x58] sm:$0xff]
    %v77 = vld [vmem:[%s4 + $0x60] sm:$0xff]
    %v78 = vld [vmem:[%s4 + $0x68] sm:$0xff]
    %v79 = vld [vmem:[%s4 + $0x70] sm:$0xff]
    %v80 = vld [vmem:[%s4 + $0x78] sm:$0xff]
    %v81 = vld [vmem:[%s5] sm:$0xff]
    %v82 = vld [vmem:[%s5 + $0x8] sm:$0xff]
    %v83 = vld [vmem:[%s5 + $0x10] sm:$0xff]
    %v84 = vld [vmem:[%s5 + $0x18] sm:$0xff]
    %v85 = vld [vmem:[%s6] sm:$0x1]
    %v86 = vld [vmem:[%s7] sm:$0x1]
    %v87 = vld [vmem:[%s8] sm:$0x1]
    %v88 = vld [vmem:[%s0] sm:$0xff]
    %v89 = vld [vmem:[%s1] sm:$0xff]
    %v90 = vld [vmem:[%s1 + $0x8] sm:$0xff]
    %vm91 = vcmask 261120
    %v93 = vsel %vm91, %v88, 0
    %95 = vmatprep.subr.mxu0 0.0
    %96 = vmatpush1.msra.mxu0 %v33
    %97 = vmatprep.subr.mxu0 0.0
    %98 = vmatpush1.msra.mxu0 %v34
    %99 = vmatprep.subr.mxu0 0.0
    %100 = vmatpush1.msra.mxu0 %v35
    %101 = vmatprep.subr.mxu0 0.0
    %102 = vmatpush1.msra.mxu0 %v36
    %103 = vmatprep.subr.mxu0 0.0
    %104 = vmatpush1.msra.mxu0 0.0
    %105 = vmatprep.subr.mxu0 0.0
    %106 = vmatpush1.msra.mxu0 0.0
    %107 = vmatprep.subr.mxu0 0.0
    %108 = vmatpush1.msra.mxu0 0.0
    %109 = vmatprep.subr.mxu0 0.0
    %110 = vmatpush1.msra.mxu0 0.0
    %111 = vmatprep.subr.mxu0 0.0
    %112 = vmatpush1.msra.mxu0 0.0
    %113 = vmatprep.subr.mxu0 0.0
    %114 = vmatpush1.msra.mxu0 0.0
    %115 = vmatprep.subr.mxu0 0.0
    %116 = vmatpush1.msra.mxu0 0.0
    %117 = vmatprep.subr.mxu0 0.0
    %118 = vmatpush1.msra.mxu0 0.0
    %119 = vmatprep.subr.mxu0 0.0
    %120 = vmatpush1.msra.mxu0 0.0
    %121 = vmatprep.subr.mxu0 0.0
    %122 = vmatpush1.msra.mxu0 0.0
    %123 = vmatprep.subr.mxu0 0.0
    %124 = vmatpush1.msra.mxu0 0.0
    %125 = vmatprep.subr.mxu0 0.0
    %126 = vmatpush1.msra.mxu0 0.0
    %127 = vmatprep.subr.mxu0 0.0
    %128 = vmatpush1.msra.mxu0 0.0
    %129 = vmatprep.subr.mxu0 0.0
    %130 = vmatpush1.msra.mxu0 0.0
    %131 = vmatprep.subr.mxu0 0.0
    %132 = vmatpush1.msra.mxu0 0.0
    %133 = vmatprep.subr.mxu0 0.0
    %134 = vmatpush1.msra.mxu0 0.0
    %135 = vmatprep.subr.mxu0 0.0
    %136 = vmatpush1.msra.mxu0 0.0
    %137 = vmatprep.subr.mxu0 0.0
    %138 = vmatpush1.msra.mxu0 0.0
    %139 = vmatprep.subr.mxu0 0.0
    %140 = vmatpush1.msra.mxu0 0.0
    %141 = vmatprep.subr.mxu0 0.0
    %142 = vmatpush1.msra.mxu0 0.0
    %143 = vmatprep.subr.mxu0 0.0
    %144 = vmatpush1.msra.mxu0 0.0
    %145 = vmatprep.subr.mxu0 0.0
    %146 = vmatpush1.msra.mxu0 0.0
    %147 = vmatprep.subr.mxu0 0.0
    %148 = vmatpush1.msra.mxu0 0.0
    %149 = vmatprep.subr.mxu0 0.0
    %150 = vmatpush1.msra.mxu0 0.0
    %151 = vmatprep.subr.mxu0 0.0
    %152 = vmatpush1.msra.mxu0 0.0
    %153 = vmatprep.subr.mxu0 0.0
    %154 = vmatpush1.msra.mxu0 0.0
    %155 = vmatprep.subr.mxu0 0.0
    %156 = vmatpush1.msra.mxu0 0.0
    %157 = vmatprep.subr.mxu0 0.0
    %158 = vmatpush1.msra.mxu0 0.0
    %159 = vmatprep.mubr.f32.mxu0 0.0
    %160 = vmatmul.mubr.f32.gmra.mrb[0].mxu0 %v93
    %v161 = vpop.f32.mrb[0].mxu0
    %v162 = vadd.f32 0.0, %v161
    %v163 = vpop.f32.mrb[0].mxu0
    %164 = vdwg.mxu0
    %165 = vmatprep.subr.mxu0 0.0
    %166 = vmatpush1.msra.mxu0 %v37
    %167 = vmatprep.subr.mxu0 0.0
    %168 = vmatpush1.msra.mxu0 %v38
    %169 = vmatprep.subr.mxu0 0.0
    %170 = vmatpush1.msra.mxu0 %v39
    %171 = vmatprep.subr.mxu0 0.0
    %172 = vmatpush1.msra.mxu0 %v40
    %173 = vmatprep.subr.mxu0 0.0
    %174 = vmatpush1.msra.mxu0 0.0
    %175 = vmatprep.subr.mxu0 0.0
    %176 = vmatpush1.msra.mxu0 0.0
    %177 = vmatprep.subr.mxu0 0.0
    %178 = vmatpush1.msra.mxu0 0.0
    %179 = vmatprep.subr.mxu0 0.0
    %180 = vmatpush1.msra.mxu0 0.0
    %181 = vmatprep.subr.mxu0 0.0
    %182 = vmatpush1.msra.mxu0 0.0
    %183 = vmatprep.subr.mxu0 0.0
    %184 = vmatpush1.msra.mxu0 0.0
    %185 = vmatprep.subr.mxu0 0.0
    %186 = vmatpush1.msra.mxu0 0.0
    %187 = vmatprep.subr.mxu0 0.0
    %188 = vmatpush1.msra.mxu0 0.0
    %189 = vmatprep.subr.mxu0 0.0
    %190 = vmatpush1.msra.mxu0 0.0
    %191 = vmatprep.subr.mxu0 0.0
    %192 = vmatpush1.msra.mxu0 0.0
    %193 = vmatprep.subr.mxu0 0.0
    %194 = vmatpush1.msra.mxu0 0.0
    %195 = vmatprep.subr.mxu0 0.0
    %196 = vmatpush1.msra.mxu0 0.0
    %197 = vmatprep.subr.mxu0 0.0
    %198 = vmatpush1.msra.mxu0 0.0
    %199 = vmatprep.subr.mxu0 0.0
    %200 = vmatpush1.msra.mxu0 0.0
    %201 = vmatprep.subr.mxu0 0.0
    %202 = vmatpush1.msra.mxu0 0.0
    %203 = vmatprep.subr.mxu0 0.0
    %204 = vmatpush1.msra.mxu0 0.0
    %205 = vmatprep.subr.mxu0 0.0
    %206 = vmatpush1.msra.mxu0 0.0
    %207 = vmatprep.subr.mxu0 0.0
    %208 = vmatpush1.msra.mxu0 0.0
    %209 = vmatprep.subr.mxu0 0.0
    %210 = vmatpush1.msra.mxu0 0.0
    %211 = vmatprep.subr.mxu0 0.0
    %212 = vmatpush1.msra.mxu0 0.0
    %213 = vmatprep.subr.mxu0 0.0
    %214 = vmatpush1.msra.mxu0 0.0
    %215 = vmatprep.subr.mxu0 0.0
    %216 = vmatpush1.msra.mxu0 0.0
    %217 = vmatprep.subr.mxu0 0.0
    %218 = vmatpush1.msra.mxu0 0.0
    %219 = vmatprep.subr.mxu0 0.0
    %220 = vmatpush1.msra.mxu0 0.0
    %221 = vmatprep.subr.mxu0 0.0
    %222 = vmatpush1.msra.mxu0 0.0
    %223 = vmatprep.subr.mxu0 0.0
    %224 = vmatpush1.msra.mxu0 0.0
    %225 = vmatprep.subr.mxu0 0.0
    %226 = vmatpush1.msra.mxu0 0.0
    %227 = vmatprep.subr.mxu0 0.0
    %228 = vmatpush1.msra.mxu0 0.0
    %229 = vmatprep.mubr.f32.mxu0 0.0
    %230 = vmatmul.mubr.f32.gmra.mrb[0].mxu0 %v93
    %v231 = vpop.f32.mrb[0].mxu0
    %v232 = vadd.f32 0.0, %v231
    %v233 = vpop.f32.mrb[0].mxu0
    %234 = vdwg.mxu0
    %235 = vmatprep.subr.mxu0 0.0
    %236 = vmatpush1.msra.mxu0 %v41
    %237 = vmatprep.subr.mxu0 0.0
    %238 = vmatpush1.msra.mxu0 %v42
    %239 = vmatprep.subr.mxu0 0.0
    %240 = vmatpush1.msra.mxu0 %v43
    %241 = vmatprep.subr.mxu0 0.0
    %242 = vmatpush1.msra.mxu0 %v44
    %243 = vmatprep.subr.mxu0 0.0
    %244 = vmatpush1.msra.mxu0 0.0
    %245 = vmatprep.subr.mxu0 0.0
    %246 = vmatpush1.msra.mxu0 0.0
    %247 = vmatprep.subr.mxu0 0.0
    %248 = vmatpush1.msra.mxu0 0.0
    %249 = vmatprep.subr.mxu0 0.0
    %250 = vmatpush1.msra.mxu0 0.0
    %251 = vmatprep.subr.mxu0 0.0
    %252 = vmatpush1.msra.mxu0 0.0
    %253 = vmatprep.subr.mxu0 0.0
    %254 = vmatpush1.msra.mxu0 0.0
    %255 = vmatprep.subr.mxu0 0.0
    %256 = vmatpush1.msra.mxu0 0.0
    %257 = vmatprep.subr.mxu0 0.0
    %258 = vmatpush1.msra.mxu0 0.0
    %259 = vmatprep.subr.mxu0 0.0
    %260 = vmatpush1.msra.mxu0 0.0
    %261 = vmatprep.subr.mxu0 0.0
    %262 = vmatpush1.msra.mxu0 0.0
    %263 = vmatprep.subr.mxu0 0.0
    %264 = vmatpush1.msra.mxu0 0.0
    %265 = vmatprep.subr.mxu0 0.0
    %266 = vmatpush1.msra.mxu0 0.0
    %267 = vmatprep.subr.mxu0 0.0
    %268 = vmatpush1.msra.mxu0 0.0
    %269 = vmatprep.subr.mxu0 0.0
    %270 = vmatpush1.msra.mxu0 0.0
    %271 = vmatprep.subr.mxu0 0.0
    %272 = vmatpush1.msra.mxu0 0.0
    %273 = vmatprep.subr.mxu0 0.0
    %274 = vmatpush1.msra.mxu0 0.0
    %275 = vmatprep.subr.mxu0 0.0
    %276 = vmatpush1.msra.mxu0 0.0
    %277 = vmatprep.subr.mxu0 0.0
    %278 = vmatpush1.msra.mxu0 0.0
    %279 = vmatprep.subr.mxu0 0.0
    %280 = vmatpush1.msra.mxu0 0.0
    %281 = vmatprep.subr.mxu0 0.0
    %282 = vmatpush1.msra.mxu0 0.0
    %283 = vmatprep.subr.mxu0 0.0
    %284 = vmatpush1.msra.mxu0 0.0
    %285 = vmatprep.subr.mxu0 0.0
    %286 = vmatpush1.msra.mxu0 0.0
    %287 = vmatprep.subr.mxu0 0.0
    %288 = vmatpush1.msra.mxu0 0.0
    %289 = vmatprep.subr.mxu0 0.0
    %290 = vmatpush1.msra.mxu0 0.0
    %291 = vmatprep.subr.mxu0 0.0
    %292 = vmatpush1.msra.mxu0 0.0
    %293 = vmatprep.subr.mxu0 0.0
    %294 = vmatpush1.msra.mxu0 0.0
    %295 = vmatprep.subr.mxu0 0.0
    %296 = vmatpush1.msra.mxu0 0.0
    %297 = vmatprep.subr.mxu0 0.0
    %298 = vmatpush1.msra.mxu0 0.0
    %299 = vmatprep.mubr.f32.mxu0 0.0
    %300 = vmatmul.mubr.f32.gmra.mrb[0].mxu0 %v93
    %v301 = vpop.f32.mrb[0].mxu0
    %v302 = vadd.f32 0.0, %v301
    %v303 = vpop.f32.mrb[0].mxu0
    %304 = vdwg.mxu0
    %305 = vmatprep.subr.mxu0 0.0
    %306 = vmatpush1.msra.mxu0 %v45
    %307 = vmatprep.subr.mxu0 0.0
    %308 = vmatpush1.msra.mxu0 %v46
    %309 = vmatprep.subr.mxu0 0.0
    %310 = vmatpush1.msra.mxu0 %v47
    %311 = vmatprep.subr.mxu0 0.0
    %312 = vmatpush1.msra.mxu0 %v48
    %313 = vmatprep.subr.mxu0 0.0
    %314 = vmatpush1.msra.mxu0 0.0
    %315 = vmatprep.subr.mxu0 0.0
    %316 = vmatpush1.msra.mxu0 0.0
    %317 = vmatprep.subr.mxu0 0.0
    %318 = vmatpush1.msra.mxu0 0.0
    %319 = vmatprep.subr.mxu0 0.0
    %320 = vmatpush1.msra.mxu0 0.0
    %321 = vmatprep.subr.mxu0 0.0
    %322 = vmatpush1.msra.mxu0 0.0
    %323 = vmatprep.subr.mxu0 0.0
    %324 = vmatpush1.msra.mxu0 0.0
    %325 = vmatprep.subr.mxu0 0.0
    %326 = vmatpush1.msra.mxu0 0.0
    %327 = vmatprep.subr.mxu0 0.0
    %328 = vmatpush1.msra.mxu0 0.0
    %329 = vmatprep.subr.mxu0 0.0
    %330 = vmatpush1.msra.mxu0 0.0
    %331 = vmatprep.subr.mxu0 0.0
    %332 = vmatpush1.msra.mxu0 0.0
    %333 = vmatprep.subr.mxu0 0.0
    %334 = vmatpush1.msra.mxu0 0.0
    %335 = vmatprep.subr.mxu0 0.0
    %336 = vmatpush1.msra.mxu0 0.0
    %337 = vmatprep.subr.mxu0 0.0
    %338 = vmatpush1.msra.mxu0 0.0
    %339 = vmatprep.subr.mxu0 0.0
    %340 = vmatpush1.msra.mxu0 0.0
    %341 = vmatprep.subr.mxu0 0.0
    %342 = vmatpush1.msra.mxu0 0.0
    %343 = vmatprep.subr.mxu0 0.0
    %344 = vmatpush1.msra.mxu0 0.0
    %345 = vmatprep.subr.mxu0 0.0
    %346 = vmatpush1.msra.mxu0 0.0
    %347 = vmatprep.subr.mxu0 0.0
    %348 = vmatpush1.msra.mxu0 0.0
    %349 = vmatprep.subr.mxu0 0.0
    %350 = vmatpush1.msra.mxu0 0.0
    %351 = vmatprep.subr.mxu0 0.0
    %352 = vmatpush1.msra.mxu0 0.0
    %353 = vmatprep.subr.mxu0 0.0
    %354 = vmatpush1.msra.mxu0 0.0
    %355 = vmatprep.subr.mxu0 0.0
    %356 = vmatpush1.msra.mxu0 0.0
    %357 = vmatprep.subr.mxu0 0.0
    %358 = vmatpush1.msra.mxu0 0.0
    %359 = vmatprep.subr.mxu0 0.0
    %360 = vmatpush1.msra.mxu0 0.0
    %361 = vmatprep.subr.mxu0 0.0
    %362 = vmatpush1.msra.mxu0 0.0
    %363 = vmatprep.subr.mxu0 0.0
    %364 = vmatpush1.msra.mxu0 0.0
    %365 = vmatprep.subr.mxu0 0.0
    %366 = vmatpush1.msra.mxu0 0.0
    %367 = vmatprep.subr.mxu0 0.0
    %368 = vmatpush1.msra.mxu0 0.0
    %369 = vmatprep.mubr.f32.mxu0 0.0
    %370 = vmatmul.mubr.f32.gmra.mrb[0].mxu0 %v93
    %v371 = vpop.f32.mrb[0].mxu0
    %v372 = vadd.f32 0.0, %v371
    %v373 = vpop.f32.mrb[0].mxu0
    %374 = vdwg.mxu0
    %v376 = vsel %vm91, %v89, 0
    %v379 = vsel %vm91, %v90, 0
    %381 = vmatprep.subr.mxu0 0.0
    %382 = vmatpush1.msra.mxu0 %v49
    %383 = vmatprep.subr.mxu0 0.0
    %384 = vmatpush1.msra.mxu0 %v50
    %385 = vmatprep.subr.mxu0 0.0
    %386 = vmatpush1.msra.mxu0 %v51
    %387 = vmatprep.subr.mxu0 0.0
    %388 = vmatpush1.msra.mxu0 %v52
    %389 = vmatprep.subr.mxu0 0.0
    %390 = vmatpush1.msra.mxu0 0.0
    %391 = vmatprep.subr.mxu0 0.0
    %392 = vmatpush1.msra.mxu0 0.0
    %393 = vmatprep.subr.mxu0 0.0
    %394 = vmatpush1.msra.mxu0 0.0
    %395 = vmatprep.subr.mxu0 0.0
    %396 = vmatpush1.msra.mxu0 0.0
    %397 = vmatprep.subr.mxu0 0.0
    %398 = vmatpush1.msra.mxu0 0.0
    %399 = vmatprep.subr.mxu0 0.0
    %400 = vmatpush1.msra.mxu0 0.0
    %401 = vmatprep.subr.mxu0 0.0
    %402 = vmatpush1.msra.mxu0 0.0
    %403 = vmatprep.subr.mxu0 0.0
    %404 = vmatpush1.msra.mxu0 0.0
    %405 = vmatprep.subr.mxu0 0.0
    %406 = vmatpush1.msra.mxu0 0.0
    %407 = vmatprep.subr.mxu0 0.0
    %408 = vmatpush1.msra.mxu0 0.0
    %409 = vmatprep.subr.mxu0 0.0
    %410 = vmatpush1.msra.mxu0 0.0
    %411 = vmatprep.subr.mxu0 0.0
    %412 = vmatpush1.msra.mxu0 0.0
    %413 = vmatprep.subr.mxu0 0.0
    %414 = vmatpush1.msra.mxu0 0.0
    %415 = vmatprep.subr.mxu0 0.0
    %416 = vmatpush1.msra.mxu0 0.0
    %417 = vmatprep.subr.mxu0 0.0
    %418 = vmatpush1.msra.mxu0 0.0
    %419 = vmatprep.subr.mxu0 0.0
    %420 = vmatpush1.msra.mxu0 0.0
    %421 = vmatprep.subr.mxu0 0.0
    %422 = vmatpush1.msra.mxu0 0.0
    %423 = vmatprep.subr.mxu0 0.0
    %424 = vmatpush1.msra.mxu0 0.0
    %425 = vmatprep.subr.mxu0 0.0
    %426 = vmatpush1.msra.mxu0 0.0
    %427 = vmatprep.subr.mxu0 0.0
    %428 = vmatpush1.msra.mxu0 0.0
    %429 = vmatprep.subr.mxu0 0.0
    %430 = vmatpush1.msra.mxu0 0.0
    %431 = vmatprep.subr.mxu0 0.0
    %432 = vmatpush1.msra.mxu0 0.0
    %433 = vmatprep.subr.mxu0 0.0
    %434 = vmatpush1.msra.mxu0 0.0
    %435 = vmatprep.subr.mxu0 0.0
    %436 = vmatpush1.msra.mxu0 0.0
    %437 = vmatprep.subr.mxu0 0.0
    %438 = vmatpush1.msra.mxu0 0.0
    %439 = vmatprep.subr.mxu0 0.0
    %440 = vmatpush1.msra.mxu0 0.0
    %441 = vmatprep.subr.mxu0 0.0
    %442 = vmatpush1.msra.mxu0 0.0
    %443 = vmatprep.subr.mxu0 0.0
    %444 = vmatpush1.msra.mxu0 0.0
    %445 = vmatprep.mubr.f32.mxu0 0.0
    %446 = vmatmul.mubr.f32.gmra.mrb[0].mxu0 %v376
    %v447 = vpop.f32.mrb[0].mxu0
    %v448 = vadd.f32 0.0, %v447
    %v449 = vpop.f32.mrb[0].mxu0
    %450 = vmatprep.mubr.f32.mxu0 0.0
    %451 = vmatmul.mubr.f32.gmra.mrb[0].mxu0 %v379
    %v452 = vpop.f32.mrb[0].mxu0
    %v453 = vadd.f32 0.0, %v452
    %v454 = vpop.f32.mrb[0].mxu0
    %455 = vdwg.mxu0
    %456 = vmatprep.subr.mxu0 0.0
    %457 = vmatpush1.msra.mxu0 %v53
    %458 = vmatprep.subr.mxu0 0.0
    %459 = vmatpush1.msra.mxu0 %v54
    %460 = vmatprep.subr.mxu0 0.0
    %461 = vmatpush1.msra.mxu0 %v55
    %462 = vmatprep.subr.mxu0 0.0
    %463 = vmatpush1.msra.mxu0 %v56
    %464 = vmatprep.subr.mxu0 0.0
    %465 = vmatpush1.msra.mxu0 0.0
    %466 = vmatprep.subr.mxu0 0.0
    %467 = vmatpush1.msra.mxu0 0.0
    %468 = vmatprep.subr.mxu0 0.0
    %469 = vmatpush1.msra.mxu0 0.0
    %470 = vmatprep.subr.mxu0 0.0
    %471 = vmatpush1.msra.mxu0 0.0
    %472 = vmatprep.subr.mxu0 0.0
    %473 = vmatpush1.msra.mxu0 0.0
    %474 = vmatprep.subr.mxu0 0.0
    %475 = vmatpush1.msra.mxu0 0.0
    %476 = vmatprep.subr.mxu0 0.0
    %477 = vmatpush1.msra.mxu0 0.0
    %478 = vmatprep.subr.mxu0 0.0
    %479 = vmatpush1.msra.mxu0 0.0
    %480 = vmatprep.subr.mxu0 0.0
    %481 = vmatpush1.msra.mxu0 0.0
    %482 = vmatprep.subr.mxu0 0.0
    %483 = vmatpush1.msra.mxu0 0.0
    %484 = vmatprep.subr.mxu0 0.0
    %485 = vmatpush1.msra.mxu0 0.0
    %486 = vmatprep.subr.mxu0 0.0
    %487 = vmatpush1.msra.mxu0 0.0
    %488 = vmatprep.subr.mxu0 0.0
    %489 = vmatpush1.msra.mxu0 0.0
    %490 = vmatprep.subr.mxu0 0.0
    %491 = vmatpush1.msra.mxu0 0.0
    %492 = vmatprep.subr.mxu0 0.0
    %493 = vmatpush1.msra.mxu0 0.0
    %494 = vmatprep.subr.mxu0 0.0
    %495 = vmatpush1.msra.mxu0 0.0
    %496 = vmatprep.subr.mxu0 0.0
    %497 = vmatpush1.msra.mxu0 0.0
    %498 = vmatprep.subr.mxu0 0.0
    %499 = vmatpush1.msra.mxu0 0.0
    %500 = vmatprep.subr.mxu0 0.0
    %501 = vmatpush1.msra.mxu0 0.0
    %502 = vmatprep.subr.mxu0 0.0
    %503 = vmatpush1.msra.mxu0 0.0
    %504 = vmatprep.subr.mxu0 0.0
    %505 = vmatpush1.msra.mxu0 0.0
    %506 = vmatprep.subr.mxu0 0.0
    %507 = vmatpush1.msra.mxu0 0.0
    %508 = vmatprep.subr.mxu0 0.0
    %509 = vmatpush1.msra.mxu0 0.0
    %510 = vmatprep.subr.mxu0 0.0
    %511 = vmatpush1.msra.mxu0 0.0
    %512 = vmatprep.subr.mxu0 0.0
    %513 = vmatpush1.msra.mxu0 0.0
    %514 = vmatprep.subr.mxu0 0.0
    %515 = vmatpush1.msra.mxu0 0.0
    %516 = vmatprep.subr.mxu0 0.0
    %517 = vmatpush1.msra.mxu0 0.0
    %518 = vmatprep.subr.mxu0 0.0
    %519 = vmatpush1.msra.mxu0 0.0
    %520 = vmatprep.mubr.f32.mxu0 0.0
    %521 = vmatmul.mubr.f32.gmra.mrb[0].mxu0 %v376
    %v522 = vpop.f32.mrb[0].mxu0
    %v523 = vadd.f32 0.0, %v522
    %v524 = vpop.f32.mrb[0].mxu0
    %525 = vmatprep.mubr.f32.mxu0 0.0
    %526 = vmatmul.mubr.f32.gmra.mrb[0].mxu0 %v379
    %v527 = vpop.f32.mrb[0].mxu0
    %v528 = vadd.f32 0.0, %v527
    %v529 = vpop.f32.mrb[0].mxu0
    %530 = vdwg.mxu0
    %531 = vmatprep.subr.mxu0 0.0
    %532 = vmatpush1.msra.mxu0 %v57
    %533 = vmatprep.subr.mxu0 0.0
    %534 = vmatpush1.msra.mxu0 %v58
    %535 = vmatprep.subr.mxu0 0.0
    %536 = vmatpush1.msra.mxu0 %v59
    %537 = vmatprep.subr.mxu0 0.0
    %538 = vmatpush1.msra.mxu0 %v60
    %539 = vmatprep.subr.mxu0 0.0
    %540 = vmatpush1.msra.mxu0 0.0
    %541 = vmatprep.subr.mxu0 0.0
    %542 = vmatpush1.msra.mxu0 0.0
    %543 = vmatprep.subr.mxu0 0.0
    %544 = vmatpush1.msra.mxu0 0.0
    %545 = vmatprep.subr.mxu0 0.0
    %546 = vmatpush1.msra.mxu0 0.0
    %547 = vmatprep.subr.mxu0 0.0
    %548 = vmatpush1.msra.mxu0 0.0
    %549 = vmatprep.subr.mxu0 0.0
    %550 = vmatpush1.msra.mxu0 0.0
    %551 = vmatprep.subr.mxu0 0.0
    %552 = vmatpush1.msra.mxu0 0.0
    %553 = vmatprep.subr.mxu0 0.0
    %554 = vmatpush1.msra.mxu0 0.0
    %555 = vmatprep.subr.mxu0 0.0
    %556 = vmatpush1.msra.mxu0 0.0
    %557 = vmatprep.subr.mxu0 0.0
    %558 = vmatpush1.msra.mxu0 0.0
    %559 = vmatprep.subr.mxu0 0.0
    %560 = vmatpush1.msra.mxu0 0.0
    %561 = vmatprep.subr.mxu0 0.0
    %562 = vmatpush1.msra.mxu0 0.0
    %563 = vmatprep.subr.mxu0 0.0
    %564 = vmatpush1.msra.mxu0 0.0
    %565 = vmatprep.subr.mxu0 0.0
    %566 = vmatpush1.msra.mxu0 0.0
    %567 = vmatprep.subr.mxu0 0.0
    %568 = vmatpush1.msra.mxu0 0.0
    %569 = vmatprep.subr.mxu0 0.0
    %570 = vmatpush1.msra.mxu0 0.0
    %571 = vmatprep.subr.mxu0 0.0
    %572 = vmatpush1.msra.mxu0 0.0
    %573 = vmatprep.subr.mxu0 0.0
    %574 = vmatpush1.msra.mxu0 0.0
    %575 = vmatprep.subr.mxu0 0.0
    %576 = vmatpush1.msra.mxu0 0.0
    %577 = vmatprep.subr.mxu0 0.0
    %578 = vmatpush1.msra.mxu0 0.0
    %579 = vmatprep.subr.mxu0 0.0
    %580 = vmatpush1.msra.mxu0 0.0
    %581 = vmatprep.subr.mxu0 0.0
    %582 = vmatpush1.msra.mxu0 0.0
    %583 = vmatprep.subr.mxu0 0.0
    %584 = vmatpush1.msra.mxu0 0.0
    %585 = vmatprep.subr.mxu0 0.0
    %586 = vmatpush1.msra.mxu0 0.0
    %587 = vmatprep.subr.mxu0 0.0
    %588 = vmatpush1.msra.mxu0 0.0
    %589 = vmatprep.subr.mxu0 0.0
    %590 = vmatpush1.msra.mxu0 0.0
    %591 = vmatprep.subr.mxu0 0.0
    %592 = vmatpush1.msra.mxu0 0.0
    %593 = vmatprep.subr.mxu0 0.0
    %594 = vmatpush1.msra.mxu0 0.0
    %595 = vmatprep.mubr.f32.mxu0 0.0
    %596 = vmatmul.mubr.f32.gmra.mrb[0].mxu0 %v376
    %v597 = vpop.f32.mrb[0].mxu0
    %v598 = vadd.f32 0.0, %v597
    %v599 = vpop.f32.mrb[0].mxu0
    %600 = vmatprep.mubr.f32.mxu0 0.0
    %601 = vmatmul.mubr.f32.gmra.mrb[0].mxu0 %v379
    %v602 = vpop.f32.mrb[0].mxu0
    %v603 = vadd.f32 0.0, %v602
    %v604 = vpop.f32.mrb[0].mxu0
    %605 = vdwg.mxu0
    %606 = vmatprep.subr.mxu0 0.0
    %607 = vmatpush1.msra.mxu0 %v61
    %608 = vmatprep.subr.mxu0 0.0
    %609 = vmatpush1.msra.mxu0 %v62
    %610 = vmatprep.subr.mxu0 0.0
    %611 = vmatpush1.msra.mxu0 %v63
    %612 = vmatprep.subr.mxu0 0.0
    %613 = vmatpush1.msra.mxu0 %v64
    %614 = vmatprep.subr.mxu0 0.0
    %615 = vmatpush1.msra.mxu0 0.0
    %616 = vmatprep.subr.mxu0 0.0
    %617 = vmatpush1.msra.mxu0 0.0
    %618 = vmatprep.subr.mxu0 0.0
    %619 = vmatpush1.msra.mxu0 0.0
    %620 = vmatprep.subr.mxu0 0.0
    %621 = vmatpush1.msra.mxu0 0.0
    %622 = vmatprep.subr.mxu0 0.0
    %623 = vmatpush1.msra.mxu0 0.0
    %624 = vmatprep.subr.mxu0 0.0
    %625 = vmatpush1.msra.mxu0 0.0
    %626 = vmatprep.subr.mxu0 0.0
    %627 = vmatpush1.msra.mxu0 0.0
    %628 = vmatprep.subr.mxu0 0.0
    %629 = vmatpush1.msra.mxu0 0.0
    %630 = vmatprep.subr.mxu0 0.0
    %631 = vmatpush1.msra.mxu0 0.0
    %632 = vmatprep.subr.mxu0 0.0
    %633 = vmatpush1.msra.mxu0 0.0
    %634 = vmatprep.subr.mxu0 0.0
    %635 = vmatpush1.msra.mxu0 0.0
    %636 = vmatprep.subr.mxu0 0.0
    %637 = vmatpush1.msra.mxu0 0.0
    %638 = vmatprep.subr.mxu0 0.0
    %639 = vmatpush1.msra.mxu0 0.0
    %640 = vmatprep.subr.mxu0 0.0
    %641 = vmatpush1.msra.mxu0 0.0
    %642 = vmatprep.subr.mxu0 0.0
    %643 = vmatpush1.msra.mxu0 0.0
    %644 = vmatprep.subr.mxu0 0.0
    %645 = vmatpush1.msra.mxu0 0.0
    %646 = vmatprep.subr.mxu0 0.0
    %647 = vmatpush1.msra.mxu0 0.0
    %648 = vmatprep.subr.mxu0 0.0
    %649 = vmatpush1.msra.mxu0 0.0
    %650 = vmatprep.subr.mxu0 0.0
    %651 = vmatpush1.msra.mxu0 0.0
    %652 = vmatprep.subr.mxu0 0.0
    %653 = vmatpush1.msra.mxu0 0.0
    %654 = vmatprep.subr.mxu0 0.0
    %655 = vmatpush1.msra.mxu0 0.0
    %656 = vmatprep.subr.mxu0 0.0
    %657 = vmatpush1.msra.mxu0 0.0
    %658 = vmatprep.subr.mxu0 0.0
    %659 = vmatpush1.msra.mxu0 0.0
    %660 = vmatprep.subr.mxu0 0.0
    %661 = vmatpush1.msra.mxu0 0.0
    %662 = vmatprep.subr.mxu0 0.0
    %663 = vmatpush1.msra.mxu0 0.0
    %664 = vmatprep.subr.mxu0 0.0
    %665 = vmatpush1.msra.mxu0 0.0
    %666 = vmatprep.subr.mxu0 0.0
    %667 = vmatpush1.msra.mxu0 0.0
    %668 = vmatprep.subr.mxu0 0.0
    %669 = vmatpush1.msra.mxu0 0.0
    %670 = vmatprep.mubr.f32.mxu0 0.0
    %671 = vmatmul.mubr.f32.gmra.mrb[0].mxu0 %v376
    %v672 = vpop.f32.mrb[0].mxu0
    %v673 = vadd.f32 0.0, %v672
    %v674 = vpop.f32.mrb[0].mxu0
    %675 = vmatprep.mubr.f32.mxu0 0.0
    %676 = vmatmul.mubr.f32.gmra.mrb[0].mxu0 %v379
    %v677 = vpop.f32.mrb[0].mxu0
    %v678 = vadd.f32 0.0, %v677
    %v679 = vpop.f32.mrb[0].mxu0
    %680 = vdwg.mxu0
    %681 = vmatprep.subr.mxu0 0.0
    %682 = vmatpush1.msra.mxu0 %v65
    %683 = vmatprep.subr.mxu0 0.0
    %684 = vmatpush1.msra.mxu0 %v66
    %685 = vmatprep.subr.mxu0 0.0
    %686 = vmatpush1.msra.mxu0 %v67
    %687 = vmatprep.subr.mxu0 0.0
    %688 = vmatpush1.msra.mxu0 %v68
    %689 = vmatprep.subr.mxu0 0.0
    %690 = vmatpush1.msra.mxu0 0.0
    %691 = vmatprep.subr.mxu0 0.0
    %692 = vmatpush1.msra.mxu0 0.0
    %693 = vmatprep.subr.mxu0 0.0
    %694 = vmatpush1.msra.mxu0 0.0
    %695 = vmatprep.subr.mxu0 0.0
    %696 = vmatpush1.msra.mxu0 0.0
    %697 = vmatprep.subr.mxu0 0.0
    %698 = vmatpush1.msra.mxu0 0.0
    %699 = vmatprep.subr.mxu0 0.0
    %700 = vmatpush1.msra.mxu0 0.0
    %701 = vmatprep.subr.mxu0 0.0
    %702 = vmatpush1.msra.mxu0 0.0
    %703 = vmatprep.subr.mxu0 0.0
    %704 = vmatpush1.msra.mxu0 0.0
    %705 = vmatprep.subr.mxu0 0.0
    %706 = vmatpush1.msra.mxu0 0.0
    %707 = vmatprep.subr.mxu0 0.0
    %708 = vmatpush1.msra.mxu0 0.0
    %709 = vmatprep.subr.mxu0 0.0
    %710 = vmatpush1.msra.mxu0 0.0
    %711 = vmatprep.subr.mxu0 0.0
    %712 = vmatpush1.msra.mxu0 0.0
    %713 = vmatprep.subr.mxu0 0.0
    %714 = vmatpush1.msra.mxu0 0.0
    %715 = vmatprep.subr.mxu0 0.0
    %716 = vmatpush1.msra.mxu0 0.0
    %717 = vmatprep.subr.mxu0 0.0
    %718 = vmatpush1.msra.mxu0 0.0
    %719 = vmatprep.subr.mxu0 0.0
    %720 = vmatpush1.msra.mxu0 0.0
    %721 = vmatprep.subr.mxu0 0.0
    %722 = vmatpush1.msra.mxu0 0.0
    %723 = vmatprep.subr.mxu0 0.0
    %724 = vmatpush1.msra.mxu0 0.0
    %725 = vmatprep.subr.mxu0 0.0
    %726 = vmatpush1.msra.mxu0 0.0
    %727 = vmatprep.subr.mxu0 0.0
    %728 = vmatpush1.msra.mxu0 0.0
    %729 = vmatprep.subr.mxu0 0.0
    %730 = vmatpush1.msra.mxu0 0.0
    %731 = vmatprep.subr.mxu0 0.0
    %732 = vmatpush1.msra.mxu0 0.0
    %733 = vmatprep.subr.mxu0 0.0
    %734 = vmatpush1.msra.mxu0 0.0
    %735 = vmatprep.subr.mxu0 0.0
    %736 = vmatpush1.msra.mxu0 0.0
    %737 = vmatprep.subr.mxu0 0.0
    %738 = vmatpush1.msra.mxu0 0.0
    %739 = vmatprep.subr.mxu0 0.0
    %740 = vmatpush1.msra.mxu0 0.0
    %741 = vmatprep.subr.mxu0 0.0
    %742 = vmatpush1.msra.mxu0 0.0
    %743 = vmatprep.subr.mxu0 0.0
    %744 = vmatpush1.msra.mxu0 0.0
    %745 = vmatprep.mubr.f32.mxu0 0.0
    %746 = vmatmul.mubr.f32.gmra.mrb[0].mxu0 %v376
    %v747 = vpop.f32.mrb[0].mxu0
    %v748 = vadd.f32 0.0, %v747
    %v749 = vpop.f32.mrb[0].mxu0
    %750 = vmatprep.mubr.f32.mxu0 0.0
    %751 = vmatmul.mubr.f32.gmra.mrb[0].mxu0 %v379
    %v752 = vpop.f32.mrb[0].mxu0
    %v753 = vadd.f32 0.0, %v752
    %v754 = vpop.f32.mrb[0].mxu0
    %755 = vdwg.mxu0
    %756 = vmatprep.subr.mxu0 0.0
    %757 = vmatpush1.msra.mxu0 %v69
    %758 = vmatprep.subr.mxu0 0.0
    %759 = vmatpush1.msra.mxu0 %v70
    %760 = vmatprep.subr.mxu0 0.0
    %761 = vmatpush1.msra.mxu0 %v71
    %762 = vmatprep.subr.mxu0 0.0
    %763 = vmatpush1.msra.mxu0 %v72
    %764 = vmatprep.subr.mxu0 0.0
    %765 = vmatpush1.msra.mxu0 0.0
    %766 = vmatprep.subr.mxu0 0.0
    %767 = vmatpush1.msra.mxu0 0.0
    %768 = vmatprep.subr.mxu0 0.0
    %769 = vmatpush1.msra.mxu0 0.0
    %770 = vmatprep.subr.mxu0 0.0
    %771 = vmatpush1.msra.mxu0 0.0
    %772 = vmatprep.subr.mxu0 0.0
    %773 = vmatpush1.msra.mxu0 0.0
    %774 = vmatprep.subr.mxu0 0.0
    %775 = vmatpush1.msra.mxu0 0.0
    %776 = vmatprep.subr.mxu0 0.0
    %777 = vmatpush1.msra.mxu0 0.0
    %778 = vmatprep.subr.mxu0 0.0
    %779 = vmatpush1.msra.mxu0 0.0
    %780 = vmatprep.subr.mxu0 0.0
    %781 = vmatpush1.msra.mxu0 0.0
    %782 = vmatprep.subr.mxu0 0.0
    %783 = vmatpush1.msra.mxu0 0.0
    %784 = vmatprep.subr.mxu0 0.0
    %785 = vmatpush1.msra.mxu0 0.0
    %786 = vmatprep.subr.mxu0 0.0
    %787 = vmatpush1.msra.mxu0 0.0
    %788 = vmatprep.subr.mxu0 0.0
    %789 = vmatpush1.msra.mxu0 0.0
    %790 = vmatprep.subr.mxu0 0.0
    %791 = vmatpush1.msra.mxu0 0.0
    %792 = vmatprep.subr.mxu0 0.0
    %793 = vmatpush1.msra.mxu0 0.0
    %794 = vmatprep.subr.mxu0 0.0
    %795 = vmatpush1.msra.mxu0 0.0
    %796 = vmatprep.subr.mxu0 0.0
    %797 = vmatpush1.msra.mxu0 0.0
    %798 = vmatprep.subr.mxu0 0.0
    %799 = vmatpush1.msra.mxu0 0.0
    %800 = vmatprep.subr.mxu0 0.0
    %801 = vmatpush1.msra.mxu0 0.0
    %802 = vmatprep.subr.mxu0 0.0
    %803 = vmatpush1.msra.mxu0 0.0
    %804 = vmatprep.subr.mxu0 0.0
    %805 = vmatpush1.msra.mxu0 0.0
    %806 = vmatprep.subr.mxu0 0.0
    %807 = vmatpush1.msra.mxu0 0.0
    %808 = vmatprep.subr.mxu0 0.0
    %809 = vmatpush1.msra.mxu0 0.0
    %810 = vmatprep.subr.mxu0 0.0
    %811 = vmatpush1.msra.mxu0 0.0
    %812 = vmatprep.subr.mxu0 0.0
    %813 = vmatpush1.msra.mxu0 0.0
    %814 = vmatprep.subr.mxu0 0.0
    %815 = vmatpush1.msra.mxu0 0.0
    %816 = vmatprep.subr.mxu0 0.0
    %817 = vmatpush1.msra.mxu0 0.0
    %818 = vmatprep.subr.mxu0 0.0
    %819 = vmatpush1.msra.mxu0 0.0
    %820 = vmatprep.mubr.f32.mxu0 0.0
    %821 = vmatmul.mubr.f32.gmra.mrb[0].mxu0 %v376
    %v822 = vpop.f32.mrb[0].mxu0
    %v823 = vadd.f32 0.0, %v822
    %v824 = vpop.f32.mrb[0].mxu0
    %825 = vmatprep.mubr.f32.mxu0 0.0
    %826 = vmatmul.mubr.f32.gmra.mrb[0].mxu0 %v379
    %v827 = vpop.f32.mrb[0].mxu0
    %v828 = vadd.f32 0.0, %v827
    %v829 = vpop.f32.mrb[0].mxu0
    %830 = vdwg.mxu0
    %831 = vmatprep.subr.mxu0 0.0
    %832 = vmatpush1.msra.mxu0 %v73
    %833 = vmatprep.subr.mxu0 0.0
    %834 = vmatpush1.msra.mxu0 %v74
    %835 = vmatprep.subr.mxu0 0.0
    %836 = vmatpush1.msra.mxu0 %v75
    %837 = vmatprep.subr.mxu0 0.0
    %838 = vmatpush1.msra.mxu0 %v76
    %839 = vmatprep.subr.mxu0 0.0
    %840 = vmatpush1.msra.mxu0 0.0
    %841 = vmatprep.subr.mxu0 0.0
    %842 = vmatpush1.msra.mxu0 0.0
    %843 = vmatprep.subr.mxu0 0.0
    %844 = vmatpush1.msra.mxu0 0.0
    %845 = vmatprep.subr.mxu0 0.0
    %846 = vmatpush1.msra.mxu0 0.0
    %847 = vmatprep.subr.mxu0 0.0
    %848 = vmatpush1.msra.mxu0 0.0
    %849 = vmatprep.subr.mxu0 0.0
    %850 = vmatpush1.msra.mxu0 0.0
    %851 = vmatprep.subr.mxu0 0.0
    %852 = vmatpush1.msra.mxu0 0.0
    %853 = vmatprep.subr.mxu0 0.0
    %854 = vmatpush1.msra.mxu0 0.0
    %855 = vmatprep.subr.mxu0 0.0
    %856 = vmatpush1.msra.mxu0 0.0
    %857 = vmatprep.subr.mxu0 0.0
    %858 = vmatpush1.msra.mxu0 0.0
    %859 = vmatprep.subr.mxu0 0.0
    %860 = vmatpush1.msra.mxu0 0.0
    %861 = vmatprep.subr.mxu0 0.0
    %862 = vmatpush1.msra.mxu0 0.0
    %863 = vmatprep.subr.mxu0 0.0
    %864 = vmatpush1.msra.mxu0 0.0
    %865 = vmatprep.subr.mxu0 0.0
    %866 = vmatpush1.msra.mxu0 0.0
    %867 = vmatprep.subr.mxu0 0.0
    %868 = vmatpush1.msra.mxu0 0.0
    %869 = vmatprep.subr.mxu0 0.0
    %870 = vmatpush1.msra.mxu0 0.0
    %871 = vmatprep.subr.mxu0 0.0
    %872 = vmatpush1.msra.mxu0 0.0
    %873 = vmatprep.subr.mxu0 0.0
    %874 = vmatpush1.msra.mxu0 0.0
    %875 = vmatprep.subr.mxu0 0.0
    %876 = vmatpush1.msra.mxu0 0.0
    %877 = vmatprep.subr.mxu0 0.0
    %878 = vmatpush1.msra.mxu0 0.0
    %879 = vmatprep.subr.mxu0 0.0
    %880 = vmatpush1.msra.mxu0 0.0
    %881 = vmatprep.subr.mxu0 0.0
    %882 = vmatpush1.msra.mxu0 0.0
    %883 = vmatprep.subr.mxu0 0.0
    %884 = vmatpush1.msra.mxu0 0.0
    %885 = vmatprep.subr.mxu0 0.0
    %886 = vmatpush1.msra.mxu0 0.0
    %887 = vmatprep.subr.mxu0 0.0
    %888 = vmatpush1.msra.mxu0 0.0
    %889 = vmatprep.subr.mxu0 0.0
    %890 = vmatpush1.msra.mxu0 0.0
    %891 = vmatprep.subr.mxu0 0.0
    %892 = vmatpush1.msra.mxu0 0.0
    %893 = vmatprep.subr.mxu0 0.0
    %894 = vmatpush1.msra.mxu0 0.0
    %895 = vmatprep.mubr.f32.mxu0 0.0
    %896 = vmatmul.mubr.f32.gmra.mrb[0].mxu0 %v376
    %v897 = vpop.f32.mrb[0].mxu0
    %v898 = vadd.f32 0.0, %v897
    %v899 = vpop.f32.mrb[0].mxu0
    %900 = vmatprep.mubr.f32.mxu0 0.0
    %901 = vmatmul.mubr.f32.gmra.mrb[0].mxu0 %v379
    %v902 = vpop.f32.mrb[0].mxu0
    %v903 = vadd.f32 0.0, %v902
    %v904 = vpop.f32.mrb[0].mxu0
    %905 = vdwg.mxu0
    %906 = vmatprep.subr.mxu0 0.0
    %907 = vmatpush1.msra.mxu0 %v77
    %908 = vmatprep.subr.mxu0 0.0
    %909 = vmatpush1.msra.mxu0 %v78
    %910 = vmatprep.subr.mxu0 0.0
    %911 = vmatpush1.msra.mxu0 %v79
    %912 = vmatprep.subr.mxu0 0.0
    %913 = vmatpush1.msra.mxu0 %v80
    %914 = vmatprep.subr.mxu0 0.0
    %915 = vmatpush1.msra.mxu0 0.0
    %916 = vmatprep.subr.mxu0 0.0
    %917 = vmatpush1.msra.mxu0 0.0
    %918 = vmatprep.subr.mxu0 0.0
    %919 = vmatpush1.msra.mxu0 0.0
    %920 = vmatprep.subr.mxu0 0.0
    %921 = vmatpush1.msra.mxu0 0.0
    %922 = vmatprep.subr.mxu0 0.0
    %923 = vmatpush1.msra.mxu0 0.0
    %924 = vmatprep.subr.mxu0 0.0
    %925 = vmatpush1.msra.mxu0 0.0
    %926 = vmatprep.subr.mxu0 0.0
    %927 = vmatpush1.msra.mxu0 0.0
    %928 = vmatprep.subr.mxu0 0.0
    %929 = vmatpush1.msra.mxu0 0.0
    %930 = vmatprep.subr.mxu0 0.0
    %931 = vmatpush1.msra.mxu0 0.0
    %932 = vmatprep.subr.mxu0 0.0
    %933 = vmatpush1.msra.mxu0 0.0
    %934 = vmatprep.subr.mxu0 0.0
    %935 = vmatpush1.msra.mxu0 0.0
    %936 = vmatprep.subr.mxu0 0.0
    %937 = vmatpush1.msra.mxu0 0.0
    %938 = vmatprep.subr.mxu0 0.0
    %939 = vmatpush1.msra.mxu0 0.0
    %940 = vmatprep.subr.mxu0 0.0
    %941 = vmatpush1.msra.mxu0 0.0
    %942 = vmatprep.subr.mxu0 0.0
    %943 = vmatpush1.msra.mxu0 0.0
    %944 = vmatprep.subr.mxu0 0.0
    %945 = vmatpush1.msra.mxu0 0.0
    %946 = vmatprep.subr.mxu0 0.0
    %947 = vmatpush1.msra.mxu0 0.0
    %948 = vmatprep.subr.mxu0 0.0
    %949 = vmatpush1.msra.mxu0 0.0
    %950 = vmatprep.subr.mxu0 0.0
    %951 = vmatpush1.msra.mxu0 0.0
    %952 = vmatprep.subr.mxu0 0.0
    %953 = vmatpush1.msra.mxu0 0.0
    %954 = vmatprep.subr.mxu0 0.0
    %955 = vmatpush1.msra.mxu0 0.0
    %956 = vmatprep.subr.mxu0 0.0
    %957 = vmatpush1.msra.mxu0 0.0
    %958 = vmatprep.subr.mxu0 0.0
    %959 = vmatpush1.msra.mxu0 0.0
    %960 = vmatprep.subr.mxu0 0.0
    %961 = vmatpush1.msra.mxu0 0.0
    %962 = vmatprep.subr.mxu0 0.0
    %963 = vmatpush1.msra.mxu0 0.0
    %964 = vmatprep.subr.mxu0 0.0
    %965 = vmatpush1.msra.mxu0 0.0
    %966 = vmatprep.subr.mxu0 0.0
    %967 = vmatpush1.msra.mxu0 0.0
    %968 = vmatprep.subr.mxu0 0.0
    %969 = vmatpush1.msra.mxu0 0.0
    %970 = vmatprep.mubr.f32.mxu0 0.0
    %971 = vmatmul.mubr.f32.gmra.mrb[0].mxu0 %v376
    %v972 = vpop.f32.mrb[0].mxu0
    %v973 = vadd.f32 0.0, %v972
    %v974 = vpop.f32.mrb[0].mxu0
    %975 = vmatprep.mubr.f32.mxu0 0.0
    %976 = vmatmul.mubr.f32.gmra.mrb[0].mxu0 %v379
    %v977 = vpop.f32.mrb[0].mxu0
    %v978 = vadd.f32 0.0, %v977
    %v979 = vpop.f32.mrb[0].mxu0
    %980 = vdwg.mxu0
    %vm981 = vcmask 64512
    %v983 = vsel %vm981, %v162, 0
    %v986 = vsel %vm981, %v448, 0
    %v989 = vsel %vm981, %v453, 0
    %991 = vmatprep.subr.mxu0 0.0
    %992 = vmatpush1.xpose.msra.mxu0 %v986
    %993 = vmatprep.subr.mxu0 0.0
    %994 = vmatpush1.xpose.msra.mxu0 %v989
    %995 = vmatprep.subr.mxu0 0.0
    %996 = vmatpush1.xpose.msra.mxu0 0.0
    %997 = vmatprep.subr.mxu0 0.0
    %998 = vmatpush1.xpose.msra.mxu0 0.0
    %999 = vmatprep.subr.mxu0 0.0
    %1000 = vmatpush1.xpose.msra.mxu0 0.0
    %1001 = vmatprep.subr.mxu0 0.0
    %1002 = vmatpush1.xpose.msra.mxu0 0.0
    %1003 = vmatprep.subr.mxu0 0.0
    %1004 = vmatpush1.xpose.msra.mxu0 0.0
    %1005 = vmatprep.subr.mxu0 0.0
    %1006 = vmatpush1.xpose.msra.mxu0 0.0
    %1007 = vmatprep.subr.mxu0 0.0
    %1008 = vmatpush1.xpose.msra.mxu0 0.0
    %1009 = vmatprep.subr.mxu0 0.0
    %1010 = vmatpush1.xpose.msra.mxu0 0.0
    %1011 = vmatprep.subr.mxu0 0.0
    %1012 = vmatpush1.xpose.msra.mxu0 0.0
    %1013 = vmatprep.subr.mxu0 0.0
    %1014 = vmatpush1.xpose.msra.mxu0 0.0
    %1015 = vmatprep.subr.mxu0 0.0
    %1016 = vmatpush1.xpose.msra.mxu0 0.0
    %1017 = vmatprep.subr.mxu0 0.0
    %1018 = vmatpush1.xpose.msra.mxu0 0.0
    %1019 = vmatprep.subr.mxu0 0.0
    %1020 = vmatpush1.xpose.msra.mxu0 0.0
    %1021 = vmatprep.subr.mxu0 0.0
    %1022 = vmatpush1.xpose.msra.mxu0 0.0
    %1023 = vmatprep.subr.mxu0 0.0
    %1024 = vmatpush1.xpose.msra.mxu0 0.0
    %1025 = vmatprep.subr.mxu0 0.0
    %1026 = vmatpush1.xpose.msra.mxu0 0.0
    %1027 = vmatprep.subr.mxu0 0.0
    %1028 = vmatpush1.xpose.msra.mxu0 0.0
    %1029 = vmatprep.subr.mxu0 0.0
    %1030 = vmatpush1.xpose.msra.mxu0 0.0
    %1031 = vmatprep.subr.mxu0 0.0
    %1032 = vmatpush1.xpose.msra.mxu0 0.0
    %1033 = vmatprep.subr.mxu0 0.0
    %1034 = vmatpush1.xpose.msra.mxu0 0.0
    %1035 = vmatprep.subr.mxu0 0.0
    %1036 = vmatpush1.xpose.msra.mxu0 0.0
    %1037 = vmatprep.subr.mxu0 0.0
    %1038 = vmatpush1.xpose.msra.mxu0 0.0
    %1039 = vmatprep.subr.mxu0 0.0
    %1040 = vmatpush1.xpose.msra.mxu0 0.0
    %1041 = vmatprep.subr.mxu0 0.0
    %1042 = vmatpush1.xpose.msra.mxu0 0.0
    %1043 = vmatprep.subr.mxu0 0.0
    %1044 = vmatpush1.xpose.msra.mxu0 0.0
    %1045 = vmatprep.subr.mxu0 0.0
    %1046 = vmatpush1.xpose.msra.mxu0 0.0
    %1047 = vmatprep.subr.mxu0 0.0
    %1048 = vmatpush1.xpose.msra.mxu0 0.0
    %1049 = vmatprep.subr.mxu0 0.0
    %1050 = vmatpush1.xpose.msra.mxu0 0.0
    %1051 = vmatprep.subr.mxu0 0.0
    %1052 = vmatpush1.xpose.msra.mxu0 0.0
    %1053 = vmatprep.subr.mxu0 0.0
    %1054 = vmatpush1.xpose.msra.mxu0 0.0
    %1055 = vmatprep.mubr.f32.mxu0 0.0
    %1056 = vmatmul.mubr.f32.gmra.mrb[0].mxu0 %v983
    %v1057 = vpop.f32.mrb[0].mxu0
    %v1058 = vadd.f32 0.0, %v1057
    %v1059 = vpop.f32.mrb[0].mxu0
    %1060 = vdwg.mxu0
    %v1062 = vsel %vm981, %v232, 0
    %v1065 = vsel %vm981, %v523, 0
    %v1068 = vsel %vm981, %v528, 0
    %1070 = vmatprep.subr.mxu0 0.0
    %1071 = vmatpush1.xpose.msra.mxu0 %v1065
    %1072 = vmatprep.subr.mxu0 0.0
    %1073 = vmatpush1.xpose.msra.mxu0 %v1068
    %1074 = vmatprep.subr.mxu0 0.0
    %1075 = vmatpush1.xpose.msra.mxu0 0.0
    %1076 = vmatprep.subr.mxu0 0.0
    %1077 = vmatpush1.xpose.msra.mxu0 0.0
    %1078 = vmatprep.subr.mxu0 0.0
    %1079 = vmatpush1.xpose.msra.mxu0 0.0
    %1080 = vmatprep.subr.mxu0 0.0
    %1081 = vmatpush1.xpose.msra.mxu0 0.0
    %1082 = vmatprep.subr.mxu0 0.0
    %1083 = vmatpush1.xpose.msra.mxu0 0.0
    %1084 = vmatprep.subr.mxu0 0.0
    %1085 = vmatpush1.xpose.msra.mxu0 0.0
    %1086 = vmatprep.subr.mxu0 0.0
    %1087 = vmatpush1.xpose.msra.mxu0 0.0
    %1088 = vmatprep.subr.mxu0 0.0
    %1089 = vmatpush1.xpose.msra.mxu0 0.0
    %1090 = vmatprep.subr.mxu0 0.0
    %1091 = vmatpush1.xpose.msra.mxu0 0.0
    %1092 = vmatprep.subr.mxu0 0.0
    %1093 = vmatpush1.xpose.msra.mxu0 0.0
    %1094 = vmatprep.subr.mxu0 0.0
    %1095 = vmatpush1.xpose.msra.mxu0 0.0
    %1096 = vmatprep.subr.mxu0 0.0
    %1097 = vmatpush1.xpose.msra.mxu0 0.0
    %1098 = vmatprep.subr.mxu0 0.0
    %1099 = vmatpush1.xpose.msra.mxu0 0.0
    %1100 = vmatprep.subr.mxu0 0.0
    %1101 = vmatpush1.xpose.msra.mxu0 0.0
    %1102 = vmatprep.subr.mxu0 0.0
    %1103 = vmatpush1.xpose.msra.mxu0 0.0
    %1104 = vmatprep.subr.mxu0 0.0
    %1105 = vmatpush1.xpose.msra.mxu0 0.0
    %1106 = vmatprep.subr.mxu0 0.0
    %1107 = vmatpush1.xpose.msra.mxu0 0.0
    %1108 = vmatprep.subr.mxu0 0.0
    %1109 = vmatpush1.xpose.msra.mxu0 0.0
    %1110 = vmatprep.subr.mxu0 0.0
    %1111 = vmatpush1.xpose.msra.mxu0 0.0
    %1112 = vmatprep.subr.mxu0 0.0
    %1113 = vmatpush1.xpose.msra.mxu0 0.0
    %1114 = vmatprep.subr.mxu0 0.0
    %1115 = vmatpush1.xpose.msra.mxu0 0.0
    %1116 = vmatprep.subr.mxu0 0.0
    %1117 = vmatpush1.xpose.msra.mxu0 0.0
    %1118 = vmatprep.subr.mxu0 0.0
    %1119 = vmatpush1.xpose.msra.mxu0 0.0
    %1120 = vmatprep.subr.mxu0 0.0
    %1121 = vmatpush1.xpose.msra.mxu0 0.0
    %1122 = vmatprep.subr.mxu0 0.0
    %1123 = vmatpush1.xpose.msra.mxu0 0.0
    %1124 = vmatprep.subr.mxu0 0.0
    %1125 = vmatpush1.xpose.msra.mxu0 0.0
    %1126 = vmatprep.subr.mxu0 0.0
    %1127 = vmatpush1.xpose.msra.mxu0 0.0
    %1128 = vmatprep.subr.mxu0 0.0
    %1129 = vmatpush1.xpose.msra.mxu0 0.0
    %1130 = vmatprep.subr.mxu0 0.0
    %1131 = vmatpush1.xpose.msra.mxu0 0.0
    %1132 = vmatprep.subr.mxu0 0.0
    %1133 = vmatpush1.xpose.msra.mxu0 0.0
    %1134 = vmatprep.mubr.f32.mxu0 0.0
    %1135 = vmatmul.mubr.f32.gmra.mrb[0].mxu0 %v1062
    %v1136 = vpop.f32.mrb[0].mxu0
    %v1137 = vadd.f32 0.0, %v1136
    %v1138 = vpop.f32.mrb[0].mxu0
    %1139 = vdwg.mxu0
    %v1141 = vsel %vm981, %v302, 0
    %v1144 = vsel %vm981, %v598, 0
    %v1147 = vsel %vm981, %v603, 0
    %1149 = vmatprep.subr.mxu0 0.0
    %1150 = vmatpush1.xpose.msra.mxu0 %v1144
    %1151 = vmatprep.subr.mxu0 0.0
    %1152 = vmatpush1.xpose.msra.mxu0 %v1147
    %1153 = vmatprep.subr.mxu0 0.0
    %1154 = vmatpush1.xpose.msra.mxu0 0.0
    %1155 = vmatprep.subr.mxu0 0.0
    %1156 = vmatpush1.xpose.msra.mxu0 0.0
    %1157 = vmatprep.subr.mxu0 0.0
    %1158 = vmatpush1.xpose.msra.mxu0 0.0
    %1159 = vmatprep.subr.mxu0 0.0
    %1160 = vmatpush1.xpose.msra.mxu0 0.0
    %1161 = vmatprep.subr.mxu0 0.0
    %1162 = vmatpush1.xpose.msra.mxu0 0.0
    %1163 = vmatprep.subr.mxu0 0.0
    %1164 = vmatpush1.xpose.msra.mxu0 0.0
    %1165 = vmatprep.subr.mxu0 0.0
    %1166 = vmatpush1.xpose.msra.mxu0 0.0
    %1167 = vmatprep.subr.mxu0 0.0
    %1168 = vmatpush1.xpose.msra.mxu0 0.0
    %1169 = vmatprep.subr.mxu0 0.0
    %1170 = vmatpush1.xpose.msra.mxu0 0.0
    %1171 = vmatprep.subr.mxu0 0.0
    %1172 = vmatpush1.xpose.msra.mxu0 0.0
    %1173 = vmatprep.subr.mxu0 0.0
    %1174 = vmatpush1.xpose.msra.mxu0 0.0
    %1175 = vmatprep.subr.mxu0 0.0
    %1176 = vmatpush1.xpose.msra.mxu0 0.0
    %1177 = vmatprep.subr.mxu0 0.0
    %1178 = vmatpush1.xpose.msra.mxu0 0.0
    %1179 = vmatprep.subr.mxu0 0.0
    %1180 = vmatpush1.xpose.msra.mxu0 0.0
    %1181 = vmatprep.subr.mxu0 0.0
    %1182 = vmatpush1.xpose.msra.mxu0 0.0
    %1183 = vmatprep.subr.mxu0 0.0
    %1184 = vmatpush1.xpose.msra.mxu0 0.0
    %1185 = vmatprep.subr.mxu0 0.0
    %1186 = vmatpush1.xpose.msra.mxu0 0.0
    %1187 = vmatprep.subr.mxu0 0.0
    %1188 = vmatpush1.xpose.msra.mxu0 0.0
    %1189 = vmatprep.subr.mxu0 0.0
    %1190 = vmatpush1.xpose.msra.mxu0 0.0
    %1191 = vmatprep.subr.mxu0 0.0
    %1192 = vmatpush1.xpose.msra.mxu0 0.0
    %1193 = vmatprep.subr.mxu0 0.0
    %1194 = vmatpush1.xpose.msra.mxu0 0.0
    %1195 = vmatprep.subr.mxu0 0.0
    %1196 = vmatpush1.xpose.msra.mxu0 0.0
    %1197 = vmatprep.subr.mxu0 0.0
    %1198 = vmatpush1.xpose.msra.mxu0 0.0
    %1199 = vmatprep.subr.mxu0 0.0
    %1200 = vmatpush1.xpose.msra.mxu0 0.0
    %1201 = vmatprep.subr.mxu0 0.0
    %1202 = vmatpush1.xpose.msra.mxu0 0.0
    %1203 = vmatprep.subr.mxu0 0.0
    %1204 = vmatpush1.xpose.msra.mxu0 0.0
    %1205 = vmatprep.subr.mxu0 0.0
    %1206 = vmatpush1.xpose.msra.mxu0 0.0
    %1207 = vmatprep.subr.mxu0 0.0
    %1208 = vmatpush1.xpose.msra.mxu0 0.0
    %1209 = vmatprep.subr.mxu0 0.0
    %1210 = vmatpush1.xpose.msra.mxu0 0.0
    %1211 = vmatprep.subr.mxu0 0.0
    %1212 = vmatpush1.xpose.msra.mxu0 0.0
    %1213 = vmatprep.mubr.f32.mxu0 0.0
    %1214 = vmatmul.mubr.f32.gmra.mrb[0].mxu0 %v1141
    %v1215 = vpop.f32.mrb[0].mxu0
    %v1216 = vadd.f32 0.0, %v1215
    %v1217 = vpop.f32.mrb[0].mxu0
    %1218 = vdwg.mxu0
    %v1220 = vsel %vm981, %v372, 0
    %v1223 = vsel %vm981, %v673, 0
    %v1226 = vsel %vm981, %v678, 0
    %1228 = vmatprep.subr.mxu0 0.0
    %1229 = vmatpush1.xpose.msra.mxu0 %v1223
    %1230 = vmatprep.subr.mxu0 0.0
    %1231 = vmatpush1.xpose.msra.mxu0 %v1226
    %1232 = vmatprep.subr.mxu0 0.0
    %1233 = vmatpush1.xpose.msra.mxu0 0.0
    %1234 = vmatprep.subr.mxu0 0.0
    %1235 = vmatpush1.xpose.msra.mxu0 0.0
    %1236 = vmatprep.subr.mxu0 0.0
    %1237 = vmatpush1.xpose.msra.mxu0 0.0
    %1238 = vmatprep.subr.mxu0 0.0
    %1239 = vmatpush1.xpose.msra.mxu0 0.0
    %1240 = vmatprep.subr.mxu0 0.0
    %1241 = vmatpush1.xpose.msra.mxu0 0.0
    %1242 = vmatprep.subr.mxu0 0.0
    %1243 = vmatpush1.xpose.msra.mxu0 0.0
    %1244 = vmatprep.subr.mxu0 0.0
    %1245 = vmatpush1.xpose.msra.mxu0 0.0
    %1246 = vmatprep.subr.mxu0 0.0
    %1247 = vmatpush1.xpose.msra.mxu0 0.0
    %1248 = vmatprep.subr.mxu0 0.0
    %1249 = vmatpush1.xpose.msra.mxu0 0.0
    %1250 = vmatprep.subr.mxu0 0.0
    %1251 = vmatpush1.xpose.msra.mxu0 0.0
    %1252 = vmatprep.subr.mxu0 0.0
    %1253 = vmatpush1.xpose.msra.mxu0 0.0
    %1254 = vmatprep.subr.mxu0 0.0
    %1255 = vmatpush1.xpose.msra.mxu0 0.0
    %1256 = vmatprep.subr.mxu0 0.0
    %1257 = vmatpush1.xpose.msra.mxu0 0.0
    %1258 = vmatprep.subr.mxu0 0.0
    %1259 = vmatpush1.xpose.msra.mxu0 0.0
    %1260 = vmatprep.subr.mxu0 0.0
    %1261 = vmatpush1.xpose.msra.mxu0 0.0
    %1262 = vmatprep.subr.mxu0 0.0
    %1263 = vmatpush1.xpose.msra.mxu0 0.0
    %1264 = vmatprep.subr.mxu0 0.0
    %1265 = vmatpush1.xpose.msra.mxu0 0.0
    %1266 = vmatprep.subr.mxu0 0.0
    %1267 = vmatpush1.xpose.msra.mxu0 0.0
    %1268 = vmatprep.subr.mxu0 0.0
    %1269 = vmatpush1.xpose.msra.mxu0 0.0
    %1270 = vmatprep.subr.mxu0 0.0
    %1271 = vmatpush1.xpose.msra.mxu0 0.0
    %1272 = vmatprep.subr.mxu0 0.0
    %1273 = vmatpush1.xpose.msra.mxu0 0.0
    %1274 = vmatprep.subr.mxu0 0.0
    %1275 = vmatpush1.xpose.msra.mxu0 0.0
    %1276 = vmatprep.subr.mxu0 0.0
    %1277 = vmatpush1.xpose.msra.mxu0 0.0
    %1278 = vmatprep.subr.mxu0 0.0
    %1279 = vmatpush1.xpose.msra.mxu0 0.0
    %1280 = vmatprep.subr.mxu0 0.0
    %1281 = vmatpush1.xpose.msra.mxu0 0.0
    %1282 = vmatprep.subr.mxu0 0.0
    %1283 = vmatpush1.xpose.msra.mxu0 0.0
    %1284 = vmatprep.subr.mxu0 0.0
    %1285 = vmatpush1.xpose.msra.mxu0 0.0
    %1286 = vmatprep.subr.mxu0 0.0
    %1287 = vmatpush1.xpose.msra.mxu0 0.0
    %1288 = vmatprep.subr.mxu0 0.0
    %1289 = vmatpush1.xpose.msra.mxu0 0.0
    %1290 = vmatprep.subr.mxu0 0.0
    %1291 = vmatpush1.xpose.msra.mxu0 0.0
    %1292 = vmatprep.mubr.f32.mxu0 0.0
    %1293 = vmatmul.mubr.f32.gmra.mrb[0].mxu0 %v1220
    %v1294 = vpop.f32.mrb[0].mxu0
    %v1295 = vadd.f32 0.0, %v1294
    %v1296 = vpop.f32.mrb[0].mxu0
    %1297 = vdwg.mxu0
    %v1298 = vmul.f32 %v1058, 0.35355338
    %v1299 = vmul.f32 %v1137, 0.35355338
    %v1300 = vmul.f32 %v1216, 0.35355338
    %v1301 = vmul.f32 %v1295, 0.35355338
    %vm1302 = vcmask 130048
    %v1303 = vsel %vm1302, %v1298, -inf
    %1304 = vmax.xlane.f32.xlu0 %v1303
    %v1305 = vpop.xlane.xlu0 %1304
    %v1306 = vsel %vm1302, %v1299, -inf
    %1307 = vmax.xlane.f32.xlu0 %v1306
    %v1308 = vpop.xlane.xlu0 %1307
    %v1309 = vsel %vm1302, %v1300, -inf
    %1310 = vmax.xlane.f32.xlu0 %v1309
    %v1311 = vpop.xlane.xlu0 %1310
    %v1312 = vsel %vm1302, %v1301, -inf
    %1313 = vmax.xlane.f32.xlu0 %v1312
    %v1314 = vpop.xlane.xlu0 %1313
    %v1315 = vsub.f32 %v1298, %v1305
    %v1316 = vsub.f32 %v1299, %v1308
    %v1317 = vsub.f32 %v1300, %v1311
    %v1318 = vsub.f32 %v1301, %v1314
    %v1319 = vmul.f32 %v1315, 1.442695
    %v1320 = vpow.pop %v1319
    %v1321 = vmul.f32 %v1316, 1.442695
    %v1322 = vpow.pop %v1321
    %v1323 = vmul.f32 %v1317, 1.442695
    %v1324 = vpow.pop %v1323
    %v1325 = vmul.f32 %v1318, 1.442695
    %v1326 = vpow.pop %v1325
    %v1327 = vsel %vm1302, %v1320, 0.0
    %1328 = vadd.xlane.f32.xlu0 %v1327
    %v1329 = vpop.xlane.xlu0 %1328
    %v1330 = vsel %vm1302, %v1322, 0.0
    %1331 = vadd.xlane.f32.xlu0 %v1330
    %v1332 = vpop.xlane.xlu0 %1331
    %v1333 = vsel %vm1302, %v1324, 0.0
    %1334 = vadd.xlane.f32.xlu0 %v1333
    %v1335 = vpop.xlane.xlu0 %1334
    %v1336 = vsel %vm1302, %v1326, 0.0
    %1337 = vadd.xlane.f32.xlu0 %v1336
    %v1338 = vpop.xlane.xlu0 %1337
    %v1339 = vrcp.pop %v1329
    %v1340 = vrcp.pop %v1332
    %v1341 = vrcp.pop %v1335
    %v1342 = vrcp.pop %v1338
    %v1343 = vmul.f32 %v1320, %v1339
    %v1344 = vmul.f32 %v1322, %v1340
    %v1345 = vmul.f32 %v1324, %v1341
    %v1346 = vmul.f32 %v1326, %v1342
    %v1348 = vsel %vm1302, %v1343, 0
    %1350 = vmatprep.subr.mxu0 0.0
    %1351 = vmatpush1.msra.mxu0 %v748
    %1352 = vmatprep.subr.mxu0 0.0
    %1353 = vmatpush1.msra.mxu0 %v753
    %1354 = vmatprep.subr.mxu0 0.0
    %1355 = vmatpush1.msra.mxu0 0.0
    %1356 = vmatprep.subr.mxu0 0.0
    %1357 = vmatpush1.msra.mxu0 0.0
    %1358 = vmatprep.subr.mxu0 0.0
    %1359 = vmatpush1.msra.mxu0 0.0
    %1360 = vmatprep.subr.mxu0 0.0
    %1361 = vmatpush1.msra.mxu0 0.0
    %1362 = vmatprep.subr.mxu0 0.0
    %1363 = vmatpush1.msra.mxu0 0.0
    %1364 = vmatprep.subr.mxu0 0.0
    %1365 = vmatpush1.msra.mxu0 0.0
    %1366 = vmatprep.subr.mxu0 0.0
    %1367 = vmatpush1.msra.mxu0 0.0
    %1368 = vmatprep.subr.mxu0 0.0
    %1369 = vmatpush1.msra.mxu0 0.0
    %1370 = vmatprep.subr.mxu0 0.0
    %1371 = vmatpush1.msra.mxu0 0.0
    %1372 = vmatprep.subr.mxu0 0.0
    %1373 = vmatpush1.msra.mxu0 0.0
    %1374 = vmatprep.subr.mxu0 0.0
    %1375 = vmatpush1.msra.mxu0 0.0
    %1376 = vmatprep.subr.mxu0 0.0
    %1377 = vmatpush1.msra.mxu0 0.0
    %1378 = vmatprep.subr.mxu0 0.0
    %1379 = vmatpush1.msra.mxu0 0.0
    %1380 = vmatprep.subr.mxu0 0.0
    %1381 = vmatpush1.msra.mxu0 0.0
    %1382 = vmatprep.subr.mxu0 0.0
    %1383 = vmatpush1.msra.mxu0 0.0
    %1384 = vmatprep.subr.mxu0 0.0
    %1385 = vmatpush1.msra.mxu0 0.0
    %1386 = vmatprep.subr.mxu0 0.0
    %1387 = vmatpush1.msra.mxu0 0.0
    %1388 = vmatprep.subr.mxu0 0.0
    %1389 = vmatpush1.msra.mxu0 0.0
    %1390 = vmatprep.subr.mxu0 0.0
    %1391 = vmatpush1.msra.mxu0 0.0
    %1392 = vmatprep.subr.mxu0 0.0
    %1393 = vmatpush1.msra.mxu0 0.0
    %1394 = vmatprep.subr.mxu0 0.0
    %1395 = vmatpush1.msra.mxu0 0.0
    %1396 = vmatprep.subr.mxu0 0.0
    %1397 = vmatpush1.msra.mxu0 0.0
    %1398 = vmatprep.subr.mxu0 0.0
    %1399 = vmatpush1.msra.mxu0 0.0
    %1400 = vmatprep.subr.mxu0 0.0
    %1401 = vmatpush1.msra.mxu0 0.0
    %1402 = vmatprep.subr.mxu0 0.0
    %1403 = vmatpush1.msra.mxu0 0.0
    %1404 = vmatprep.subr.mxu0 0.0
    %1405 = vmatpush1.msra.mxu0 0.0
    %1406 = vmatprep.subr.mxu0 0.0
    %1407 = vmatpush1.msra.mxu0 0.0
    %1408 = vmatprep.subr.mxu0 0.0
    %1409 = vmatpush1.msra.mxu0 0.0
    %1410 = vmatprep.subr.mxu0 0.0
    %1411 = vmatpush1.msra.mxu0 0.0
    %1412 = vmatprep.subr.mxu0 0.0
    %1413 = vmatpush1.msra.mxu0 0.0
    %1414 = vmatprep.mubr.f32.mxu0 0.0
    %1415 = vmatmul.mubr.f32.gmra.mrb[0].mxu0 %v1348
    %v1416 = vpop.f32.mrb[0].mxu0
    %v1417 = vadd.f32 0.0, %v1416
    %v1418 = vpop.f32.mrb[0].mxu0
    %1419 = vdwg.mxu0
    %v1421 = vsel %vm1302, %v1344, 0
    %1423 = vmatprep.subr.mxu0 0.0
    %1424 = vmatpush1.msra.mxu0 %v823
    %1425 = vmatprep.subr.mxu0 0.0
    %1426 = vmatpush1.msra.mxu0 %v828
    %1427 = vmatprep.subr.mxu0 0.0
    %1428 = vmatpush1.msra.mxu0 0.0
    %1429 = vmatprep.subr.mxu0 0.0
    %1430 = vmatpush1.msra.mxu0 0.0
    %1431 = vmatprep.subr.mxu0 0.0
    %1432 = vmatpush1.msra.mxu0 0.0
    %1433 = vmatprep.subr.mxu0 0.0
    %1434 = vmatpush1.msra.mxu0 0.0
    %1435 = vmatprep.subr.mxu0 0.0
    %1436 = vmatpush1.msra.mxu0 0.0
    %1437 = vmatprep.subr.mxu0 0.0
    %1438 = vmatpush1.msra.mxu0 0.0
    %1439 = vmatprep.subr.mxu0 0.0
    %1440 = vmatpush1.msra.mxu0 0.0
    %1441 = vmatprep.subr.mxu0 0.0
    %1442 = vmatpush1.msra.mxu0 0.0
    %1443 = vmatprep.subr.mxu0 0.0
    %1444 = vmatpush1.msra.mxu0 0.0
    %1445 = vmatprep.subr.mxu0 0.0
    %1446 = vmatpush1.msra.mxu0 0.0
    %1447 = vmatprep.subr.mxu0 0.0
    %1448 = vmatpush1.msra.mxu0 0.0
    %1449 = vmatprep.subr.mxu0 0.0
    %1450 = vmatpush1.msra.mxu0 0.0
    %1451 = vmatprep.subr.mxu0 0.0
    %1452 = vmatpush1.msra.mxu0 0.0
    %1453 = vmatprep.subr.mxu0 0.0
    %1454 = vmatpush1.msra.mxu0 0.0
    %1455 = vmatprep.subr.mxu0 0.0
    %1456 = vmatpush1.msra.mxu0 0.0
    %1457 = vmatprep.subr.mxu0 0.0
    %1458 = vmatpush1.msra.mxu0 0.0
    %1459 = vmatprep.subr.mxu0 0.0
    %1460 = vmatpush1.msra.mxu0 0.0
    %1461 = vmatprep.subr.mxu0 0.0
    %1462 = vmatpush1.msra.mxu0 0.0
    %1463 = vmatprep.subr.mxu0 0.0
    %1464 = vmatpush1.msra.mxu0 0.0
    %1465 = vmatprep.subr.mxu0 0.0
    %1466 = vmatpush1.msra.mxu0 0.0
    %1467 = vmatprep.subr.mxu0 0.0
    %1468 = vmatpush1.msra.mxu0 0.0
    %1469 = vmatprep.subr.mxu0 0.0
    %1470 = vmatpush1.msra.mxu0 0.0
    %1471 = vmatprep.subr.mxu0 0.0
    %1472 = vmatpush1.msra.mxu0 0.0
    %1473 = vmatprep.subr.mxu0 0.0
    %1474 = vmatpush1.msra.mxu0 0.0
    %1475 = vmatprep.subr.mxu0 0.0
    %1476 = vmatpush1.msra.mxu0 0.0
    %1477 = vmatprep.subr.mxu0 0.0
    %1478 = vmatpush1.msra.mxu0 0.0
    %1479 = vmatprep.subr.mxu0 0.0
    %1480 = vmatpush1.msra.mxu0 0.0
    %1481 = vmatprep.subr.mxu0 0.0
    %1482 = vmatpush1.msra.mxu0 0.0
    %1483 = vmatprep.subr.mxu0 0.0
    %1484 = vmatpush1.msra.mxu0 0.0
    %1485 = vmatprep.subr.mxu0 0.0
    %1486 = vmatpush1.msra.mxu0 0.0
    %1487 = vmatprep.mubr.f32.mxu0 0.0
    %1488 = vmatmul.mubr.f32.gmra.mrb[0].mxu0 %v1421
    %v1489 = vpop.f32.mrb[0].mxu0
    %v1490 = vadd.f32 0.0, %v1489
    %v1491 = vpop.f32.mrb[0].mxu0
    %1492 = vdwg.mxu0
    %v1494 = vsel %vm1302, %v1345, 0
    %1496 = vmatprep.subr.mxu0 0.0
    %1497 = vmatpush1.msra.mxu0 %v898
    %1498 = vmatprep.subr.mxu0 0.0
    %1499 = vmatpush1.msra.mxu0 %v903
    %1500 = vmatprep.subr.mxu0 0.0
    %1501 = vmatpush1.msra.mxu0 0.0
    %1502 = vmatprep.subr.mxu0 0.0
    %1503 = vmatpush1.msra.mxu0 0.0
    %1504 = vmatprep.subr.mxu0 0.0
    %1505 = vmatpush1.msra.mxu0 0.0
    %1506 = vmatprep.subr.mxu0 0.0
    %1507 = vmatpush1.msra.mxu0 0.0
    %1508 = vmatprep.subr.mxu0 0.0
    %1509 = vmatpush1.msra.mxu0 0.0
    %1510 = vmatprep.subr.mxu0 0.0
    %1511 = vmatpush1.msra.mxu0 0.0
    %1512 = vmatprep.subr.mxu0 0.0
    %1513 = vmatpush1.msra.mxu0 0.0
    %1514 = vmatprep.subr.mxu0 0.0
    %1515 = vmatpush1.msra.mxu0 0.0
    %1516 = vmatprep.subr.mxu0 0.0
    %1517 = vmatpush1.msra.mxu0 0.0
    %1518 = vmatprep.subr.mxu0 0.0
    %1519 = vmatpush1.msra.mxu0 0.0
    %1520 = vmatprep.subr.mxu0 0.0
    %1521 = vmatpush1.msra.mxu0 0.0
    %1522 = vmatprep.subr.mxu0 0.0
    %1523 = vmatpush1.msra.mxu0 0.0
    %1524 = vmatprep.subr.mxu0 0.0
    %1525 = vmatpush1.msra.mxu0 0.0
    %1526 = vmatprep.subr.mxu0 0.0
    %1527 = vmatpush1.msra.mxu0 0.0
    %1528 = vmatprep.subr.mxu0 0.0
    %1529 = vmatpush1.msra.mxu0 0.0
    %1530 = vmatprep.subr.mxu0 0.0
    %1531 = vmatpush1.msra.mxu0 0.0
    %1532 = vmatprep.subr.mxu0 0.0
    %1533 = vmatpush1.msra.mxu0 0.0
    %1534 = vmatprep.subr.mxu0 0.0
    %1535 = vmatpush1.msra.mxu0 0.0
    %1536 = vmatprep.subr.mxu0 0.0
    %1537 = vmatpush1.msra.mxu0 0.0
    %1538 = vmatprep.subr.mxu0 0.0
    %1539 = vmatpush1.msra.mxu0 0.0
    %1540 = vmatprep.subr.mxu0 0.0
    %1541 = vmatpush1.msra.mxu0 0.0
    %1542 = vmatprep.subr.mxu0 0.0
    %1543 = vmatpush1.msra.mxu0 0.0
    %1544 = vmatprep.subr.mxu0 0.0
    %1545 = vmatpush1.msra.mxu0 0.0
    %1546 = vmatprep.subr.mxu0 0.0
    %1547 = vmatpush1.msra.mxu0 0.0
    %1548 = vmatprep.subr.mxu0 0.0
    %1549 = vmatpush1.msra.mxu0 0.0
    %1550 = vmatprep.subr.mxu0 0.0
    %1551 = vmatpush1.msra.mxu0 0.0
    %1552 = vmatprep.subr.mxu0 0.0
    %1553 = vmatpush1.msra.mxu0 0.0
    %1554 = vmatprep.subr.mxu0 0.0
    %1555 = vmatpush1.msra.mxu0 0.0
    %1556 = vmatprep.subr.mxu0 0.0
    %1557 = vmatpush1.msra.mxu0 0.0
    %1558 = vmatprep.subr.mxu0 0.0
    %1559 = vmatpush1.msra.mxu0 0.0
    %1560 = vmatprep.mubr.f32.mxu0 0.0
    %1561 = vmatmul.mubr.f32.gmra.mrb[0].mxu0 %v1494
    %v1562 = vpop.f32.mrb[0].mxu0
    %v1563 = vadd.f32 0.0, %v1562
    %v1564 = vpop.f32.mrb[0].mxu0
    %1565 = vdwg.mxu0
    %v1567 = vsel %vm1302, %v1346, 0
    %1569 = vmatprep.subr.mxu0 0.0
    %1570 = vmatpush1.msra.mxu0 %v973
    %1571 = vmatprep.subr.mxu0 0.0
    %1572 = vmatpush1.msra.mxu0 %v978
    %1573 = vmatprep.subr.mxu0 0.0
    %1574 = vmatpush1.msra.mxu0 0.0
    %1575 = vmatprep.subr.mxu0 0.0
    %1576 = vmatpush1.msra.mxu0 0.0
    %1577 = vmatprep.subr.mxu0 0.0
    %1578 = vmatpush1.msra.mxu0 0.0
    %1579 = vmatprep.subr.mxu0 0.0
    %1580 = vmatpush1.msra.mxu0 0.0
    %1581 = vmatprep.subr.mxu0 0.0
    %1582 = vmatpush1.msra.mxu0 0.0
    %1583 = vmatprep.subr.mxu0 0.0
    %1584 = vmatpush1.msra.mxu0 0.0
    %1585 = vmatprep.subr.mxu0 0.0
    %1586 = vmatpush1.msra.mxu0 0.0
    %1587 = vmatprep.subr.mxu0 0.0
    %1588 = vmatpush1.msra.mxu0 0.0
    %1589 = vmatprep.subr.mxu0 0.0
    %1590 = vmatpush1.msra.mxu0 0.0
    %1591 = vmatprep.subr.mxu0 0.0
    %1592 = vmatpush1.msra.mxu0 0.0
    %1593 = vmatprep.subr.mxu0 0.0
    %1594 = vmatpush1.msra.mxu0 0.0
    %1595 = vmatprep.subr.mxu0 0.0
    %1596 = vmatpush1.msra.mxu0 0.0
    %1597 = vmatprep.subr.mxu0 0.0
    %1598 = vmatpush1.msra.mxu0 0.0
    %1599 = vmatprep.subr.mxu0 0.0
    %1600 = vmatpush1.msra.mxu0 0.0
    %1601 = vmatprep.subr.mxu0 0.0
    %1602 = vmatpush1.msra.mxu0 0.0
    %1603 = vmatprep.subr.mxu0 0.0
    %1604 = vmatpush1.msra.mxu0 0.0
    %1605 = vmatprep.subr.mxu0 0.0
    %1606 = vmatpush1.msra.mxu0 0.0
    %1607 = vmatprep.subr.mxu0 0.0
    %1608 = vmatpush1.msra.mxu0 0.0
    %1609 = vmatprep.subr.mxu0 0.0
    %1610 = vmatpush1.msra.mxu0 0.0
    %1611 = vmatprep.subr.mxu0 0.0
    %1612 = vmatpush1.msra.mxu0 0.0
    %1613 = vmatprep.subr.mxu0 0.0
    %1614 = vmatpush1.msra.mxu0 0.0
    %1615 = vmatprep.subr.mxu0 0.0
    %1616 = vmatpush1.msra.mxu0 0.0
    %1617 = vmatprep.subr.mxu0 0.0
    %1618 = vmatpush1.msra.mxu0 0.0
    %1619 = vmatprep.subr.mxu0 0.0
    %1620 = vmatpush1.msra.mxu0 0.0
    %1621 = vmatprep.subr.mxu0 0.0
    %1622 = vmatpush1.msra.mxu0 0.0
    %1623 = vmatprep.subr.mxu0 0.0
    %1624 = vmatpush1.msra.mxu0 0.0
    %1625 = vmatprep.subr.mxu0 0.0
    %1626 = vmatpush1.msra.mxu0 0.0
    %1627 = vmatprep.subr.mxu0 0.0
    %1628 = vmatpush1.msra.mxu0 0.0
    %1629 = vmatprep.subr.mxu0 0.0
    %1630 = vmatpush1.msra.mxu0 0.0
    %1631 = vmatprep.subr.mxu0 0.0
    %1632 = vmatpush1.msra.mxu0 0.0
    %1633 = vmatprep.mubr.f32.mxu0 0.0
    %1634 = vmatmul.mubr.f32.gmra.mrb[0].mxu0 %v1567
    %v1635 = vpop.f32.mrb[0].mxu0
    %v1636 = vadd.f32 0.0, %v1635
    %v1637 = vpop.f32.mrb[0].mxu0
    %1638 = vdwg.mxu0
    %v1640 = vsel %vm981, %v1417, 0
    %1642 = vmatprep.subr.mxu0 0.0
    %1643 = vmatpush1.msra.mxu0 %v81
    %1644 = vmatprep.subr.mxu0 0.0
    %1645 = vmatpush1.msra.mxu0 0.0
    %1646 = vmatprep.subr.mxu0 0.0
    %1647 = vmatpush1.msra.mxu0 0.0
    %1648 = vmatprep.subr.mxu0 0.0
    %1649 = vmatpush1.msra.mxu0 0.0
    %1650 = vmatprep.subr.mxu0 0.0
    %1651 = vmatpush1.msra.mxu0 0.0
    %1652 = vmatprep.subr.mxu0 0.0
    %1653 = vmatpush1.msra.mxu0 0.0
    %1654 = vmatprep.subr.mxu0 0.0
    %1655 = vmatpush1.msra.mxu0 0.0
    %1656 = vmatprep.subr.mxu0 0.0
    %1657 = vmatpush1.msra.mxu0 0.0
    %1658 = vmatprep.subr.mxu0 0.0
    %1659 = vmatpush1.msra.mxu0 0.0
    %1660 = vmatprep.subr.mxu0 0.0
    %1661 = vmatpush1.msra.mxu0 0.0
    %1662 = vmatprep.subr.mxu0 0.0
    %1663 = vmatpush1.msra.mxu0 0.0
    %1664 = vmatprep.subr.mxu0 0.0
    %1665 = vmatpush1.msra.mxu0 0.0
    %1666 = vmatprep.subr.mxu0 0.0
    %1667 = vmatpush1.msra.mxu0 0.0
    %1668 = vmatprep.subr.mxu0 0.0
    %1669 = vmatpush1.msra.mxu0 0.0
    %1670 = vmatprep.subr.mxu0 0.0
    %1671 = vmatpush1.msra.mxu0 0.0
    %1672 = vmatprep.subr.mxu0 0.0
    %1673 = vmatpush1.msra.mxu0 0.0
    %1674 = vmatprep.subr.mxu0 0.0
    %1675 = vmatpush1.msra.mxu0 0.0
    %1676 = vmatprep.subr.mxu0 0.0
    %1677 = vmatpush1.msra.mxu0 0.0
    %1678 = vmatprep.subr.mxu0 0.0
    %1679 = vmatpush1.msra.mxu0 0.0
    %1680 = vmatprep.subr.mxu0 0.0
    %1681 = vmatpush1.msra.mxu0 0.0
    %1682 = vmatprep.subr.mxu0 0.0
    %1683 = vmatpush1.msra.mxu0 0.0
    %1684 = vmatprep.subr.mxu0 0.0
    %1685 = vmatpush1.msra.mxu0 0.0
    %1686 = vmatprep.subr.mxu0 0.0
    %1687 = vmatpush1.msra.mxu0 0.0
    %1688 = vmatprep.subr.mxu0 0.0
    %1689 = vmatpush1.msra.mxu0 0.0
    %1690 = vmatprep.subr.mxu0 0.0
    %1691 = vmatpush1.msra.mxu0 0.0
    %1692 = vmatprep.subr.mxu0 0.0
    %1693 = vmatpush1.msra.mxu0 0.0
    %1694 = vmatprep.subr.mxu0 0.0
    %1695 = vmatpush1.msra.mxu0 0.0
    %1696 = vmatprep.subr.mxu0 0.0
    %1697 = vmatpush1.msra.mxu0 0.0
    %1698 = vmatprep.subr.mxu0 0.0
    %1699 = vmatpush1.msra.mxu0 0.0
    %1700 = vmatprep.subr.mxu0 0.0
    %1701 = vmatpush1.msra.mxu0 0.0
    %1702 = vmatprep.subr.mxu0 0.0
    %1703 = vmatpush1.msra.mxu0 0.0
    %1704 = vmatprep.subr.mxu0 0.0
    %1705 = vmatpush1.msra.mxu0 0.0
    %1706 = vmatprep.mubr.f32.mxu0 0.0
    %1707 = vmatmul.mubr.f32.gmra.mrb[0].mxu0 %v1640
    %v1708 = vpop.f32.mrb[0].mxu0
    %v1709 = vadd.f32 0.0, %v1708
    %v1710 = vpop.f32.mrb[0].mxu0
    %1711 = vdwg.mxu0
    %v1713 = vsel %vm981, %v1490, 0
    %1715 = vmatprep.subr.mxu0 0.0
    %1716 = vmatpush1.msra.mxu0 %v82
    %1717 = vmatprep.subr.mxu0 0.0
    %1718 = vmatpush1.msra.mxu0 0.0
    %1719 = vmatprep.subr.mxu0 0.0
    %1720 = vmatpush1.msra.mxu0 0.0
    %1721 = vmatprep.subr.mxu0 0.0
    %1722 = vmatpush1.msra.mxu0 0.0
    %1723 = vmatprep.subr.mxu0 0.0
    %1724 = vmatpush1.msra.mxu0 0.0
    %1725 = vmatprep.subr.mxu0 0.0
    %1726 = vmatpush1.msra.mxu0 0.0
    %1727 = vmatprep.subr.mxu0 0.0
    %1728 = vmatpush1.msra.mxu0 0.0
    %1729 = vmatprep.subr.mxu0 0.0
    %1730 = vmatpush1.msra.mxu0 0.0
    %1731 = vmatprep.subr.mxu0 0.0
    %1732 = vmatpush1.msra.mxu0 0.0
    %1733 = vmatprep.subr.mxu0 0.0
    %1734 = vmatpush1.msra.mxu0 0.0
    %1735 = vmatprep.subr.mxu0 0.0
    %1736 = vmatpush1.msra.mxu0 0.0
    %1737 = vmatprep.subr.mxu0 0.0
    %1738 = vmatpush1.msra.mxu0 0.0
    %1739 = vmatprep.subr.mxu0 0.0
    %1740 = vmatpush1.msra.mxu0 0.0
    %1741 = vmatprep.subr.mxu0 0.0
    %1742 = vmatpush1.msra.mxu0 0.0
    %1743 = vmatprep.subr.mxu0 0.0
    %1744 = vmatpush1.msra.mxu0 0.0
    %1745 = vmatprep.subr.mxu0 0.0
    %1746 = vmatpush1.msra.mxu0 0.0
    %1747 = vmatprep.subr.mxu0 0.0
    %1748 = vmatpush1.msra.mxu0 0.0
    %1749 = vmatprep.subr.mxu0 0.0
    %1750 = vmatpush1.msra.mxu0 0.0
    %1751 = vmatprep.subr.mxu0 0.0
    %1752 = vmatpush1.msra.mxu0 0.0
    %1753 = vmatprep.subr.mxu0 0.0
    %1754 = vmatpush1.msra.mxu0 0.0
    %1755 = vmatprep.subr.mxu0 0.0
    %1756 = vmatpush1.msra.mxu0 0.0
    %1757 = vmatprep.subr.mxu0 0.0
    %1758 = vmatpush1.msra.mxu0 0.0
    %1759 = vmatprep.subr.mxu0 0.0
    %1760 = vmatpush1.msra.mxu0 0.0
    %1761 = vmatprep.subr.mxu0 0.0
    %1762 = vmatpush1.msra.mxu0 0.0
    %1763 = vmatprep.subr.mxu0 0.0
    %1764 = vmatpush1.msra.mxu0 0.0
    %1765 = vmatprep.subr.mxu0 0.0
    %1766 = vmatpush1.msra.mxu0 0.0
    %1767 = vmatprep.subr.mxu0 0.0
    %1768 = vmatpush1.msra.mxu0 0.0
    %1769 = vmatprep.subr.mxu0 0.0
    %1770 = vmatpush1.msra.mxu0 0.0
    %1771 = vmatprep.subr.mxu0 0.0
    %1772 = vmatpush1.msra.mxu0 0.0
    %1773 = vmatprep.subr.mxu0 0.0
    %1774 = vmatpush1.msra.mxu0 0.0
    %1775 = vmatprep.subr.mxu0 0.0
    %1776 = vmatpush1.msra.mxu0 0.0
    %1777 = vmatprep.subr.mxu0 0.0
    %1778 = vmatpush1.msra.mxu0 0.0
    %1779 = vmatprep.mubr.f32.mxu0 0.0
    %1780 = vmatmul.mubr.f32.gmra.mrb[0].mxu0 %v1713
    %v1781 = vpop.f32.mrb[0].mxu0
    %v1782 = vadd.f32 0.0, %v1781
    %v1783 = vpop.f32.mrb[0].mxu0
    %1784 = vdwg.mxu0
    %v1786 = vsel %vm981, %v1563, 0
    %1788 = vmatprep.subr.mxu0 0.0
    %1789 = vmatpush1.msra.mxu0 %v83
    %1790 = vmatprep.subr.mxu0 0.0
    %1791 = vmatpush1.msra.mxu0 0.0
    %1792 = vmatprep.subr.mxu0 0.0
    %1793 = vmatpush1.msra.mxu0 0.0
    %1794 = vmatprep.subr.mxu0 0.0
    %1795 = vmatpush1.msra.mxu0 0.0
    %1796 = vmatprep.subr.mxu0 0.0
    %1797 = vmatpush1.msra.mxu0 0.0
    %1798 = vmatprep.subr.mxu0 0.0
    %1799 = vmatpush1.msra.mxu0 0.0
    %1800 = vmatprep.subr.mxu0 0.0
    %1801 = vmatpush1.msra.mxu0 0.0
    %1802 = vmatprep.subr.mxu0 0.0
    %1803 = vmatpush1.msra.mxu0 0.0
    %1804 = vmatprep.subr.mxu0 0.0
    %1805 = vmatpush1.msra.mxu0 0.0
    %1806 = vmatprep.subr.mxu0 0.0
    %1807 = vmatpush1.msra.mxu0 0.0
    %1808 = vmatprep.subr.mxu0 0.0
    %1809 = vmatpush1.msra.mxu0 0.0
    %1810 = vmatprep.subr.mxu0 0.0
    %1811 = vmatpush1.msra.mxu0 0.0
    %1812 = vmatprep.subr.mxu0 0.0
    %1813 = vmatpush1.msra.mxu0 0.0
    %1814 = vmatprep.subr.mxu0 0.0
    %1815 = vmatpush1.msra.mxu0 0.0
    %1816 = vmatprep.subr.mxu0 0.0
    %1817 = vmatpush1.msra.mxu0 0.0
    %1818 = vmatprep.subr.mxu0 0.0
    %1819 = vmatpush1.msra.mxu0 0.0
    %1820 = vmatprep.subr.mxu0 0.0
    %1821 = vmatpush1.msra.mxu0 0.0
    %1822 = vmatprep.subr.mxu0 0.0
    %1823 = vmatpush1.msra.mxu0 0.0
    %1824 = vmatprep.subr.mxu0 0.0
    %1825 = vmatpush1.msra.mxu0 0.0
    %1826 = vmatprep.subr.mxu0 0.0
    %1827 = vmatpush1.msra.mxu0 0.0
    %1828 = vmatprep.subr.mxu0 0.0
    %1829 = vmatpush1.msra.mxu0 0.0
    %1830 = vmatprep.subr.mxu0 0.0
    %1831 = vmatpush1.msra.mxu0 0.0
    %1832 = vmatprep.subr.mxu0 0.0
    %1833 = vmatpush1.msra.mxu0 0.0
    %1834 = vmatprep.subr.mxu0 0.0
    %1835 = vmatpush1.msra.mxu0 0.0
    %1836 = vmatprep.subr.mxu0 0.0
    %1837 = vmatpush1.msra.mxu0 0.0
    %1838 = vmatprep.subr.mxu0 0.0
    %1839 = vmatpush1.msra.mxu0 0.0
    %1840 = vmatprep.subr.mxu0 0.0
    %1841 = vmatpush1.msra.mxu0 0.0
    %1842 = vmatprep.subr.mxu0 0.0
    %1843 = vmatpush1.msra.mxu0 0.0
    %1844 = vmatprep.subr.mxu0 0.0
    %1845 = vmatpush1.msra.mxu0 0.0
    %1846 = vmatprep.subr.mxu0 0.0
    %1847 = vmatpush1.msra.mxu0 0.0
    %1848 = vmatprep.subr.mxu0 0.0
    %1849 = vmatpush1.msra.mxu0 0.0
    %1850 = vmatprep.subr.mxu0 0.0
    %1851 = vmatpush1.msra.mxu0 0.0
    %1852 = vmatprep.mubr.f32.mxu0 0.0
    %1853 = vmatmul.mubr.f32.gmra.mrb[0].mxu0 %v1786
    %v1854 = vpop.f32.mrb[0].mxu0
    %v1855 = vadd.f32 0.0, %v1854
    %v1856 = vpop.f32.mrb[0].mxu0
    %1857 = vdwg.mxu0
    %v1859 = vsel %vm981, %v1636, 0
    %1861 = vmatprep.subr.mxu0 0.0
    %1862 = vmatpush1.msra.mxu0 %v84
    %1863 = vmatprep.subr.mxu0 0.0
    %1864 = vmatpush1.msra.mxu0 0.0
    %1865 = vmatprep.subr.mxu0 0.0
    %1866 = vmatpush1.msra.mxu0 0.0
    %1867 = vmatprep.subr.mxu0 0.0
    %1868 = vmatpush1.msra.mxu0 0.0
    %1869 = vmatprep.subr.mxu0 0.0
    %1870 = vmatpush1.msra.mxu0 0.0
    %1871 = vmatprep.subr.mxu0 0.0
    %1872 = vmatpush1.msra.mxu0 0.0
    %1873 = vmatprep.subr.mxu0 0.0
    %1874 = vmatpush1.msra.mxu0 0.0
    %1875 = vmatprep.subr.mxu0 0.0
    %1876 = vmatpush1.msra.mxu0 0.0
    %1877 = vmatprep.subr.mxu0 0.0
    %1878 = vmatpush1.msra.mxu0 0.0
    %1879 = vmatprep.subr.mxu0 0.0
    %1880 = vmatpush1.msra.mxu0 0.0
    %1881 = vmatprep.subr.mxu0 0.0
    %1882 = vmatpush1.msra.mxu0 0.0
    %1883 = vmatprep.subr.mxu0 0.0
    %1884 = vmatpush1.msra.mxu0 0.0
    %1885 = vmatprep.subr.mxu0 0.0
    %1886 = vmatpush1.msra.mxu0 0.0
    %1887 = vmatprep.subr.mxu0 0.0
    %1888 = vmatpush1.msra.mxu0 0.0
    %1889 = vmatprep.subr.mxu0 0.0
    %1890 = vmatpush1.msra.mxu0 0.0
    %1891 = vmatprep.subr.mxu0 0.0
    %1892 = vmatpush1.msra.mxu0 0.0
    %1893 = vmatprep.subr.mxu0 0.0
    %1894 = vmatpush1.msra.mxu0 0.0
    %1895 = vmatprep.subr.mxu0 0.0
    %1896 = vmatpush1.msra.mxu0 0.0
    %1897 = vmatprep.subr.mxu0 0.0
    %1898 = vmatpush1.msra.mxu0 0.0
    %1899 = vmatprep.subr.mxu0 0.0
    %1900 = vmatpush1.msra.mxu0 0.0
    %1901 = vmatprep.subr.mxu0 0.0
    %1902 = vmatpush1.msra.mxu0 0.0
    %1903 = vmatprep.subr.mxu0 0.0
    %1904 = vmatpush1.msra.mxu0 0.0
    %1905 = vmatprep.subr.mxu0 0.0
    %1906 = vmatpush1.msra.mxu0 0.0
    %1907 = vmatprep.subr.mxu0 0.0
    %1908 = vmatpush1.msra.mxu0 0.0
    %1909 = vmatprep.subr.mxu0 0.0
    %1910 = vmatpush1.msra.mxu0 0.0
    %1911 = vmatprep.subr.mxu0 0.0
    %1912 = vmatpush1.msra.mxu0 0.0
    %1913 = vmatprep.subr.mxu0 0.0
    %1914 = vmatpush1.msra.mxu0 0.0
    %1915 = vmatprep.subr.mxu0 0.0
    %1916 = vmatpush1.msra.mxu0 0.0
    %1917 = vmatprep.subr.mxu0 0.0
    %1918 = vmatpush1.msra.mxu0 0.0
    %1919 = vmatprep.subr.mxu0 0.0
    %1920 = vmatpush1.msra.mxu0 0.0
    %1921 = vmatprep.subr.mxu0 0.0
    %1922 = vmatpush1.msra.mxu0 0.0
    %1923 = vmatprep.subr.mxu0 0.0
    %1924 = vmatpush1.msra.mxu0 0.0
    %1925 = vmatprep.mubr.f32.mxu0 0.0
    %1926 = vmatmul.mubr.f32.gmra.mrb[0].mxu0 %v1859
    %v1927 = vpop.f32.mrb[0].mxu0
    %v1928 = vadd.f32 0.0, %v1927
    %v1929 = vpop.f32.mrb[0].mxu0
    %1930 = vdwg.mxu0
    %v1931 = vsel %vm91, %v1709, 0.0
    %v1932 = vsel %vm91, %v1782, 0.0
    %v1933 = vadd.f32 %v1931, %v1932
    %v1934 = vsel %vm91, %v1855, 0.0
    %v1935 = vadd.f32 %v1933, %v1934
    %v1936 = vsel %vm91, %v1928, 0.0
    %v1937 = vadd.f32 %v1935, %v1936
    %v1939 = vlaneseq
    %v1940 = vshrl.u32 %v1939, 7
    %v1941 = vsub.s32 0, %v1940
    %v1942 = vrot.slane %v85, %v1941
    %v1944 = vadd.f32 %v1937, %v1942
    %v1945 = vadd.f32 %v1944, %v88
    %v1946 = vsel %vm91, %v1945, 0.0
    %1947 = vadd.xlane.f32.xlu0 %v1946
    %v1948 = vpop.xlane.xlu0 %1947
    %v1949 = vrcp.pop 32.0
    %v1950 = vmul.f32 %v1948, %v1949
    %v1951 = vsub.f32 %v1945, %v1950
    %v1952 = vmul.f32 %v1951, %v1951
    %v1953 = vsel %vm91, %v1952, 0.0
    %1954 = vadd.xlane.f32.xlu0 %v1953
    %v1955 = vpop.xlane.xlu0 %1954
    %v1956 = vmul.f32 %v1955, %v1949
    %v1957 = vadd.f32 %v1956, 1e-05
    %v1958 = vrsqrt.pop %v1957
    %v1959 = vmul.f32 %v1951, %v1958
    %v1961 = vlaneseq
    %v1962 = vshrl.u32 %v1961, 7
    %v1963 = vsub.s32 0, %v1962
    %v1964 = vrot.slane %v86, %v1963
    %v1966 = vmul.f32 %v1959, %v1964
    %v1968 = vlaneseq
    %v1969 = vshrl.u32 %v1968, 7
    %v1970 = vsub.s32 0, %v1969
    %v1971 = vrot.slane %v87, %v1970
    %v1973 = vadd.f32 %v1966, %v1971
    %1974 = vst.msk [vmem:[#allocation2] sm:$0xff] %vm91, %v1973
    %s1975 = scalar_lea.vmem %s0, 8
    %v1976 = vld [vmem:[%s1975] sm:$0xff]
    %s1977 = scalar_lea.vmem %s1, 16
    %v1978 = vld [vmem:[%s1977] sm:$0xff]
    %v1979 = vld [vmem:[%s1977 + $0x8] sm:$0xff]
    %v1981 = vsel %vm91, %v1976, 0
    %1983 = vmatprep.subr.mxu0 0.0
    %1984 = vmatpush1.msra.mxu0 %v33
    %1985 = vmatprep.subr.mxu0 0.0
    %1986 = vmatpush1.msra.mxu0 %v34
    %1987 = vmatprep.subr.mxu0 0.0
    %1988 = vmatpush1.msra.mxu0 %v35
    %1989 = vmatprep.subr.mxu0 0.0
    %1990 = vmatpush1.msra.mxu0 %v36
    %1991 = vmatprep.subr.mxu0 0.0
    %1992 = vmatpush1.msra.mxu0 0.0
    %1993 = vmatprep.subr.mxu0 0.0
    %1994 = vmatpush1.msra.mxu0 0.0
    %1995 = vmatprep.subr.mxu0 0.0
    %1996 = vmatpush1.msra.mxu0 0.0
    %1997 = vmatprep.subr.mxu0 0.0
    %1998 = vmatpush1.msra.mxu0 0.0
    %1999 = vmatprep.subr.mxu0 0.0
    %2000 = vmatpush1.msra.mxu0 0.0
    %2001 = vmatprep.subr.mxu0 0.0
    %2002 = vmatpush1.msra.mxu0 0.0
    %2003 = vmatprep.subr.mxu0 0.0
    %2004 = vmatpush1.msra.mxu0 0.0
    %2005 = vmatprep.subr.mxu0 0.0
    %2006 = vmatpush1.msra.mxu0 0.0
    %2007 = vmatprep.subr.mxu0 0.0
    %2008 = vmatpush1.msra.mxu0 0.0
    %2009 = vmatprep.subr.mxu0 0.0
    %2010 = vmatpush1.msra.mxu0 0.0
    %2011 = vmatprep.subr.mxu0 0.0
    %2012 = vmatpush1.msra.mxu0 0.0
    %2013 = vmatprep.subr.mxu0 0.0
    %2014 = vmatpush1.msra.mxu0 0.0
    %2015 = vmatprep.subr.mxu0 0.0
    %2016 = vmatpush1.msra.mxu0 0.0
    %2017 = vmatprep.subr.mxu0 0.0
    %2018 = vmatpush1.msra.mxu0 0.0
    %2019 = vmatprep.subr.mxu0 0.0
    %2020 = vmatpush1.msra.mxu0 0.0
    %2021 = vmatprep.subr.mxu0 0.0
    %2022 = vmatpush1.msra.mxu0 0.0
    %2023 = vmatprep.subr.mxu0 0.0
    %2024 = vmatpush1.msra.mxu0 0.0
    %2025 = vmatprep.subr.mxu0 0.0
    %2026 = vmatpush1.msra.mxu0 0.0
    %2027 = vmatprep.subr.mxu0 0.0
    %2028 = vmatpush1.msra.mxu0 0.0
    %2029 = vmatprep.subr.mxu0 0.0
    %2030 = vmatpush1.msra.mxu0 0.0
    %2031 = vmatprep.subr.mxu0 0.0
    %2032 = vmatpush1.msra.mxu0 0.0
    %2033 = vmatprep.subr.mxu0 0.0
    %2034 = vmatpush1.msra.mxu0 0.0
    %2035 = vmatprep.subr.mxu0 0.0
    %2036 = vmatpush1.msra.mxu0 0.0
    %2037 = vmatprep.subr.mxu0 0.0
    %2038 = vmatpush1.msra.mxu0 0.0
    %2039 = vmatprep.subr.mxu0 0.0
    %2040 = vmatpush1.msra.mxu0 0.0
    %2041 = vmatprep.subr.mxu0 0.0
    %2042 = vmatpush1.msra.mxu0 0.0
    %2043 = vmatprep.subr.mxu0 0.0
    %2044 = vmatpush1.msra.mxu0 0.0
    %2045 = vmatprep.subr.mxu0 0.0
    %2046 = vmatpush1.msra.mxu0 0.0
    %2047 = vmatprep.mubr.f32.mxu0 0.0
    %2048 = vmatmul.mubr.f32.gmra.mrb[0].mxu0 %v1981
    %v2049 = vpop.f32.mrb[0].mxu0
    %v2050 = vadd.f32 0.0, %v2049
    %v2051 = vpop.f32.mrb[0].mxu0
    %2052 = vdwg.mxu0
    %2053 = vmatprep.subr.mxu0 0.0
    %2054 = vmatpush1.msra.mxu0 %v37
    %2055 = vmatprep.subr.mxu0 0.0
    %2056 = vmatpush1.msra.mxu0 %v38
    %2057 = vmatprep.subr.mxu0 0.0
    %2058 = vmatpush1.msra.mxu0 %v39
    %2059 = vmatprep.subr.mxu0 0.0
    %2060 = vmatpush1.msra.mxu0 %v40
    %2061 = vmatprep.subr.mxu0 0.0
    %2062 = vmatpush1.msra.mxu0 0.0
    %2063 = vmatprep.subr.mxu0 0.0
    %2064 = vmatpush1.msra.mxu0 0.0
    %2065 = vmatprep.subr.mxu0 0.0
    %2066 = vmatpush1.msra.mxu0 0.0
    %2067 = vmatprep.subr.mxu0 0.0
    %2068 = vmatpush1.msra.mxu0 0.0
    %2069 = vmatprep.subr.mxu0 0.0
    %2070 = vmatpush1.msra.mxu0 0.0
    %2071 = vmatprep.subr.mxu0 0.0
    %2072 = vmatpush1.msra.mxu0 0.0
    %2073 = vmatprep.subr.mxu0 0.0
    %2074 = vmatpush1.msra.mxu0 0.0
    %2075 = vmatprep.subr.mxu0 0.0
    %2076 = vmatpush1.msra.mxu0 0.0
    %2077 = vmatprep.subr.mxu0 0.0
    %2078 = vmatpush1.msra.mxu0 0.0
    %2079 = vmatprep.subr.mxu0 0.0
    %2080 = vmatpush1.msra.mxu0 0.0
    %2081 = vmatprep.subr.mxu0 0.0
    %2082 = vmatpush1.msra.mxu0 0.0
    %2083 = vmatprep.subr.mxu0 0.0
    %2084 = vmatpush1.msra.mxu0 0.0
    %2085 = vmatprep.subr.mxu0 0.0
    %2086 = vmatpush1.msra.mxu0 0.0
    %2087 = vmatprep.subr.mxu0 0.0
    %2088 = vmatpush1.msra.mxu0 0.0
    %2089 = vmatprep.subr.mxu0 0.0
    %2090 = vmatpush1.msra.mxu0 0.0
    %2091 = vmatprep.subr.mxu0 0.0
    %2092 = vmatpush1.msra.mxu0 0.0
    %2093 = vmatprep.subr.mxu0 0.0
    %2094 = vmatpush1.msra.mxu0 0.0
    %2095 = vmatprep.subr.mxu0 0.0
    %2096 = vmatpush1.msra.mxu0 0.0
    %2097 = vmatprep.subr.mxu0 0.0
    %2098 = vmatpush1.msra.mxu0 0.0
    %2099 = vmatprep.subr.mxu0 0.0
    %2100 = vmatpush1.msra.mxu0 0.0
    %2101 = vmatprep.subr.mxu0 0.0
    %2102 = vmatpush1.msra.mxu0 0.0
    %2103 = vmatprep.subr.mxu0 0.0
    %2104 = vmatpush1.msra.mxu0 0.0
    %2105 = vmatprep.subr.mxu0 0.0
    %2106 = vmatpush1.msra.mxu0 0.0
    %2107 = vmatprep.subr.mxu0 0.0
    %2108 = vmatpush1.msra.mxu0 0.0
    %2109 = vmatprep.subr.mxu0 0.0
    %2110 = vmatpush1.msra.mxu0 0.0
    %2111 = vmatprep.subr.mxu0 0.0
    %2112 = vmatpush1.msra.mxu0 0.0
    %2113 = vmatprep.subr.mxu0 0.0
    %2114 = vmatpush1.msra.mxu0 0.0
    %2115 = vmatprep.subr.mxu0 0.0
    %2116 = vmatpush1.msra.mxu0 0.0
    %2117 = vmatprep.mubr.f32.mxu0 0.0
    %2118 = vmatmul.mubr.f32.gmra.mrb[0].mxu0 %v1981
    %v2119 = vpop.f32.mrb[0].mxu0
    %v2120 = vadd.f32 0.0, %v2119
    %v2121 = vpop.f32.mrb[0].mxu0
    %2122 = vdwg.mxu0
    %2123 = vmatprep.subr.mxu0 0.0
    %2124 = vmatpush1.msra.mxu0 %v41
    %2125 = vmatprep.subr.mxu0 0.0
    %2126 = vmatpush1.msra.mxu0 %v42
    %2127 = vmatprep.subr.mxu0 0.0
    %2128 = vmatpush1.msra.mxu0 %v43
    %2129 = vmatprep.subr.mxu0 0.0
    %2130 = vmatpush1.msra.mxu0 %v44
    %2131 = vmatprep.subr.mxu0 0.0
    %2132 = vmatpush1.msra.mxu0 0.0
    %2133 = vmatprep.subr.mxu0 0.0
    %2134 = vmatpush1.msra.mxu0 0.0
    %2135 = vmatprep.subr.mxu0 0.0
    %2136 = vmatpush1.msra.mxu0 0.0
    %2137 = vmatprep.subr.mxu0 0.0
    %2138 = vmatpush1.msra.mxu0 0.0
    %2139 = vmatprep.subr.mxu0 0.0
    %2140 = vmatpush1.msra.mxu0 0.0
    %2141 = vmatprep.subr.mxu0 0.0
    %2142 = vmatpush1.msra.mxu0 0.0
    %2143 = vmatprep.subr.mxu0 0.0
    %2144 = vmatpush1.msra.mxu0 0.0
    %2145 = vmatprep.subr.mxu0 0.0
    %2146 = vmatpush1.msra.mxu0 0.0
    %2147 = vmatprep.subr.mxu0 0.0
    %2148 = vmatpush1.msra.mxu0 0.0
    %2149 = vmatprep.subr.mxu0 0.0
    %2150 = vmatpush1.msra.mxu0 0.0
    %2151 = vmatprep.subr.mxu0 0.0
    %2152 = vmatpush1.msra.mxu0 0.0
    %2153 = vmatprep.subr.mxu0 0.0
    %2154 = vmatpush1.msra.mxu0 0.0
    %2155 = vmatprep.subr.mxu0 0.0
    %2156 = vmatpush1.msra.mxu0 0.0
    %2157 = vmatprep.subr.mxu0 0.0
    %2158 = vmatpush1.msra.mxu0 0.0
    %2159 = vmatprep.subr.mxu0 0.0
    %2160 = vmatpush1.msra.mxu0 0.0
    %2161 = vmatprep.subr.mxu0 0.0
    %2162 = vmatpush1.msra.mxu0 0.0
    %2163 = vmatprep.subr.mxu0 0.0
    %2164 = vmatpush1.msra.mxu0 0.0
    %2165 = vmatprep.subr.mxu0 0.0
    %2166 = vmatpush1.msra.mxu0 0.0
    %2167 = vmatprep.subr.mxu0 0.0
    %2168 = vmatpush1.msra.mxu0 0.0
    %2169 = vmatprep.subr.mxu0 0.0
    %2170 = vmatpush1.msra.mxu0 0.0
    %2171 = vmatprep.subr.mxu0 0.0
    %2172 = vmatpush1.msra.mxu0 0.0
    %2173 = vmatprep.subr.mxu0 0.0
    %2174 = vmatpush1.msra.mxu0 0.0
    %2175 = vmatprep.subr.mxu0 0.0
    %2176 = vmatpush1.msra.mxu0 0.0
    %2177 = vmatprep.subr.mxu0 0.0
    %2178 = vmatpush1.msra.mxu0 0.0
    %2179 = vmatprep.subr.mxu0 0.0
    %2180 = vmatpush1.msra.mxu0 0.0
    %2181 = vmatprep.subr.mxu0 0.0
    %2182 = vmatpush1.msra.mxu0 0.0
    %2183 = vmatprep.subr.mxu0 0.0
    %2184 = vmatpush1.msra.mxu0 0.0
    %2185 = vmatprep.subr.mxu0 0.0
    %2186 = vmatpush1.msra.mxu0 0.0
    %2187 = vmatprep.mubr.f32.mxu0 0.0
    %2188 = vmatmul.mubr.f32.gmra.mrb[0].mxu0 %v1981
    %v2189 = vpop.f32.mrb[0].mxu0
    %v2190 = vadd.f32 0.0, %v2189
    %v2191 = vpop.f32.mrb[0].mxu0
    %2192 = vdwg.mxu0
    %2193 = vmatprep.subr.mxu0 0.0
    %2194 = vmatpush1.msra.mxu0 %v45
    %2195 = vmatprep.subr.mxu0 0.0
    %2196 = vmatpush1.msra.mxu0 %v46
    %2197 = vmatprep.subr.mxu0 0.0
    %2198 = vmatpush1.msra.mxu0 %v47
    %2199 = vmatprep.subr.mxu0 0.0
    %2200 = vmatpush1.msra.mxu0 %v48
    %2201 = vmatprep.subr.mxu0 0.0
    %2202 = vmatpush1.msra.mxu0 0.0
    %2203 = vmatprep.subr.mxu0 0.0
    %2204 = vmatpush1.msra.mxu0 0.0
    %2205 = vmatprep.subr.mxu0 0.0
    %2206 = vmatpush1.msra.mxu0 0.0
    %2207 = vmatprep.subr.mxu0 0.0
    %2208 = vmatpush1.msra.mxu0 0.0
    %2209 = vmatprep.subr.mxu0 0.0
    %2210 = vmatpush1.msra.mxu0 0.0
    %2211 = vmatprep.subr.mxu0 0.0
    %2212 = vmatpush1.msra.mxu0 0.0
    %2213 = vmatprep.subr.mxu0 0.0
    %2214 = vmatpush1.msra.mxu0 0.0
    %2215 = vmatprep.subr.mxu0 0.0
    %2216 = vmatpush1.msra.mxu0 0.0
    %2217 = vmatprep.subr.mxu0 0.0
    %2218 = vmatpush1.msra.mxu0 0.0
    %2219 = vmatprep.subr.mxu0 0.0
    %2220 = vmatpush1.msra.mxu0 0.0
    %2221 = vmatprep.subr.mxu0 0.0
    %2222 = vmatpush1.msra.mxu0 0.0
    %2223 = vmatprep.subr.mxu0 0.0
    %2224 = vmatpush1.msra.mxu0 0.0
    %2225 = vmatprep.subr.mxu0 0.0
    %2226 = vmatpush1.msra.mxu0 0.0
    %2227 = vmatprep.subr.mxu0 0.0
    %2228 = vmatpush1.msra.mxu0 0.0
    %2229 = vmatprep.subr.mxu0 0.0
    %2230 = vmatpush1.msra.mxu0 0.0
    %2231 = vmatprep.subr.mxu0 0.0
    %2232 = vmatpush1.msra.mxu0 0.0
    %2233 = vmatprep.subr.mxu0 0.0
    %2234 = vmatpush1.msra.mxu0 0.0
    %2235 = vmatprep.subr.mxu0 0.0
    %2236 = vmatpush1.msra.mxu0 0.0
    %2237 = vmatprep.subr.mxu0 0.0
    %2238 = vmatpush1.msra.mxu0 0.0
    %2239 = vmatprep.subr.mxu0 0.0
    %2240 = vmatpush1.msra.mxu0 0.0
    %2241 = vmatprep.subr.mxu0 0.0
    %2242 = vmatpush1.msra.mxu0 0.0
    %2243 = vmatprep.subr.mxu0 0.0
    %2244 = vmatpush1.msra.mxu0 0.0
    %2245 = vmatprep.subr.mxu0 0.0
    %2246 = vmatpush1.msra.mxu0 0.0
    %2247 = vmatprep.subr.mxu0 0.0
    %2248 = vmatpush1.msra.mxu0 0.0
    %2249 = vmatprep.subr.mxu0 0.0
    %2250 = vmatpush1.msra.mxu0 0.0
    %2251 = vmatprep.subr.mxu0 0.0
    %2252 = vmatpush1.msra.mxu0 0.0
    %2253 = vmatprep.subr.mxu0 0.0
    %2254 = vmatpush1.msra.mxu0 0.0
    %2255 = vmatprep.subr.mxu0 0.0
    %2256 = vmatpush1.msra.mxu0 0.0
    %2257 = vmatprep.mubr.f32.mxu0 0.0
    %2258 = vmatmul.mubr.f32.gmra.mrb[0].mxu0 %v1981
    %v2259 = vpop.f32.mrb[0].mxu0
    %v2260 = vadd.f32 0.0, %v2259
    %v2261 = vpop.f32.mrb[0].mxu0
    %2262 = vdwg.mxu0
    %v2264 = vsel %vm91, %v1978, 0
    %v2267 = vsel %vm91, %v1979, 0
    %2269 = vmatprep.subr.mxu0 0.0
    %2270 = vmatpush1.msra.mxu0 %v49
    %2271 = vmatprep.subr.mxu0 0.0
    %2272 = vmatpush1.msra.mxu0 %v50
    %2273 = vmatprep.subr.mxu0 0.0
    %2274 = vmatpush1.msra.mxu0 %v51
    %2275 = vmatprep.subr.mxu0 0.0
    %2276 = vmatpush1.msra.mxu0 %v52
    %2277 = vmatprep.subr.mxu0 0.0
    %2278 = vmatpush1.msra.mxu0 0.0
    %2279 = vmatprep.subr.mxu0 0.0
    %2280 = vmatpush1.msra.mxu0 0.0
    %2281 = vmatprep.subr.mxu0 0.0
    %2282 = vmatpush1.msra.mxu0 0.0
    %2283 = vmatprep.subr.mxu0 0.0
    %2284 = vmatpush1.msra.mxu0 0.0
    %2285 = vmatprep.subr.mxu0 0.0
    %2286 = vmatpush1.msra.mxu0 0.0
    %2287 = vmatprep.subr.mxu0 0.0
    %2288 = vmatpush1.msra.mxu0 0.0
    %2289 = vmatprep.subr.mxu0 0.0
    %2290 = vmatpush1.msra.mxu0 0.0
    %2291 = vmatprep.subr.mxu0 0.0
    %2292 = vmatpush1.msra.mxu0 0.0
    %2293 = vmatprep.subr.mxu0 0.0
    %2294 = vmatpush1.msra.mxu0 0.0
    %2295 = vmatprep.subr.mxu0 0.0
    %2296 = vmatpush1.msra.mxu0 0.0
    %2297 = vmatprep.subr.mxu0 0.0
    %2298 = vmatpush1.msra.mxu0 0.0
    %2299 = vmatprep.subr.mxu0 0.0
    %2300 = vmatpush1.msra.mxu0 0.0
    %2301 = vmatprep.subr.mxu0 0.0
    %2302 = vmatpush1.msra.mxu0 0.0
    %2303 = vmatprep.subr.mxu0 0.0
    %2304 = vmatpush1.msra.mxu0 0.0
    %2305 = vmatprep.subr.mxu0 0.0
    %2306 = vmatpush1.msra.mxu0 0.0
    %2307 = vmatprep.subr.mxu0 0.0
    %2308 = vmatpush1.msra.mxu0 0.0
    %2309 = vmatprep.subr.mxu0 0.0
    %2310 = vmatpush1.msra.mxu0 0.0
    %2311 = vmatprep.subr.mxu0 0.0
    %2312 = vmatpush1.msra.mxu0 0.0
    %2313 = vmatprep.subr.mxu0 0.0
    %2314 = vmatpush1.msra.mxu0 0.0
    %2315 = vmatprep.subr.mxu0 0.0
    %2316 = vmatpush1.msra.mxu0 0.0
    %2317 = vmatprep.subr.mxu0 0.0
    %2318 = vmatpush1.msra.mxu0 0.0
    %2319 = vmatprep.subr.mxu0 0.0
    %2320 = vmatpush1.msra.mxu0 0.0
    %2321 = vmatprep.subr.mxu0 0.0
    %2322 = vmatpush1.msra.mxu0 0.0
    %2323 = vmatprep.subr.mxu0 0.0
    %2324 = vmatpush1.msra.mxu0 0.0
    %2325 = vmatprep.subr.mxu0 0.0
    %2326 = vmatpush1.msra.mxu0 0.0
    %2327 = vmatprep.subr.mxu0 0.0
    %2328 = vmatpush1.msra.mxu0 0.0
    %2329 = vmatprep.subr.mxu0 0.0
    %2330 = vmatpush1.msra.mxu0 0.0
    %2331 = vmatprep.subr.mxu0 0.0
    %2332 = vmatpush1.msra.mxu0 0.0
    %2333 = vmatprep.mubr.f32.mxu0 0.0
    %2334 = vmatmul.mubr.f32.gmra.mrb[0].mxu0 %v2264
    %v2335 = vpop.f32.mrb[0].mxu0
    %v2336 = vadd.f32 0.0, %v2335
    %v2337 = vpop.f32.mrb[0].mxu0
    %2338 = vmatprep.mubr.f32.mxu0 0.0
    %2339 = vmatmul.mubr.f32.gmra.mrb[0].mxu0 %v2267
    %v2340 = vpop.f32.mrb[0].mxu0
    %v2341 = vadd.f32 0.0, %v2340
    %v2342 = vpop.f32.mrb[0].mxu0
    %2343 = vdwg.mxu0
    %2344 = vmatprep.subr.mxu0 0.0
    %2345 = vmatpush1.msra.mxu0 %v53
    %2346 = vmatprep.subr.mxu0 0.0
    %2347 = vmatpush1.msra.mxu0 %v54
    %2348 = vmatprep.subr.mxu0 0.0
    %2349 = vmatpush1.msra.mxu0 %v55
    %2350 = vmatprep.subr.mxu0 0.0
    %2351 = vmatpush1.msra.mxu0 %v56
    %2352 = vmatprep.subr.mxu0 0.0
    %2353 = vmatpush1.msra.mxu0 0.0
    %2354 = vmatprep.subr.mxu0 0.0
    %2355 = vmatpush1.msra.mxu0 0.0
    %2356 = vmatprep.subr.mxu0 0.0
    %2357 = vmatpush1.msra.mxu0 0.0
    %2358 = vmatprep.subr.mxu0 0.0
    %2359 = vmatpush1.msra.mxu0 0.0
    %2360 = vmatprep.subr.mxu0 0.0
    %2361 = vmatpush1.msra.mxu0 0.0
    %2362 = vmatprep.subr.mxu0 0.0
    %2363 = vmatpush1.msra.mxu0 0.0
    %2364 = vmatprep.subr.mxu0 0.0
    %2365 = vmatpush1.msra.mxu0 0.0
    %2366 = vmatprep.subr.mxu0 0.0
    %2367 = vmatpush1.msra.mxu0 0.0
    %2368 = vmatprep.subr.mxu0 0.0
    %2369 = vmatpush1.msra.mxu0 0.0
    %2370 = vmatprep.subr.mxu0 0.0
    %2371 = vmatpush1.msra.mxu0 0.0
    %2372 = vmatprep.subr.mxu0 0.0
    %2373 = vmatpush1.msra.mxu0 0.0
    %2374 = vmatprep.subr.mxu0 0.0
    %2375 = vmatpush1.msra.mxu0 0.0
    %2376 = vmatprep.subr.mxu0 0.0
    %2377 = vmatpush1.msra.mxu0 0.0
    %2378 = vmatprep.subr.mxu0 0.0
    %2379 = vmatpush1.msra.mxu0 0.0
    %2380 = vmatprep.subr.mxu0 0.0
    %2381 = vmatpush1.msra.mxu0 0.0
    %2382 = vmatprep.subr.mxu0 0.0
    %2383 = vmatpush1.msra.mxu0 0.0
    %2384 = vmatprep.subr.mxu0 0.0
    %2385 = vmatpush1.msra.mxu0 0.0
    %2386 = vmatprep.subr.mxu0 0.0
    %2387 = vmatpush1.msra.mxu0 0.0
    %2388 = vmatprep.subr.mxu0 0.0
    %2389 = vmatpush1.msra.mxu0 0.0
    %2390 = vmatprep.subr.mxu0 0.0
    %2391 = vmatpush1.msra.mxu0 0.0
    %2392 = vmatprep.subr.mxu0 0.0
    %2393 = vmatpush1.msra.mxu0 0.0
    %2394 = vmatprep.subr.mxu0 0.0
    %2395 = vmatpush1.msra.mxu0 0.0
    %2396 = vmatprep.subr.mxu0 0.0
    %2397 = vmatpush1.msra.mxu0 0.0
    %2398 = vmatprep.subr.mxu0 0.0
    %2399 = vmatpush1.msra.mxu0 0.0
    %2400 = vmatprep.subr.mxu0 0.0
    %2401 = vmatpush1.msra.mxu0 0.0
    %2402 = vmatprep.subr.mxu0 0.0
    %2403 = vmatpush1.msra.mxu0 0.0
    %2404 = vmatprep.subr.mxu0 0.0
    %2405 = vmatpush1.msra.mxu0 0.0
    %2406 = vmatprep.subr.mxu0 0.0
    %2407 = vmatpush1.msra.mxu0 0.0
    %2408 = vmatprep.mubr.f32.mxu0 0.0
    %2409 = vmatmul.mubr.f32.gmra.mrb[0].mxu0 %v2264
    %v2410 = vpop.f32.mrb[0].mxu0
    %v2411 = vadd.f32 0.0, %v2410
    %v2412 = vpop.f32.mrb[0].mxu0
    %2413 = vmatprep.mubr.f32.mxu0 0.0
    %2414 = vmatmul.mubr.f32.gmra.mrb[0].mxu0 %v2267
    %v2415 = vpop.f32.mrb[0].mxu0
    %v2416 = vadd.f32 0.0, %v2415
    %v2417 = vpop.f32.mrb[0].mxu0
    %2418 = vdwg.mxu0
    %2419 = vmatprep.subr.mxu0 0.0
    %2420 = vmatpush1.msra.mxu0 %v57
    %2421 = vmatprep.subr.mxu0 0.0
    %2422 = vmatpush1.msra.mxu0 %v58
    %2423 = vmatprep.subr.mxu0 0.0
    %2424 = vmatpush1.msra.mxu0 %v59
    %2425 = vmatprep.subr.mxu0 0.0
    %2426 = vmatpush1.msra.mxu0 %v60
    %2427 = vmatprep.subr.mxu0 0.0
    %2428 = vmatpush1.msra.mxu0 0.0
    %2429 = vmatprep.subr.mxu0 0.0
    %2430 = vmatpush1.msra.mxu0 0.0
    %2431 = vmatprep.subr.mxu0 0.0
    %2432 = vmatpush1.msra.mxu0 0.0
    %2433 = vmatprep.subr.mxu0 0.0
    %2434 = vmatpush1.msra.mxu0 0.0
    %2435 = vmatprep.subr.mxu0 0.0
    %2436 = vmatpush1.msra.mxu0 0.0
    %2437 = vmatprep.subr.mxu0 0.0
    %2438 = vmatpush1.msra.mxu0 0.0
    %2439 = vmatprep.subr.mxu0 0.0
    %2440 = vmatpush1.msra.mxu0 0.0
    %2441 = vmatprep.subr.mxu0 0.0
    %2442 = vmatpush1.msra.mxu0 0.0
    %2443 = vmatprep.subr.mxu0 0.0
    %2444 = vmatpush1.msra.mxu0 0.0
    %2445 = vmatprep.subr.mxu0 0.0
    %2446 = vmatpush1.msra.mxu0 0.0
    %2447 = vmatprep.subr.mxu0 0.0
    %2448 = vmatpush1.msra.mxu0 0.0
    %2449 = vmatprep.subr.mxu0 0.0
    %2450 = vmatpush1.msra.mxu0 0.0
    %2451 = vmatprep.subr.mxu0 0.0
    %2452 = vmatpush1.msra.mxu0 0.0
    %2453 = vmatprep.subr.mxu0 0.0
    %2454 = vmatpush1.msra.mxu0 0.0
    %2455 = vmatprep.subr.mxu0 0.0
    %2456 = vmatpush1.msra.mxu0 0.0
    %2457 = vmatprep.subr.mxu0 0.0
    %2458 = vmatpush1.msra.mxu0 0.0
    %2459 = vmatprep.subr.mxu0 0.0
    %2460 = vmatpush1.msra.mxu0 0.0
    %2461 = vmatprep.subr.mxu0 0.0
    %2462 = vmatpush1.msra.mxu0 0.0
    %2463 = vmatprep.subr.mxu0 0.0
    %2464 = vmatpush1.msra.mxu0 0.0
    %2465 = vmatprep.subr.mxu0 0.0
    %2466 = vmatpush1.msra.mxu0 0.0
    %2467 = vmatprep.subr.mxu0 0.0
    %2468 = vmatpush1.msra.mxu0 0.0
    %2469 = vmatprep.subr.mxu0 0.0
    %2470 = vmatpush1.msra.mxu0 0.0
    %2471 = vmatprep.subr.mxu0 0.0
    %2472 = vmatpush1.msra.mxu0 0.0
    %2473 = vmatprep.subr.mxu0 0.0
    %2474 = vmatpush1.msra.mxu0 0.0
    %2475 = vmatprep.subr.mxu0 0.0
    %2476 = vmatpush1.msra.mxu0 0.0
    %2477 = vmatprep.subr.mxu0 0.0
    %2478 = vmatpush1.msra.mxu0 0.0
    %2479 = vmatprep.subr.mxu0 0.0
    %2480 = vmatpush1.msra.mxu0 0.0
    %2481 = vmatprep.subr.mxu0 0.0
    %2482 = vmatpush1.msra.mxu0 0.0
    %2483 = vmatprep.mubr.f32.mxu0 0.0
    %2484 = vmatmul.mubr.f32.gmra.mrb[0].mxu0 %v2264
    %v2485 = vpop.f32.mrb[0].mxu0
    %v2486 = vadd.f32 0.0, %v2485
    %v2487 = vpop.f32.mrb[0].mxu0
    %2488 = vmatprep.mubr.f32.mxu0 0.0
    %2489 = vmatmul.mubr.f32.gmra.mrb[0].mxu0 %v2267
    %v2490 = vpop.f32.mrb[0].mxu0
    %v2491 = vadd.f32 0.0, %v2490
    %v2492 = vpop.f32.mrb[0].mxu0
    %2493 = vdwg.mxu0
    %2494 = vmatprep.subr.mxu0 0.0
    %2495 = vmatpush1.msra.mxu0 %v61
    %2496 = vmatprep.subr.mxu0 0.0
    %2497 = vmatpush1.msra.mxu0 %v62
    %2498 = vmatprep.subr.mxu0 0.0
    %2499 = vmatpush1.msra.mxu0 %v63
    %2500 = vmatprep.subr.mxu0 0.0
    %2501 = vmatpush1.msra.mxu0 %v64
    %2502 = vmatprep.subr.mxu0 0.0
    %2503 = vmatpush1.msra.mxu0 0.0
    %2504 = vmatprep.subr.mxu0 0.0
    %2505 = vmatpush1.msra.mxu0 0.0
    %2506 = vmatprep.subr.mxu0 0.0
    %2507 = vmatpush1.msra.mxu0 0.0
    %2508 = vmatprep.subr.mxu0 0.0
    %2509 = vmatpush1.msra.mxu0 0.0
    %2510 = vmatprep.subr.mxu0 0.0
    %2511 = vmatpush1.msra.mxu0 0.0
    %2512 = vmatprep.subr.mxu0 0.0
    %2513 = vmatpush1.msra.mxu0 0.0
    %2514 = vmatprep.subr.mxu0 0.0
    %2515 = vmatpush1.msra.mxu0 0.0
    %2516 = vmatprep.subr.mxu0 0.0
    %2517 = vmatpush1.msra.mxu0 0.0
    %2518 = vmatprep.subr.mxu0 0.0
    %2519 = vmatpush1.msra.mxu0 0.0
    %2520 = vmatprep.subr.mxu0 0.0
    %2521 = vmatpush1.msra.mxu0 0.0
    %2522 = vmatprep.subr.mxu0 0.0
    %2523 = vmatpush1.msra.mxu0 0.0
    %2524 = vmatprep.subr.mxu0 0.0
    %2525 = vmatpush1.msra.mxu0 0.0
    %2526 = vmatprep.subr.mxu0 0.0
    %2527 = vmatpush1.msra.mxu0 0.0
    %2528 = vmatprep.subr.mxu0 0.0
    %2529 = vmatpush1.msra.mxu0 0.0
    %2530 = vmatprep.subr.mxu0 0.0
    %2531 = vmatpush1.msra.mxu0 0.0
    %2532 = vmatprep.subr.mxu0 0.0
    %2533 = vmatpush1.msra.mxu0 0.0
    %2534 = vmatprep.subr.mxu0 0.0
    %2535 = vmatpush1.msra.mxu0 0.0
    %2536 = vmatprep.subr.mxu0 0.0
    %2537 = vmatpush1.msra.mxu0 0.0
    %2538 = vmatprep.subr.mxu0 0.0
    %2539 = vmatpush1.msra.mxu0 0.0
    %2540 = vmatprep.subr.mxu0 0.0
    %2541 = vmatpush1.msra.mxu0 0.0
    %2542 = vmatprep.subr.mxu0 0.0
    %2543 = vmatpush1.msra.mxu0 0.0
    %2544 = vmatprep.subr.mxu0 0.0
    %2545 = vmatpush1.msra.mxu0 0.0
    %2546 = vmatprep.subr.mxu0 0.0
    %2547 = vmatpush1.msra.mxu0 0.0
    %2548 = vmatprep.subr.mxu0 0.0
    %2549 = vmatpush1.msra.mxu0 0.0
    %2550 = vmatprep.subr.mxu0 0.0
    %2551 = vmatpush1.msra.mxu0 0.0
    %2552 = vmatprep.subr.mxu0 0.0
    %2553 = vmatpush1.msra.mxu0 0.0
    %2554 = vmatprep.subr.mxu0 0.0
    %2555 = vmatpush1.msra.mxu0 0.0
    %2556 = vmatprep.subr.mxu0 0.0
    %2557 = vmatpush1.msra.mxu0 0.0
    %2558 = vmatprep.mubr.f32.mxu0 0.0
    %2559 = vmatmul.mubr.f32.gmra.mrb[0].mxu0 %v2264
    %v2560 = vpop.f32.mrb[0].mxu0
    %v2561 = vadd.f32 0.0, %v2560
    %v2562 = vpop.f32.mrb[0].mxu0
    %2563 = vmatprep.mubr.f32.mxu0 0.0
    %2564 = vmatmul.mubr.f32.gmra.mrb[0].mxu0 %v2267
    %v2565 = vpop.f32.mrb[0].mxu0
    %v2566 = vadd.f32 0.0, %v2565
    %v2567 = vpop.f32.mrb[0].mxu0
    %2568 = vdwg.mxu0
    %2569 = vmatprep.subr.mxu0 0.0
    %2570 = vmatpush1.msra.mxu0 %v65
    %2571 = vmatprep.subr.mxu0 0.0
    %2572 = vmatpush1.msra.mxu0 %v66
    %2573 = vmatprep.subr.mxu0 0.0
    %2574 = vmatpush1.msra.mxu0 %v67
    %2575 = vmatprep.subr.mxu0 0.0
    %2576 = vmatpush1.msra.mxu0 %v68
    %2577 = vmatprep.subr.mxu0 0.0
    %2578 = vmatpush1.msra.mxu0 0.0
    %2579 = vmatprep.subr.mxu0 0.0
    %2580 = vmatpush1.msra.mxu0 0.0
    %2581 = vmatprep.subr.mxu0 0.0
    %2582 = vmatpush1.msra.mxu0 0.0
    %2583 = vmatprep.subr.mxu0 0.0
    %2584 = vmatpush1.msra.mxu0 0.0
    %2585 = vmatprep.subr.mxu0 0.0
    %2586 = vmatpush1.msra.mxu0 0.0
    %2587 = vmatprep.subr.mxu0 0.0
    %2588 = vmatpush1.msra.mxu0 0.0
    %2589 = vmatprep.subr.mxu0 0.0
    %2590 = vmatpush1.msra.mxu0 0.0
    %2591 = vmatprep.subr.mxu0 0.0
    %2592 = vmatpush1.msra.mxu0 0.0
    %2593 = vmatprep.subr.mxu0 0.0
    %2594 = vmatpush1.msra.mxu0 0.0
    %2595 = vmatprep.subr.mxu0 0.0
    %2596 = vmatpush1.msra.mxu0 0.0
    %2597 = vmatprep.subr.mxu0 0.0
    %2598 = vmatpush1.msra.mxu0 0.0
    %2599 = vmatprep.subr.mxu0 0.0
    %2600 = vmatpush1.msra.mxu0 0.0
    %2601 = vmatprep.subr.mxu0 0.0
    %2602 = vmatpush1.msra.mxu0 0.0
    %2603 = vmatprep.subr.mxu0 0.0
    %2604 = vmatpush1.msra.mxu0 0.0
    %2605 = vmatprep.subr.mxu0 0.0
    %2606 = vmatpush1.msra.mxu0 0.0
    %2607 = vmatprep.subr.mxu0 0.0
    %2608 = vmatpush1.msra.mxu0 0.0
    %2609 = vmatprep.subr.mxu0 0.0
    %2610 = vmatpush1.msra.mxu0 0.0
    %2611 = vmatprep.subr.mxu0 0.0
    %2612 = vmatpush1.msra.mxu0 0.0
    %2613 = vmatprep.subr.mxu0 0.0
    %2614 = vmatpush1.msra.mxu0 0.0
    %2615 = vmatprep.subr.mxu0 0.0
    %2616 = vmatpush1.msra.mxu0 0.0
    %2617 = vmatprep.subr.mxu0 0.0
    %2618 = vmatpush1.msra.mxu0 0.0
    %2619 = vmatprep.subr.mxu0 0.0
    %2620 = vmatpush1.msra.mxu0 0.0
    %2621 = vmatprep.subr.mxu0 0.0
    %2622 = vmatpush1.msra.mxu0 0.0
    %2623 = vmatprep.subr.mxu0 0.0
    %2624 = vmatpush1.msra.mxu0 0.0
    %2625 = vmatprep.subr.mxu0 0.0
    %2626 = vmatpush1.msra.mxu0 0.0
    %2627 = vmatprep.subr.mxu0 0.0
    %2628 = vmatpush1.msra.mxu0 0.0
    %2629 = vmatprep.subr.mxu0 0.0
    %2630 = vmatpush1.msra.mxu0 0.0
    %2631 = vmatprep.subr.mxu0 0.0
    %2632 = vmatpush1.msra.mxu0 0.0
    %2633 = vmatprep.mubr.f32.mxu0 0.0
    %2634 = vmatmul.mubr.f32.gmra.mrb[0].mxu0 %v2264
    %v2635 = vpop.f32.mrb[0].mxu0
    %v2636 = vadd.f32 0.0, %v2635
    %v2637 = vpop.f32.mrb[0].mxu0
    %2638 = vmatprep.mubr.f32.mxu0 0.0
    %2639 = vmatmul.mubr.f32.gmra.mrb[0].mxu0 %v2267
    %v2640 = vpop.f32.mrb[0].mxu0
    %v2641 = vadd.f32 0.0, %v2640
    %v2642 = vpop.f32.mrb[0].mxu0
    %2643 = vdwg.mxu0
    %2644 = vmatprep.subr.mxu0 0.0
    %2645 = vmatpush1.msra.mxu0 %v69
    %2646 = vmatprep.subr.mxu0 0.0
    %2647 = vmatpush1.msra.mxu0 %v70
    %2648 = vmatprep.subr.mxu0 0.0
    %2649 = vmatpush1.msra.mxu0 %v71
    %2650 = vmatprep.subr.mxu0 0.0
    %2651 = vmatpush1.msra.mxu0 %v72
    %2652 = vmatprep.subr.mxu0 0.0
    %2653 = vmatpush1.msra.mxu0 0.0
    %2654 = vmatprep.subr.mxu0 0.0
    %2655 = vmatpush1.msra.mxu0 0.0
    %2656 = vmatprep.subr.mxu0 0.0
    %2657 = vmatpush1.msra.mxu0 0.0
    %2658 = vmatprep.subr.mxu0 0.0
    %2659 = vmatpush1.msra.mxu0 0.0
    %2660 = vmatprep.subr.mxu0 0.0
    %2661 = vmatpush1.msra.mxu0 0.0
    %2662 = vmatprep.subr.mxu0 0.0
    %2663 = vmatpush1.msra.mxu0 0.0
    %2664 = vmatprep.subr.mxu0 0.0
    %2665 = vmatpush1.msra.mxu0 0.0
    %2666 = vmatprep.subr.mxu0 0.0
    %2667 = vmatpush1.msra.mxu0 0.0
    %2668 = vmatprep.subr.mxu0 0.0
    %2669 = vmatpush1.msra.mxu0 0.0
    %2670 = vmatprep.subr.mxu0 0.0
    %2671 = vmatpush1.msra.mxu0 0.0
    %2672 = vmatprep.subr.mxu0 0.0
    %2673 = vmatpush1.msra.mxu0 0.0
    %2674 = vmatprep.subr.mxu0 0.0
    %2675 = vmatpush1.msra.mxu0 0.0
    %2676 = vmatprep.subr.mxu0 0.0
    %2677 = vmatpush1.msra.mxu0 0.0
    %2678 = vmatprep.subr.mxu0 0.0
    %2679 = vmatpush1.msra.mxu0 0.0
    %2680 = vmatprep.subr.mxu0 0.0
    %2681 = vmatpush1.msra.mxu0 0.0
    %2682 = vmatprep.subr.mxu0 0.0
    %2683 = vmatpush1.msra.mxu0 0.0
    %2684 = vmatprep.subr.mxu0 0.0
    %2685 = vmatpush1.msra.mxu0 0.0
    %2686 = vmatprep.subr.mxu0 0.0
    %2687 = vmatpush1.msra.mxu0 0.0
    %2688 = vmatprep.subr.mxu0 0.0
    %2689 = vmatpush1.msra.mxu0 0.0
    %2690 = vmatprep.subr.mxu0 0.0
    %2691 = vmatpush1.msra.mxu0 0.0
    %2692 = vmatprep.subr.mxu0 0.0
    %2693 = vmatpush1.msra.mxu0 0.0
    %2694 = vmatprep.subr.mxu0 0.0
    %2695 = vmatpush1.msra.mxu0 0.0
    %2696 = vmatprep.subr.mxu0 0.0
    %2697 = vmatpush1.msra.mxu0 0.0
    %2698 = vmatprep.subr.mxu0 0.0
    %2699 = vmatpush1.msra.mxu0 0.0
    %2700 = vmatprep.subr.mxu0 0.0
    %2701 = vmatpush1.msra.mxu0 0.0
    %2702 = vmatprep.subr.mxu0 0.0
    %2703 = vmatpush1.msra.mxu0 0.0
    %2704 = vmatprep.subr.mxu0 0.0
    %2705 = vmatpush1.msra.mxu0 0.0
    %2706 = vmatprep.subr.mxu0 0.0
    %2707 = vmatpush1.msra.mxu0 0.0
    %2708 = vmatprep.mubr.f32.mxu0 0.0
    %2709 = vmatmul.mubr.f32.gmra.mrb[0].mxu0 %v2264
    %v2710 = vpop.f32.mrb[0].mxu0
    %v2711 = vadd.f32 0.0, %v2710
    %v2712 = vpop.f32.mrb[0].mxu0
    %2713 = vmatprep.mubr.f32.mxu0 0.0
    %2714 = vmatmul.mubr.f32.gmra.mrb[0].mxu0 %v2267
    %v2715 = vpop.f32.mrb[0].mxu0
    %v2716 = vadd.f32 0.0, %v2715
    %v2717 = vpop.f32.mrb[0].mxu0
    %2718 = vdwg.mxu0
    %2719 = vmatprep.subr.mxu0 0.0
    %2720 = vmatpush1.msra.mxu0 %v73
    %2721 = vmatprep.subr.mxu0 0.0
    %2722 = vmatpush1.msra.mxu0 %v74
    %2723 = vmatprep.subr.mxu0 0.0
    %2724 = vmatpush1.msra.mxu0 %v75
    %2725 = vmatprep.subr.mxu0 0.0
    %2726 = vmatpush1.msra.mxu0 %v76
    %2727 = vmatprep.subr.mxu0 0.0
    %2728 = vmatpush1.msra.mxu0 0.0
    %2729 = vmatprep.subr.mxu0 0.0
    %2730 = vmatpush1.msra.mxu0 0.0
    %2731 = vmatprep.subr.mxu0 0.0
    %2732 = vmatpush1.msra.mxu0 0.0
    %2733 = vmatprep.subr.mxu0 0.0
    %2734 = vmatpush1.msra.mxu0 0.0
    %2735 = vmatprep.subr.mxu0 0.0
    %2736 = vmatpush1.msra.mxu0 0.0
    %2737 = vmatprep.subr.mxu0 0.0
    %2738 = vmatpush1.msra.mxu0 0.0
    %2739 = vmatprep.subr.mxu0 0.0
    %2740 = vmatpush1.msra.mxu0 0.0
    %2741 = vmatprep.subr.mxu0 0.0
    %2742 = vmatpush1.msra.mxu0 0.0
    %2743 = vmatprep.subr.mxu0 0.0
    %2744 = vmatpush1.msra.mxu0 0.0
    %2745 = vmatprep.subr.mxu0 0.0
    %2746 = vmatpush1.msra.mxu0 0.0
    %2747 = vmatprep.subr.mxu0 0.0
    %2748 = vmatpush1.msra.mxu0 0.0
    %2749 = vmatprep.subr.mxu0 0.0
    %2750 = vmatpush1.msra.mxu0 0.0
    %2751 = vmatprep.subr.mxu0 0.0
    %2752 = vmatpush1.msra.mxu0 0.0
    %2753 = vmatprep.subr.mxu0 0.0
    %2754 = vmatpush1.msra.mxu0 0.0
    %2755 = vmatprep.subr.mxu0 0.0
    %2756 = vmatpush1.msra.mxu0 0.0
    %2757 = vmatprep.subr.mxu0 0.0
    %2758 = vmatpush1.msra.mxu0 0.0
    %2759 = vmatprep.subr.mxu0 0.0
    %2760 = vmatpush1.msra.mxu0 0.0
    %2761 = vmatprep.subr.mxu0 0.0
    %2762 = vmatpush1.msra.mxu0 0.0
    %2763 = vmatprep.subr.mxu0 0.0
    %2764 = vmatpush1.msra.mxu0 0.0
    %2765 = vmatprep.subr.mxu0 0.0
    %2766 = vmatpush1.msra.mxu0 0.0
    %2767 = vmatprep.subr.mxu0 0.0
    %2768 = vmatpush1.msra.mxu0 0.0
    %2769 = vmatprep.subr.mxu0 0.0
    %2770 = vmatpush1.msra.mxu0 0.0
    %2771 = vmatprep.subr.mxu0 0.0
    %2772 = vmatpush1.msra.mxu0 0.0
    %2773 = vmatprep.subr.mxu0 0.0
    %2774 = vmatpush1.msra.mxu0 0.0
    %2775 = vmatprep.subr.mxu0 0.0
    %2776 = vmatpush1.msra.mxu0 0.0
    %2777 = vmatprep.subr.mxu0 0.0
    %2778 = vmatpush1.msra.mxu0 0.0
    %2779 = vmatprep.subr.mxu0 0.0
    %2780 = vmatpush1.msra.mxu0 0.0
    %2781 = vmatprep.subr.mxu0 0.0
    %2782 = vmatpush1.msra.mxu0 0.0
    %2783 = vmatprep.mubr.f32.mxu0 0.0
    %2784 = vmatmul.mubr.f32.gmra.mrb[0].mxu0 %v2264
    %v2785 = vpop.f32.mrb[0].mxu0
    %v2786 = vadd.f32 0.0, %v2785
    %v2787 = vpop.f32.mrb[0].mxu0
    %2788 = vmatprep.mubr.f32.mxu0 0.0
    %2789 = vmatmul.mubr.f32.gmra.mrb[0].mxu0 %v2267
    %v2790 = vpop.f32.mrb[0].mxu0
    %v2791 = vadd.f32 0.0, %v2790
    %v2792 = vpop.f32.mrb[0].mxu0
    %2793 = vdwg.mxu0
    %2794 = vmatprep.subr.mxu0 0.0
    %2795 = vmatpush1.msra.mxu0 %v77
    %2796 = vmatprep.subr.mxu0 0.0
    %2797 = vmatpush1.msra.mxu0 %v78
    %2798 = vmatprep.subr.mxu0 0.0
    %2799 = vmatpush1.msra.mxu0 %v79
    %2800 = vmatprep.subr.mxu0 0.0
    %2801 = vmatpush1.msra.mxu0 %v80
    %2802 = vmatprep.subr.mxu0 0.0
    %2803 = vmatpush1.msra.mxu0 0.0
    %2804 = vmatprep.subr.mxu0 0.0
    %2805 = vmatpush1.msra.mxu0 0.0
    %2806 = vmatprep.subr.mxu0 0.0
    %2807 = vmatpush1.msra.mxu0 0.0
    %2808 = vmatprep.subr.mxu0 0.0
    %2809 = vmatpush1.msra.mxu0 0.0
    %2810 = vmatprep.subr.mxu0 0.0
    %2811 = vmatpush1.msra.mxu0 0.0
    %2812 = vmatprep.subr.mxu0 0.0
    %2813 = vmatpush1.msra.mxu0 0.0
    %2814 = vmatprep.subr.mxu0 0.0
    %2815 = vmatpush1.msra.mxu0 0.0
    %2816 = vmatprep.subr.mxu0 0.0
    %2817 = vmatpush1.msra.mxu0 0.0
    %2818 = vmatprep.subr.mxu0 0.0
    %2819 = vmatpush1.msra.mxu0 0.0
    %2820 = vmatprep.subr.mxu0 0.0
    %2821 = vmatpush1.msra.mxu0 0.0
    %2822 = vmatprep.subr.mxu0 0.0
    %2823 = vmatpush1.msra.mxu0 0.0
    %2824 = vmatprep.subr.mxu0 0.0
    %2825 = vmatpush1.msra.mxu0 0.0
    %2826 = vmatprep.subr.mxu0 0.0
    %2827 = vmatpush1.msra.mxu0 0.0
    %2828 = vmatprep.subr.mxu0 0.0
    %2829 = vmatpush1.msra.mxu0 0.0
    %2830 = vmatprep.subr.mxu0 0.0
    %2831 = vmatpush1.msra.mxu0 0.0
    %2832 = vmatprep.subr.mxu0 0.0
    %2833 = vmatpush1.msra.mxu0 0.0
    %2834 = vmatprep.subr.mxu0 0.0
    %2835 = vmatpush1.msra.mxu0 0.0
    %2836 = vmatprep.subr.mxu0 0.0
    %2837 = vmatpush1.msra.mxu0 0.0
    %2838 = vmatprep.subr.mxu0 0.0
    %2839 = vmatpush1.msra.mxu0 0.0
    %2840 = vmatprep.subr.mxu0 0.0
    %2841 = vmatpush1.msra.mxu0 0.0
    %2842 = vmatprep.subr.mxu0 0.0
    %2843 = vmatpush1.msra.mxu0 0.0
    %2844 = vmatprep.subr.mxu0 0.0
    %2845 = vmatpush1.msra.mxu0 0.0
    %2846 = vmatprep.subr.mxu0 0.0
    %2847 = vmatpush1.msra.mxu0 0.0
    %2848 = vmatprep.subr.mxu0 0.0
    %2849 = vmatpush1.msra.mxu0 0.0
    %2850 = vmatprep.subr.mxu0 0.0
    %2851 = vmatpush1.msra.mxu0 0.0
    %2852 = vmatprep.subr.mxu0 0.0
    %2853 = vmatpush1.msra.mxu0 0.0
    %2854 = vmatprep.subr.mxu0 0.0
    %2855 = vmatpush1.msra.mxu0 0.0
    %2856 = vmatprep.subr.mxu0 0.0
    %2857 = vmatpush1.msra.mxu0 0.0
    %2858 = vmatprep.mubr.f32.mxu0 0.0
    %2859 = vmatmul.mubr.f32.gmra.mrb[0].mxu0 %v2264
    %v2860 = vpop.f32.mrb[0].mxu0
    %v2861 = vadd.f32 0.0, %v2860
    %v2862 = vpop.f32.mrb[0].mxu0
    %2863 = vmatprep.mubr.f32.mxu0 0.0
    %2864 = vmatmul.mubr.f32.gmra.mrb[0].mxu0 %v2267
    %v2865 = vpop.f32.mrb[0].mxu0
    %v2866 = vadd.f32 0.0, %v2865
    %v2867 = vpop.f32.mrb[0].mxu0
    %2868 = vdwg.mxu0
    %v2870 = vsel %vm981, %v2050, 0
    %v2873 = vsel %vm981, %v2336, 0
    %v2876 = vsel %vm981, %v2341, 0
    %2878 = vmatprep.subr.mxu0 0.0
    %2879 = vmatpush1.xpose.msra.mxu0 %v2873
    %2880 = vmatprep.subr.mxu0 0.0
    %2881 = vmatpush1.xpose.msra.mxu0 %v2876
    %2882 = vmatprep.subr.mxu0 0.0
    %2883 = vmatpush1.xpose.msra.mxu0 0.0
    %2884 = vmatprep.subr.mxu0 0.0
    %2885 = vmatpush1.xpose.msra.mxu0 0.0
    %2886 = vmatprep.subr.mxu0 0.0
    %2887 = vmatpush1.xpose.msra.mxu0 0.0
    %2888 = vmatprep.subr.mxu0 0.0
    %2889 = vmatpush1.xpose.msra.mxu0 0.0
    %2890 = vmatprep.subr.mxu0 0.0
    %2891 = vmatpush1.xpose.msra.mxu0 0.0
    %2892 = vmatprep.subr.mxu0 0.0
    %2893 = vmatpush1.xpose.msra.mxu0 0.0
    %2894 = vmatprep.subr.mxu0 0.0
    %2895 = vmatpush1.xpose.msra.mxu0 0.0
    %2896 = vmatprep.subr.mxu0 0.0
    %2897 = vmatpush1.xpose.msra.mxu0 0.0
    %2898 = vmatprep.subr.mxu0 0.0
    %2899 = vmatpush1.xpose.msra.mxu0 0.0
    %2900 = vmatprep.subr.mxu0 0.0
    %2901 = vmatpush1.xpose.msra.mxu0 0.0
    %2902 = vmatprep.subr.mxu0 0.0
    %2903 = vmatpush1.xpose.msra.mxu0 0.0
    %2904 = vmatprep.subr.mxu0 0.0
    %2905 = vmatpush1.xpose.msra.mxu0 0.0
    %2906 = vmatprep.subr.mxu0 0.0
    %2907 = vmatpush1.xpose.msra.mxu0 0.0
    %2908 = vmatprep.subr.mxu0 0.0
    %2909 = vmatpush1.xpose.msra.mxu0 0.0
    %2910 = vmatprep.subr.mxu0 0.0
    %2911 = vmatpush1.xpose.msra.mxu0 0.0
    %2912 = vmatprep.subr.mxu0 0.0
    %2913 = vmatpush1.xpose.msra.mxu0 0.0
    %2914 = vmatprep.subr.mxu0 0.0
    %2915 = vmatpush1.xpose.msra.mxu0 0.0
    %2916 = vmatprep.subr.mxu0 0.0
    %2917 = vmatpush1.xpose.msra.mxu0 0.0
    %2918 = vmatprep.subr.mxu0 0.0
    %2919 = vmatpush1.xpose.msra.mxu0 0.0
    %2920 = vmatprep.subr.mxu0 0.0
    %2921 = vmatpush1.xpose.msra.mxu0 0.0
    %2922 = vmatprep.subr.mxu0 0.0
    %2923 = vmatpush1.xpose.msra.mxu0 0.0
    %2924 = vmatprep.subr.mxu0 0.0
    %2925 = vmatpush1.xpose.msra.mxu0 0.0
    %2926 = vmatprep.subr.mxu0 0.0
    %2927 = vmatpush1.xpose.msra.mxu0 0.0
    %2928 = vmatprep.subr.mxu0 0.0
    %2929 = vmatpush1.xpose.msra.mxu0 0.0
    %2930 = vmatprep.subr.mxu0 0.0
    %2931 = vmatpush1.xpose.msra.mxu0 0.0
    %2932 = vmatprep.subr.mxu0 0.0
    %2933 = vmatpush1.xpose.msra.mxu0 0.0
    %2934 = vmatprep.subr.mxu0 0.0
    %2935 = vmatpush1.xpose.msra.mxu0 0.0
    %2936 = vmatprep.subr.mxu0 0.0
    %2937 = vmatpush1.xpose.msra.mxu0 0.0
    %2938 = vmatprep.subr.mxu0 0.0
    %2939 = vmatpush1.xpose.msra.mxu0 0.0
    %2940 = vmatprep.subr.mxu0 0.0
    %2941 = vmatpush1.xpose.msra.mxu0 0.0
    %2942 = vmatprep.mubr.f32.mxu0 0.0
    %2943 = vmatmul.mubr.f32.gmra.mrb[0].mxu0 %v2870
    %v2944 = vpop.f32.mrb[0].mxu0
    %v2945 = vadd.f32 0.0, %v2944
    %v2946 = vpop.f32.mrb[0].mxu0
    %2947 = vdwg.mxu0
    %v2949 = vsel %vm981, %v2120, 0
    %v2952 = vsel %vm981, %v2411, 0
    %v2955 = vsel %vm981, %v2416, 0
    %2957 = vmatprep.subr.mxu0 0.0
    %2958 = vmatpush1.xpose.msra.mxu0 %v2952
    %2959 = vmatprep.subr.mxu0 0.0
    %2960 = vmatpush1.xpose.msra.mxu0 %v2955
    %2961 = vmatprep.subr.mxu0 0.0
    %2962 = vmatpush1.xpose.msra.mxu0 0.0
    %2963 = vmatprep.subr.mxu0 0.0
    %2964 = vmatpush1.xpose.msra.mxu0 0.0
    %2965 = vmatprep.subr.mxu0 0.0
    %2966 = vmatpush1.xpose.msra.mxu0 0.0
    %2967 = vmatprep.subr.mxu0 0.0
    %2968 = vmatpush1.xpose.msra.mxu0 0.0
    %2969 = vmatprep.subr.mxu0 0.0
    %2970 = vmatpush1.xpose.msra.mxu0 0.0
    %2971 = vmatprep.subr.mxu0 0.0
    %2972 = vmatpush1.xpose.msra.mxu0 0.0
    %2973 = vmatprep.subr.mxu0 0.0
    %2974 = vmatpush1.xpose.msra.mxu0 0.0
    %2975 = vmatprep.subr.mxu0 0.0
    %2976 = vmatpush1.xpose.msra.mxu0 0.0
    %2977 = vmatprep.subr.mxu0 0.0
    %2978 = vmatpush1.xpose.msra.mxu0 0.0
    %2979 = vmatprep.subr.mxu0 0.0
    %2980 = vmatpush1.xpose.msra.mxu0 0.0
    %2981 = vmatprep.subr.mxu0 0.0
    %2982 = vmatpush1.xpose.msra.mxu0 0.0
    %2983 = vmatprep.subr.mxu0 0.0
    %2984 = vmatpush1.xpose.msra.mxu0 0.0
    %2985 = vmatprep.subr.mxu0 0.0
    %2986 = vmatpush1.xpose.msra.mxu0 0.0
    %2987 = vmatprep.subr.mxu0 0.0
    %2988 = vmatpush1.xpose.msra.mxu0 0.0
    %2989 = vmatprep.subr.mxu0 0.0
    %2990 = vmatpush1.xpose.msra.mxu0 0.0
    %2991 = vmatprep.subr.mxu0 0.0
    %2992 = vmatpush1.xpose.msra.mxu0 0.0
    %2993 = vmatprep.subr.mxu0 0.0
    %2994 = vmatpush1.xpose.msra.mxu0 0.0
    %2995 = vmatprep.subr.mxu0 0.0
    %2996 = vmatpush1.xpose.msra.mxu0 0.0
    %2997 = vmatprep.subr.mxu0 0.0
    %2998 = vmatpush1.xpose.msra.mxu0 0.0
    %2999 = vmatprep.subr.mxu0 0.0
    %3000 = vmatpush1.xpose.msra.mxu0 0.0
    %3001 = vmatprep.subr.mxu0 0.0
    %3002 = vmatpush1.xpose.msra.mxu0 0.0
    %3003 = vmatprep.subr.mxu0 0.0
    %3004 = vmatpush1.xpose.msra.mxu0 0.0
    %3005 = vmatprep.subr.mxu0 0.0
    %3006 = vmatpush1.xpose.msra.mxu0 0.0
    %3007 = vmatprep.subr.mxu0 0.0
    %3008 = vmatpush1.xpose.msra.mxu0 0.0
    %3009 = vmatprep.subr.mxu0 0.0
    %3010 = vmatpush1.xpose.msra.mxu0 0.0
    %3011 = vmatprep.subr.mxu0 0.0
    %3012 = vmatpush1.xpose.msra.mxu0 0.0
    %3013 = vmatprep.subr.mxu0 0.0
    %3014 = vmatpush1.xpose.msra.mxu0 0.0
    %3015 = vmatprep.subr.mxu0 0.0
    %3016 = vmatpush1.xpose.msra.mxu0 0.0
    %3017 = vmatprep.subr.mxu0 0.0
    %3018 = vmatpush1.xpose.msra.mxu0 0.0
    %3019 = vmatprep.subr.mxu0 0.0
    %3020 = vmatpush1.xpose.msra.mxu0 0.0
    %3021 = vmatprep.mubr.f32.mxu0 0.0
    %3022 = vmatmul.mubr.f32.gmra.mrb[0].mxu0 %v2949
    %v3023 = vpop.f32.mrb[0].mxu0
    %v3024 = vadd.f32 0.0, %v3023
    %v3025 = vpop.f32.mrb[0].mxu0
    %3026 = vdwg.mxu0
    %v3028 = vsel %vm981, %v2190, 0
    %v3031 = vsel %vm981, %v2486, 0
    %v3034 = vsel %vm981, %v2491, 0
    %3036 = vmatprep.subr.mxu0 0.0
    %3037 = vmatpush1.xpose.msra.mxu0 %v3031
    %3038 = vmatprep.subr.mxu0 0.0
    %3039 = vmatpush1.xpose.msra.mxu0 %v3034
    %3040 = vmatprep.subr.mxu0 0.0
    %3041 = vmatpush1.xpose.msra.mxu0 0.0
    %3042 = vmatprep.subr.mxu0 0.0
    %3043 = vmatpush1.xpose.msra.mxu0 0.0
    %3044 = vmatprep.subr.mxu0 0.0
    %3045 = vmatpush1.xpose.msra.mxu0 0.0
    %3046 = vmatprep.subr.mxu0 0.0
    %3047 = vmatpush1.xpose.msra.mxu0 0.0
    %3048 = vmatprep.subr.mxu0 0.0
    %3049 = vmatpush1.xpose.msra.mxu0 0.0
    %3050 = vmatprep.subr.mxu0 0.0
    %3051 = vmatpush1.xpose.msra.mxu0 0.0
    %3052 = vmatprep.subr.mxu0 0.0
    %3053 = vmatpush1.xpose.msra.mxu0 0.0
    %3054 = vmatprep.subr.mxu0 0.0
    %3055 = vmatpush1.xpose.msra.mxu0 0.0
    %3056 = vmatprep.subr.mxu0 0.0
    %3057 = vmatpush1.xpose.msra.mxu0 0.0
    %3058 = vmatprep.subr.mxu0 0.0
    %3059 = vmatpush1.xpose.msra.mxu0 0.0
    %3060 = vmatprep.subr.mxu0 0.0
    %3061 = vmatpush1.xpose.msra.mxu0 0.0
    %3062 = vmatprep.subr.mxu0 0.0
    %3063 = vmatpush1.xpose.msra.mxu0 0.0
    %3064 = vmatprep.subr.mxu0 0.0
    %3065 = vmatpush1.xpose.msra.mxu0 0.0
    %3066 = vmatprep.subr.mxu0 0.0
    %3067 = vmatpush1.xpose.msra.mxu0 0.0
    %3068 = vmatprep.subr.mxu0 0.0
    %3069 = vmatpush1.xpose.msra.mxu0 0.0
    %3070 = vmatprep.subr.mxu0 0.0
    %3071 = vmatpush1.xpose.msra.mxu0 0.0
    %3072 = vmatprep.subr.mxu0 0.0
    %3073 = vmatpush1.xpose.msra.mxu0 0.0
    %3074 = vmatprep.subr.mxu0 0.0
    %3075 = vmatpush1.xpose.msra.mxu0 0.0
    %3076 = vmatprep.subr.mxu0 0.0
    %3077 = vmatpush1.xpose.msra.mxu0 0.0
    %3078 = vmatprep.subr.mxu0 0.0
    %3079 = vmatpush1.xpose.msra.mxu0 0.0
    %3080 = vmatprep.subr.mxu0 0.0
    %3081 = vmatpush1.xpose.msra.mxu0 0.0
    %3082 = vmatprep.subr.mxu0 0.0
    %3083 = vmatpush1.xpose.msra.mxu0 0.0
    %3084 = vmatprep.subr.mxu0 0.0
    %3085 = vmatpush1.xpose.msra.mxu0 0.0
    %3086 = vmatprep.subr.mxu0 0.0
    %3087 = vmatpush1.xpose.msra.mxu0 0.0
    %3088 = vmatprep.subr.mxu0 0.0
    %3089 = vmatpush1.xpose.msra.mxu0 0.0
    %3090 = vmatprep.subr.mxu0 0.0
    %3091 = vmatpush1.xpose.msra.mxu0 0.0
    %3092 = vmatprep.subr.mxu0 0.0
    %3093 = vmatpush1.xpose.msra.mxu0 0.0
    %3094 = vmatprep.subr.mxu0 0.0
    %3095 = vmatpush1.xpose.msra.mxu0 0.0
    %3096 = vmatprep.subr.mxu0 0.0
    %3097 = vmatpush1.xpose.msra.mxu0 0.0
    %3098 = vmatprep.subr.mxu0 0.0
    %3099 = vmatpush1.xpose.msra.mxu0 0.0
    %3100 = vmatprep.mubr.f32.mxu0 0.0
    %3101 = vmatmul.mubr.f32.gmra.mrb[0].mxu0 %v3028
    %v3102 = vpop.f32.mrb[0].mxu0
    %v3103 = vadd.f32 0.0, %v3102
    %v3104 = vpop.f32.mrb[0].mxu0
    %3105 = vdwg.mxu0
    %v3107 = vsel %vm981, %v2260, 0
    %v3110 = vsel %vm981, %v2561, 0
    %v3113 = vsel %vm981, %v2566, 0
    %3115 = vmatprep.subr.mxu0 0.0
    %3116 = vmatpush1.xpose.msra.mxu0 %v3110
    %3117 = vmatprep.subr.mxu0 0.0
    %3118 = vmatpush1.xpose.msra.mxu0 %v3113
    %3119 = vmatprep.subr.mxu0 0.0
    %3120 = vmatpush1.xpose.msra.mxu0 0.0
    %3121 = vmatprep.subr.mxu0 0.0
    %3122 = vmatpush1.xpose.msra.mxu0 0.0
    %3123 = vmatprep.subr.mxu0 0.0
    %3124 = vmatpush1.xpose.msra.mxu0 0.0
    %3125 = vmatprep.subr.mxu0 0.0
    %3126 = vmatpush1.xpose.msra.mxu0 0.0
    %3127 = vmatprep.subr.mxu0 0.0
    %3128 = vmatpush1.xpose.msra.mxu0 0.0
    %3129 = vmatprep.subr.mxu0 0.0
    %3130 = vmatpush1.xpose.msra.mxu0 0.0
    %3131 = vmatprep.subr.mxu0 0.0
    %3132 = vmatpush1.xpose.msra.mxu0 0.0
    %3133 = vmatprep.subr.mxu0 0.0
    %3134 = vmatpush1.xpose.msra.mxu0 0.0
    %3135 = vmatprep.subr.mxu0 0.0
    %3136 = vmatpush1.xpose.msra.mxu0 0.0
    %3137 = vmatprep.subr.mxu0 0.0
    %3138 = vmatpush1.xpose.msra.mxu0 0.0
    %3139 = vmatprep.subr.mxu0 0.0
    %3140 = vmatpush1.xpose.msra.mxu0 0.0
    %3141 = vmatprep.subr.mxu0 0.0
    %3142 = vmatpush1.xpose.msra.mxu0 0.0
    %3143 = vmatprep.subr.mxu0 0.0
    %3144 = vmatpush1.xpose.msra.mxu0 0.0
    %3145 = vmatprep.subr.mxu0 0.0
    %3146 = vmatpush1.xpose.msra.mxu0 0.0
    %3147 = vmatprep.subr.mxu0 0.0
    %3148 = vmatpush1.xpose.msra.mxu0 0.0
    %3149 = vmatprep.subr.mxu0 0.0
    %3150 = vmatpush1.xpose.msra.mxu0 0.0
    %3151 = vmatprep.subr.mxu0 0.0
    %3152 = vmatpush1.xpose.msra.mxu0 0.0
    %3153 = vmatprep.subr.mxu0 0.0
    %3154 = vmatpush1.xpose.msra.mxu0 0.0
    %3155 = vmatprep.subr.mxu0 0.0
    %3156 = vmatpush1.xpose.msra.mxu0 0.0
    %3157 = vmatprep.subr.mxu0 0.0
    %3158 = vmatpush1.xpose.msra.mxu0 0.0
    %3159 = vmatprep.subr.mxu0 0.0
    %3160 = vmatpush1.xpose.msra.mxu0 0.0
    %3161 = vmatprep.subr.mxu0 0.0
    %3162 = vmatpush1.xpose.msra.mxu0 0.0
    %3163 = vmatprep.subr.mxu0 0.0
    %3164 = vmatpush1.xpose.msra.mxu0 0.0
    %3165 = vmatprep.subr.mxu0 0.0
    %3166 = vmatpush1.xpose.msra.mxu0 0.0
    %3167 = vmatprep.subr.mxu0 0.0
    %3168 = vmatpush1.xpose.msra.mxu0 0.0
    %3169 = vmatprep.subr.mxu0 0.0
    %3170 = vmatpush1.xpose.msra.mxu0 0.0
    %3171 = vmatprep.subr.mxu0 0.0
    %3172 = vmatpush1.xpose.msra.mxu0 0.0
    %3173 = vmatprep.subr.mxu0 0.0
    %3174 = vmatpush1.xpose.msra.mxu0 0.0
    %3175 = vmatprep.subr.mxu0 0.0
    %3176 = vmatpush1.xpose.msra.mxu0 0.0
    %3177 = vmatprep.subr.mxu0 0.0
    %3178 = vmatpush1.xpose.msra.mxu0 0.0
    %3179 = vmatprep.mubr.f32.mxu0 0.0
    %3180 = vmatmul.mubr.f32.gmra.mrb[0].mxu0 %v3107
    %v3181 = vpop.f32.mrb[0].mxu0
    %v3182 = vadd.f32 0.0, %v3181
    %v3183 = vpop.f32.mrb[0].mxu0
    %3184 = vdwg.mxu0
    %v3185 = vmul.f32 %v2945, 0.35355338
    %v3186 = vmul.f32 %v3024, 0.35355338
    %v3187 = vmul.f32 %v3103, 0.35355338
    %v3188 = vmul.f32 %v3182, 0.35355338
    %v3189 = vsel %vm1302, %v3185, -inf
    %3190 = vmax.xlane.f32.xlu0 %v3189
    %v3191 = vpop.xlane.xlu0 %3190
    %v3192 = vsel %vm1302, %v3186, -inf
    %3193 = vmax.xlane.f32.xlu0 %v3192
    %v3194 = vpop.xlane.xlu0 %3193
    %v3195 = vsel %vm1302, %v3187, -inf
    %3196 = vmax.xlane.f32.xlu0 %v3195
    %v3197 = vpop.xlane.xlu0 %3196
    %v3198 = vsel %vm1302, %v3188, -inf
    %3199 = vmax.xlane.f32.xlu0 %v3198
    %v3200 = vpop.xlane.xlu0 %3199
    %v3201 = vsub.f32 %v3185, %v3191
    %v3202 = vsub.f32 %v3186, %v3194
    %v3203 = vsub.f32 %v3187, %v3197
    %v3204 = vsub.f32 %v3188, %v3200
    %v3205 = vmul.f32 %v3201, 1.442695
    %v3206 = vpow.pop %v3205
    %v3207 = vmul.f32 %v3202, 1.442695
    %v3208 = vpow.pop %v3207
    %v3209 = vmul.f32 %v3203, 1.442695
    %v3210 = vpow.pop %v3209
    %v3211 = vmul.f32 %v3204, 1.442695
    %v3212 = vpow.pop %v3211
    %v3213 = vsel %vm1302, %v3206, 0.0
    %3214 = vadd.xlane.f32.xlu0 %v3213
    %v3215 = vpop.xlane.xlu0 %3214
    %v3216 = vsel %vm1302, %v3208, 0.0
    %3217 = vadd.xlane.f32.xlu0 %v3216
    %v3218 = vpop.xlane.xlu0 %3217
    %v3219 = vsel %vm1302, %v3210, 0.0
    %3220 = vadd.xlane.f32.xlu0 %v3219
    %v3221 = vpop.xlane.xlu0 %3220
    %v3222 = vsel %vm1302, %v3212, 0.0
    %3223 = vadd.xlane.f32.xlu0 %v3222
    %v3224 = vpop.xlane.xlu0 %3223
    %v3225 = vrcp.pop %v3215
    %v3226 = vrcp.pop %v3218
    %v3227 = vrcp.pop %v3221
    %v3228 = vrcp.pop %v3224
    %v3229 = vmul.f32 %v3206, %v3225
    %v3230 = vmul.f32 %v3208, %v3226
    %v3231 = vmul.f32 %v3210, %v3227
    %v3232 = vmul.f32 %v3212, %v3228
    %v3234 = vsel %vm1302, %v3229, 0
    %3236 = vmatprep.subr.mxu0 0.0
    %3237 = vmatpush1.msra.mxu0 %v2636
    %3238 = vmatprep.subr.mxu0 0.0
    %3239 = vmatpush1.msra.mxu0 %v2641
    %3240 = vmatprep.subr.mxu0 0.0
    %3241 = vmatpush1.msra.mxu0 0.0
    %3242 = vmatprep.subr.mxu0 0.0
    %3243 = vmatpush1.msra.mxu0 0.0
    %3244 = vmatprep.subr.mxu0 0.0
    %3245 = vmatpush1.msra.mxu0 0.0
    %3246 = vmatprep.subr.mxu0 0.0
    %3247 = vmatpush1.msra.mxu0 0.0
    %3248 = vmatprep.subr.mxu0 0.0
    %3249 = vmatpush1.msra.mxu0 0.0
    %3250 = vmatprep.subr.mxu0 0.0
    %3251 = vmatpush1.msra.mxu0 0.0
    %3252 = vmatprep.subr.mxu0 0.0
    %3253 = vmatpush1.msra.mxu0 0.0
    %3254 = vmatprep.subr.mxu0 0.0
    %3255 = vmatpush1.msra.mxu0 0.0
    %3256 = vmatprep.subr.mxu0 0.0
    %3257 = vmatpush1.msra.mxu0 0.0
    %3258 = vmatprep.subr.mxu0 0.0
    %3259 = vmatpush1.msra.mxu0 0.0
    %3260 = vmatprep.subr.mxu0 0.0
    %3261 = vmatpush1.msra.mxu0 0.0
    %3262 = vmatprep.subr.mxu0 0.0
    %3263 = vmatpush1.msra.mxu0 0.0
    %3264 = vmatprep.subr.mxu0 0.0
    %3265 = vmatpush1.msra.mxu0 0.0
    %3266 = vmatprep.subr.mxu0 0.0
    %3267 = vmatpush1.msra.mxu0 0.0
    %3268 = vmatprep.subr.mxu0 0.0
    %3269 = vmatpush1.msra.mxu0 0.0
    %3270 = vmatprep.subr.mxu0 0.0
    %3271 = vmatpush1.msra.mxu0 0.0
    %3272 = vmatprep.subr.mxu0 0.0
    %3273 = vmatpush1.msra.mxu0 0.0
    %3274 = vmatprep.subr.mxu0 0.0
    %3275 = vmatpush1.msra.mxu0 0.0
    %3276 = vmatprep.subr.mxu0 0.0
    %3277 = vmatpush1.msra.mxu0 0.0
    %3278 = vmatprep.subr.mxu0 0.0
    %3279 = vmatpush1.msra.mxu0 0.0
    %3280 = vmatprep.subr.mxu0 0.0
    %3281 = vmatpush1.msra.mxu0 0.0
    %3282 = vmatprep.subr.mxu0 0.0
    %3283 = vmatpush1.msra.mxu0 0.0
    %3284 = vmatprep.subr.mxu0 0.0
    %3285 = vmatpush1.msra.mxu0 0.0
    %3286 = vmatprep.subr.mxu0 0.0
    %3287 = vmatpush1.msra.mxu0 0.0
    %3288 = vmatprep.subr.mxu0 0.0
    %3289 = vmatpush1.msra.mxu0 0.0
    %3290 = vmatprep.subr.mxu0 0.0
    %3291 = vmatpush1.msra.mxu0 0.0
    %3292 = vmatprep.subr.mxu0 0.0
    %3293 = vmatpush1.msra.mxu0 0.0
    %3294 = vmatprep.subr.mxu0 0.0
    %3295 = vmatpush1.msra.mxu0 0.0
    %3296 = vmatprep.subr.mxu0 0.0
    %3297 = vmatpush1.msra.mxu0 0.0
    %3298 = vmatprep.subr.mxu0 0.0
    %3299 = vmatpush1.msra.mxu0 0.0
    %3300 = vmatprep.mubr.f32.mxu0 0.0
    %3301 = vmatmul.mubr.f32.gmra.mrb[0].mxu0 %v3234
    %v3302 = vpop.f32.mrb[0].mxu0
    %v3303 = vadd.f32 0.0, %v3302
    %v3304 = vpop.f32.mrb[0].mxu0
    %3305 = vdwg.mxu0
    %v3307 = vsel %vm1302, %v3230, 0
    %3309 = vmatprep.subr.mxu0 0.0
    %3310 = vmatpush1.msra.mxu0 %v2711
    %3311 = vmatprep.subr.mxu0 0.0
    %3312 = vmatpush1.msra.mxu0 %v2716
    %3313 = vmatprep.subr.mxu0 0.0
    %3314 = vmatpush1.msra.mxu0 0.0
    %3315 = vmatprep.subr.mxu0 0.0
    %3316 = vmatpush1.msra.mxu0 0.0
    %3317 = vmatprep.subr.mxu0 0.0
    %3318 = vmatpush1.msra.mxu0 0.0
    %3319 = vmatprep.subr.mxu0 0.0
    %3320 = vmatpush1.msra.mxu0 0.0
    %3321 = vmatprep.subr.mxu0 0.0
    %3322 = vmatpush1.msra.mxu0 0.0
    %3323 = vmatprep.subr.mxu0 0.0
    %3324 = vmatpush1.msra.mxu0 0.0
    %3325 = vmatprep.subr.mxu0 0.0
    %3326 = vmatpush1.msra.mxu0 0.0
    %3327 = vmatprep.subr.mxu0 0.0
    %3328 = vmatpush1.msra.mxu0 0.0
    %3329 = vmatprep.subr.mxu0 0.0
    %3330 = vmatpush1.msra.mxu0 0.0
    %3331 = vmatprep.subr.mxu0 0.0
    %3332 = vmatpush1.msra.mxu0 0.0
    %3333 = vmatprep.subr.mxu0 0.0
    %3334 = vmatpush1.msra.mxu0 0.0
    %3335 = vmatprep.subr.mxu0 0.0
    %3336 = vmatpush1.msra.mxu0 0.0
    %3337 = vmatprep.subr.mxu0 0.0
    %3338 = vmatpush1.msra.mxu0 0.0
    %3339 = vmatprep.subr.mxu0 0.0
    %3340 = vmatpush1.msra.mxu0 0.0
    %3341 = vmatprep.subr.mxu0 0.0
    %3342 = vmatpush1.msra.mxu0 0.0
    %3343 = vmatprep.subr.mxu0 0.0
    %3344 = vmatpush1.msra.mxu0 0.0
    %3345 = vmatprep.subr.mxu0 0.0
    %3346 = vmatpush1.msra.mxu0 0.0
    %3347 = vmatprep.subr.mxu0 0.0
    %3348 = vmatpush1.msra.mxu0 0.0
    %3349 = vmatprep.subr.mxu0 0.0
    %3350 = vmatpush1.msra.mxu0 0.0
    %3351 = vmatprep.subr.mxu0 0.0
    %3352 = vmatpush1.msra.mxu0 0.0
    %3353 = vmatprep.subr.mxu0 0.0
    %3354 = vmatpush1.msra.mxu0 0.0
    %3355 = vmatprep.subr.mxu0 0.0
    %3356 = vmatpush1.msra.mxu0 0.0
    %3357 = vmatprep.subr.mxu0 0.0
    %3358 = vmatpush1.msra.mxu0 0.0
    %3359 = vmatprep.subr.mxu0 0.0
    %3360 = vmatpush1.msra.mxu0 0.0
    %3361 = vmatprep.subr.mxu0 0.0
    %3362 = vmatpush1.msra.mxu0 0.0
    %3363 = vmatprep.subr.mxu0 0.0
    %3364 = vmatpush1.msra.mxu0 0.0
    %3365 = vmatprep.subr.mxu0 0.0
    %3366 = vmatpush1.msra.mxu0 0.0
    %3367 = vmatprep.subr.mxu0 0.0
    %3368 = vmatpush1.msra.mxu0 0.0
    %3369 = vmatprep.subr.mxu0 0.0
    %3370 = vmatpush1.msra.mxu0 0.0
    %3371 = vmatprep.subr.mxu0 0.0
    %3372 = vmatpush1.msra.mxu0 0.0
    %3373 = vmatprep.mubr.f32.mxu0 0.0
    %3374 = vmatmul.mubr.f32.gmra.mrb[0].mxu0 %v3307
    %v3375 = vpop.f32.mrb[0].mxu0
    %v3376 = vadd.f32 0.0, %v3375
    %v3377 = vpop.f32.mrb[0].mxu0
    %3378 = vdwg.mxu0
    %v3380 = vsel %vm1302, %v3231, 0
    %3382 = vmatprep.subr.mxu0 0.0
    %3383 = vmatpush1.msra.mxu0 %v2786
    %3384 = vmatprep.subr.mxu0 0.0
    %3385 = vmatpush1.msra.mxu0 %v2791
    %3386 = vmatprep.subr.mxu0 0.0
    %3387 = vmatpush1.msra.mxu0 0.0
    %3388 = vmatprep.subr.mxu0 0.0
    %3389 = vmatpush1.msra.mxu0 0.0
    %3390 = vmatprep.subr.mxu0 0.0
    %3391 = vmatpush1.msra.mxu0 0.0
    %3392 = vmatprep.subr.mxu0 0.0
    %3393 = vmatpush1.msra.mxu0 0.0
    %3394 = vmatprep.subr.mxu0 0.0
    %3395 = vmatpush1.msra.mxu0 0.0
    %3396 = vmatprep.subr.mxu0 0.0
    %3397 = vmatpush1.msra.mxu0 0.0
    %3398 = vmatprep.subr.mxu0 0.0
    %3399 = vmatpush1.msra.mxu0 0.0
    %3400 = vmatprep.subr.mxu0 0.0
    %3401 = vmatpush1.msra.mxu0 0.0
    %3402 = vmatprep.subr.mxu0 0.0
    %3403 = vmatpush1.msra.mxu0 0.0
    %3404 = vmatprep.subr.mxu0 0.0
    %3405 = vmatpush1.msra.mxu0 0.0
    %3406 = vmatprep.subr.mxu0 0.0
    %3407 = vmatpush1.msra.mxu0 0.0
    %3408 = vmatprep.subr.mxu0 0.0
    %3409 = vmatpush1.msra.mxu0 0.0
    %3410 = vmatprep.subr.mxu0 0.0
    %3411 = vmatpush1.msra.mxu0 0.0
    %3412 = vmatprep.subr.mxu0 0.0
    %3413 = vmatpush1.msra.mxu0 0.0
    %3414 = vmatprep.subr.mxu0 0.0
    %3415 = vmatpush1.msra.mxu0 0.0
    %3416 = vmatprep.subr.mxu0 0.0
    %3417 = vmatpush1.msra.mxu0 0.0
    %3418 = vmatprep.subr.mxu0 0.0
    %3419 = vmatpush1.msra.mxu0 0.0
    %3420 = vmatprep.subr.mxu0 0.0
    %3421 = vmatpush1.msra.mxu0 0.0
    %3422 = vmatprep.subr.mxu0 0.0
    %3423 = vmatpush1.msra.mxu0 0.0
    %3424 = vmatprep.subr.mxu0 0.0
    %3425 = vmatpush1.msra.mxu0 0.0
    %3426 = vmatprep.subr.mxu0 0.0
    %3427 = vmatpush1.msra.mxu0 0.0
    %3428 = vmatprep.subr.mxu0 0.0
    %3429 = vmatpush1.msra.mxu0 0.0
    %3430 = vmatprep.subr.mxu0 0.0
    %3431 = vmatpush1.msra.mxu0 0.0
    %3432 = vmatprep.subr.mxu0 0.0
    %3433 = vmatpush1.msra.mxu0 0.0
    %3434 = vmatprep.subr.mxu0 0.0
    %3435 = vmatpush1.msra.mxu0 0.0
    %3436 = vmatprep.subr.mxu0 0.0
    %3437 = vmatpush1.msra.mxu0 0.0
    %3438 = vmatprep.subr.mxu0 0.0
    %3439 = vmatpush1.msra.mxu0 0.0
    %3440 = vmatprep.subr.mxu0 0.0
    %3441 = vmatpush1.msra.mxu0 0.0
    %3442 = vmatprep.subr.mxu0 0.0
    %3443 = vmatpush1.msra.mxu0 0.0
    %3444 = vmatprep.subr.mxu0 0.0
    %3445 = vmatpush1.msra.mxu0 0.0
    %3446 = vmatprep.mubr.f32.mxu0 0.0
    %3447 = vmatmul.mubr.f32.gmra.mrb[0].mxu0 %v3380
    %v3448 = vpop.f32.mrb[0].mxu0
    %v3449 = vadd.f32 0.0, %v3448
    %v3450 = vpop.f32.mrb[0].mxu0
    %3451 = vdwg.mxu0
    %v3453 = vsel %vm1302, %v3232, 0
    %3455 = vmatprep.subr.mxu0 0.0
    %3456 = vmatpush1.msra.mxu0 %v2861
    %3457 = vmatprep.subr.mxu0 0.0
    %3458 = vmatpush1.msra.mxu0 %v2866
    %3459 = vmatprep.subr.mxu0 0.0
    %3460 = vmatpush1.msra.mxu0 0.0
    %3461 = vmatprep.subr.mxu0 0.0
    %3462 = vmatpush1.msra.mxu0 0.0
    %3463 = vmatprep.subr.mxu0 0.0
    %3464 = vmatpush1.msra.mxu0 0.0
    %3465 = vmatprep.subr.mxu0 0.0
    %3466 = vmatpush1.msra.mxu0 0.0
    %3467 = vmatprep.subr.mxu0 0.0
    %3468 = vmatpush1.msra.mxu0 0.0
    %3469 = vmatprep.subr.mxu0 0.0
    %3470 = vmatpush1.msra.mxu0 0.0
    %3471 = vmatprep.subr.mxu0 0.0
    %3472 = vmatpush1.msra.mxu0 0.0
    %3473 = vmatprep.subr.mxu0 0.0
    %3474 = vmatpush1.msra.mxu0 0.0
    %3475 = vmatprep.subr.mxu0 0.0
    %3476 = vmatpush1.msra.mxu0 0.0
    %3477 = vmatprep.subr.mxu0 0.0
    %3478 = vmatpush1.msra.mxu0 0.0
    %3479 = vmatprep.subr.mxu0 0.0
    %3480 = vmatpush1.msra.mxu0 0.0
    %3481 = vmatprep.subr.mxu0 0.0
    %3482 = vmatpush1.msra.mxu0 0.0
    %3483 = vmatprep.subr.mxu0 0.0
    %3484 = vmatpush1.msra.mxu0 0.0
    %3485 = vmatprep.subr.mxu0 0.0
    %3486 = vmatpush1.msra.mxu0 0.0
    %3487 = vmatprep.subr.mxu0 0.0
    %3488 = vmatpush1.msra.mxu0 0.0
    %3489 = vmatprep.subr.mxu0 0.0
    %3490 = vmatpush1.msra.mxu0 0.0
    %3491 = vmatprep.subr.mxu0 0.0
    %3492 = vmatpush1.msra.mxu0 0.0
    %3493 = vmatprep.subr.mxu0 0.0
    %3494 = vmatpush1.msra.mxu0 0.0
    %3495 = vmatprep.subr.mxu0 0.0
    %3496 = vmatpush1.msra.mxu0 0.0
    %3497 = vmatprep.subr.mxu0 0.0
    %3498 = vmatpush1.msra.mxu0 0.0
    %3499 = vmatprep.subr.mxu0 0.0
    %3500 = vmatpush1.msra.mxu0 0.0
    %3501 = vmatprep.subr.mxu0 0.0
    %3502 = vmatpush1.msra.mxu0 0.0
    %3503 = vmatprep.subr.mxu0 0.0
    %3504 = vmatpush1.msra.mxu0 0.0
    %3505 = vmatprep.subr.mxu0 0.0
    %3506 = vmatpush1.msra.mxu0 0.0
    %3507 = vmatprep.subr.mxu0 0.0
    %3508 = vmatpush1.msra.mxu0 0.0
    %3509 = vmatprep.subr.mxu0 0.0
    %3510 = vmatpush1.msra.mxu0 0.0
    %3511 = vmatprep.subr.mxu0 0.0
    %3512 = vmatpush1.msra.mxu0 0.0
    %3513 = vmatprep.subr.mxu0 0.0
    %3514 = vmatpush1.msra.mxu0 0.0
    %3515 = vmatprep.subr.mxu0 0.0
    %3516 = vmatpush1.msra.mxu0 0.0
    %3517 = vmatprep.subr.mxu0 0.0
    %3518 = vmatpush1.msra.mxu0 0.0
    %3519 = vmatprep.mubr.f32.mxu0 0.0
    %3520 = vmatmul.mubr.f32.gmra.mrb[0].mxu0 %v3453
    %v3521 = vpop.f32.mrb[0].mxu0
    %v3522 = vadd.f32 0.0, %v3521
    %v3523 = vpop.f32.mrb[0].mxu0
    %3524 = vdwg.mxu0
    %v3526 = vsel %vm981, %v3303, 0
    %3528 = vmatprep.subr.mxu0 0.0
    %3529 = vmatpush1.msra.mxu0 %v81
    %3530 = vmatprep.subr.mxu0 0.0
    %3531 = vmatpush1.msra.mxu0 0.0
    %3532 = vmatprep.subr.mxu0 0.0
    %3533 = vmatpush1.msra.mxu0 0.0
    %3534 = vmatprep.subr.mxu0 0.0
    %3535 = vmatpush1.msra.mxu0 0.0
    %3536 = vmatprep.subr.mxu0 0.0
    %3537 = vmatpush1.msra.mxu0 0.0
    %3538 = vmatprep.subr.mxu0 0.0
    %3539 = vmatpush1.msra.mxu0 0.0
    %3540 = vmatprep.subr.mxu0 0.0
    %3541 = vmatpush1.msra.mxu0 0.0
    %3542 = vmatprep.subr.mxu0 0.0
    %3543 = vmatpush1.msra.mxu0 0.0
    %3544 = vmatprep.subr.mxu0 0.0
    %3545 = vmatpush1.msra.mxu0 0.0
    %3546 = vmatprep.subr.mxu0 0.0
    %3547 = vmatpush1.msra.mxu0 0.0
    %3548 = vmatprep.subr.mxu0 0.0
    %3549 = vmatpush1.msra.mxu0 0.0
    %3550 = vmatprep.subr.mxu0 0.0
    %3551 = vmatpush1.msra.mxu0 0.0
    %3552 = vmatprep.subr.mxu0 0.0
    %3553 = vmatpush1.msra.mxu0 0.0
    %3554 = vmatprep.subr.mxu0 0.0
    %3555 = vmatpush1.msra.mxu0 0.0
    %3556 = vmatprep.subr.mxu0 0.0
    %3557 = vmatpush1.msra.mxu0 0.0
    %3558 = vmatprep.subr.mxu0 0.0
    %3559 = vmatpush1.msra.mxu0 0.0
    %3560 = vmatprep.subr.mxu0 0.0
    %3561 = vmatpush1.msra.mxu0 0.0
    %3562 = vmatprep.subr.mxu0 0.0
    %3563 = vmatpush1.msra.mxu0 0.0
    %3564 = vmatprep.subr.mxu0 0.0
    %3565 = vmatpush1.msra.mxu0 0.0
    %3566 = vmatprep.subr.mxu0 0.0
    %3567 = vmatpush1.msra.mxu0 0.0
    %3568 = vmatprep.subr.mxu0 0.0
    %3569 = vmatpush1.msra.mxu0 0.0
    %3570 = vmatprep.subr.mxu0 0.0
    %3571 = vmatpush1.msra.mxu0 0.0
    %3572 = vmatprep.subr.mxu0 0.0
    %3573 = vmatpush1.msra.mxu0 0.0
    %3574 = vmatprep.subr.mxu0 0.0
    %3575 = vmatpush1.msra.mxu0 0.0
    %3576 = vmatprep.subr.mxu0 0.0
    %3577 = vmatpush1.msra.mxu0 0.0
    %3578 = vmatprep.subr.mxu0 0.0
    %3579 = vmatpush1.msra.mxu0 0.0
    %3580 = vmatprep.subr.mxu0 0.0
    %3581 = vmatpush1.msra.mxu0 0.0
    %3582 = vmatprep.subr.mxu0 0.0
    %3583 = vmatpush1.msra.mxu0 0.0
    %3584 = vmatprep.subr.mxu0 0.0
    %3585 = vmatpush1.msra.mxu0 0.0
    %3586 = vmatprep.subr.mxu0 0.0
    %3587 = vmatpush1.msra.mxu0 0.0
    %3588 = vmatprep.subr.mxu0 0.0
    %3589 = vmatpush1.msra.mxu0 0.0
    %3590 = vmatprep.subr.mxu0 0.0
    %3591 = vmatpush1.msra.mxu0 0.0
    %3592 = vmatprep.mubr.f32.mxu0 0.0
    %3593 = vmatmul.mubr.f32.gmra.mrb[0].mxu0 %v3526
    %v3594 = vpop.f32.mrb[0].mxu0
    %v3595 = vadd.f32 0.0, %v3594
    %v3596 = vpop.f32.mrb[0].mxu0
    %3597 = vdwg.mxu0
    %v3599 = vsel %vm981, %v3376, 0
    %3601 = vmatprep.subr.mxu0 0.0
    %3602 = vmatpush1.msra.mxu0 %v82
    %3603 = vmatprep.subr.mxu0 0.0
    %3604 = vmatpush1.msra.mxu0 0.0
    %3605 = vmatprep.subr.mxu0 0.0
    %3606 = vmatpush1.msra.mxu0 0.0
    %3607 = vmatprep.subr.mxu0 0.0
    %3608 = vmatpush1.msra.mxu0 0.0
    %3609 = vmatprep.subr.mxu0 0.0
    %3610 = vmatpush1.msra.mxu0 0.0
    %3611 = vmatprep.subr.mxu0 0.0
    %3612 = vmatpush1.msra.mxu0 0.0
    %3613 = vmatprep.subr.mxu0 0.0
    %3614 = vmatpush1.msra.mxu0 0.0
    %3615 = vmatprep.subr.mxu0 0.0
    %3616 = vmatpush1.msra.mxu0 0.0
    %3617 = vmatprep.subr.mxu0 0.0
    %3618 = vmatpush1.msra.mxu0 0.0
    %3619 = vmatprep.subr.mxu0 0.0
    %3620 = vmatpush1.msra.mxu0 0.0
    %3621 = vmatprep.subr.mxu0 0.0
    %3622 = vmatpush1.msra.mxu0 0.0
    %3623 = vmatprep.subr.mxu0 0.0
    %3624 = vmatpush1.msra.mxu0 0.0
    %3625 = vmatprep.subr.mxu0 0.0
    %3626 = vmatpush1.msra.mxu0 0.0
    %3627 = vmatprep.subr.mxu0 0.0
    %3628 = vmatpush1.msra.mxu0 0.0
    %3629 = vmatprep.subr.mxu0 0.0
    %3630 = vmatpush1.msra.mxu0 0.0
    %3631 = vmatprep.subr.mxu0 0.0
    %3632 = vmatpush1.msra.mxu0 0.0
    %3633 = vmatprep.subr.mxu0 0.0
    %3634 = vmatpush1.msra.mxu0 0.0
    %3635 = vmatprep.subr.mxu0 0.0
    %3636 = vmatpush1.msra.mxu0 0.0
    %3637 = vmatprep.subr.mxu0 0.0
    %3638 = vmatpush1.msra.mxu0 0.0
    %3639 = vmatprep.subr.mxu0 0.0
    %3640 = vmatpush1.msra.mxu0 0.0
    %3641 = vmatprep.subr.mxu0 0.0
    %3642 = vmatpush1.msra.mxu0 0.0
    %3643 = vmatprep.subr.mxu0 0.0
    %3644 = vmatpush1.msra.mxu0 0.0
    %3645 = vmatprep.subr.mxu0 0.0
    %3646 = vmatpush1.msra.mxu0 0.0
    %3647 = vmatprep.subr.mxu0 0.0
    %3648 = vmatpush1.msra.mxu0 0.0
    %3649 = vmatprep.subr.mxu0 0.0
    %3650 = vmatpush1.msra.mxu0 0.0
    %3651 = vmatprep.subr.mxu0 0.0
    %3652 = vmatpush1.msra.mxu0 0.0
    %3653 = vmatprep.subr.mxu0 0.0
    %3654 = vmatpush1.msra.mxu0 0.0
    %3655 = vmatprep.subr.mxu0 0.0
    %3656 = vmatpush1.msra.mxu0 0.0
    %3657 = vmatprep.subr.mxu0 0.0
    %3658 = vmatpush1.msra.mxu0 0.0
    %3659 = vmatprep.subr.mxu0 0.0
    %3660 = vmatpush1.msra.mxu0 0.0
    %3661 = vmatprep.subr.mxu0 0.0
    %3662 = vmatpush1.msra.mxu0 0.0
    %3663 = vmatprep.subr.mxu0 0.0
    %3664 = vmatpush1.msra.mxu0 0.0
    %3665 = vmatprep.mubr.f32.mxu0 0.0
    %3666 = vmatmul.mubr.f32.gmra.mrb[0].mxu0 %v3599
    %v3667 = vpop.f32.mrb[0].mxu0
    %v3668 = vadd.f32 0.0, %v3667
    %v3669 = vpop.f32.mrb[0].mxu0
    %3670 = vdwg.mxu0
    %v3672 = vsel %vm981, %v3449, 0
    %3674 = vmatprep.subr.mxu0 0.0
    %3675 = vmatpush1.msra.mxu0 %v83
    %3676 = vmatprep.subr.mxu0 0.0
    %3677 = vmatpush1.msra.mxu0 0.0
    %3678 = vmatprep.subr.mxu0 0.0
    %3679 = vmatpush1.msra.mxu0 0.0
    %3680 = vmatprep.subr.mxu0 0.0
    %3681 = vmatpush1.msra.mxu0 0.0
    %3682 = vmatprep.subr.mxu0 0.0
    %3683 = vmatpush1.msra.mxu0 0.0
    %3684 = vmatprep.subr.mxu0 0.0
    %3685 = vmatpush1.msra.mxu0 0.0
    %3686 = vmatprep.subr.mxu0 0.0
    %3687 = vmatpush1.msra.mxu0 0.0
    %3688 = vmatprep.subr.mxu0 0.0
    %3689 = vmatpush1.msra.mxu0 0.0
    %3690 = vmatprep.subr.mxu0 0.0
    %3691 = vmatpush1.msra.mxu0 0.0
    %3692 = vmatprep.subr.mxu0 0.0
    %3693 = vmatpush1.msra.mxu0 0.0
    %3694 = vmatprep.subr.mxu0 0.0
    %3695 = vmatpush1.msra.mxu0 0.0
    %3696 = vmatprep.subr.mxu0 0.0
    %3697 = vmatpush1.msra.mxu0 0.0
    %3698 = vmatprep.subr.mxu0 0.0
    %3699 = vmatpush1.msra.mxu0 0.0
    %3700 = vmatprep.subr.mxu0 0.0
    %3701 = vmatpush1.msra.mxu0 0.0
    %3702 = vmatprep.subr.mxu0 0.0
    %3703 = vmatpush1.msra.mxu0 0.0
    %3704 = vmatprep.subr.mxu0 0.0
    %3705 = vmatpush1.msra.mxu0 0.0
    %3706 = vmatprep.subr.mxu0 0.0
    %3707 = vmatpush1.msra.mxu0 0.0
    %3708 = vmatprep.subr.mxu0 0.0
    %3709 = vmatpush1.msra.mxu0 0.0
    %3710 = vmatprep.subr.mxu0 0.0
    %3711 = vmatpush1.msra.mxu0 0.0
    %3712 = vmatprep.subr.mxu0 0.0
    %3713 = vmatpush1.msra.mxu0 0.0
    %3714 = vmatprep.subr.mxu0 0.0
    %3715 = vmatpush1.msra.mxu0 0.0
    %3716 = vmatprep.subr.mxu0 0.0
    %3717 = vmatpush1.msra.mxu0 0.0
    %3718 = vmatprep.subr.mxu0 0.0
    %3719 = vmatpush1.msra.mxu0 0.0
    %3720 = vmatprep.subr.mxu0 0.0
    %3721 = vmatpush1.msra.mxu0 0.0
    %3722 = vmatprep.subr.mxu0 0.0
    %3723 = vmatpush1.msra.mxu0 0.0
    %3724 = vmatprep.subr.mxu0 0.0
    %3725 = vmatpush1.msra.mxu0 0.0
    %3726 = vmatprep.subr.mxu0 0.0
    %3727 = vmatpush1.msra.mxu0 0.0
    %3728 = vmatprep.subr.mxu0 0.0
    %3729 = vmatpush1.msra.mxu0 0.0
    %3730 = vmatprep.subr.mxu0 0.0
    %3731 = vmatpush1.msra.mxu0 0.0
    %3732 = vmatprep.subr.mxu0 0.0
    %3733 = vmatpush1.msra.mxu0 0.0
    %3734 = vmatprep.subr.mxu0 0.0
    %3735 = vmatpush1.msra.mxu0 0.0
    %3736 = vmatprep.subr.mxu0 0.0
    %3737 = vmatpush1.msra.mxu0 0.0
    %3738 = vmatprep.mubr.f32.mxu0 0.0
    %3739 = vmatmul.mubr.f32.gmra.mrb[0].mxu0 %v3672
    %v3740 = vpop.f32.mrb[0].mxu0
    %v3741 = vadd.f32 0.0, %v3740
    %v3742 = vpop.f32.mrb[0].mxu0
    %3743 = vdwg.mxu0
    %v3745 = vsel %vm981, %v3522, 0
    %3747 = vmatprep.subr.mxu0 0.0
    %3748 = vmatpush1.msra.mxu0 %v84
    %3749 = vmatprep.subr.mxu0 0.0
    %3750 = vmatpush1.msra.mxu0 0.0
    %3751 = vmatprep.subr.mxu0 0.0
    %3752 = vmatpush1.msra.mxu0 0.0
    %3753 = vmatprep.subr.mxu0 0.0
    %3754 = vmatpush1.msra.mxu0 0.0
    %3755 = vmatprep.subr.mxu0 0.0
    %3756 = vmatpush1.msra.mxu0 0.0
    %3757 = vmatprep.subr.mxu0 0.0
    %3758 = vmatpush1.msra.mxu0 0.0
    %3759 = vmatprep.subr.mxu0 0.0
    %3760 = vmatpush1.msra.mxu0 0.0
    %3761 = vmatprep.subr.mxu0 0.0
    %3762 = vmatpush1.msra.mxu0 0.0
    %3763 = vmatprep.subr.mxu0 0.0
    %3764 = vmatpush1.msra.mxu0 0.0
    %3765 = vmatprep.subr.mxu0 0.0
    %3766 = vmatpush1.msra.mxu0 0.0
    %3767 = vmatprep.subr.mxu0 0.0
    %3768 = vmatpush1.msra.mxu0 0.0
    %3769 = vmatprep.subr.mxu0 0.0
    %3770 = vmatpush1.msra.mxu0 0.0
    %3771 = vmatprep.subr.mxu0 0.0
    %3772 = vmatpush1.msra.mxu0 0.0
    %3773 = vmatprep.subr.mxu0 0.0
    %3774 = vmatpush1.msra.mxu0 0.0
    %3775 = vmatprep.subr.mxu0 0.0
    %3776 = vmatpush1.msra.mxu0 0.0
    %3777 = vmatprep.subr.mxu0 0.0
    %3778 = vmatpush1.msra.mxu0 0.0
    %3779 = vmatprep.subr.mxu0 0.0
    %3780 = vmatpush1.msra.mxu0 0.0
    %3781 = vmatprep.subr.mxu0 0.0
    %3782 = vmatpush1.msra.mxu0 0.0
    %3783 = vmatprep.subr.mxu0 0.0
    %3784 = vmatpush1.msra.mxu0 0.0
    %3785 = vmatprep.subr.mxu0 0.0
    %3786 = vmatpush1.msra.mxu0 0.0
    %3787 = vmatprep.subr.mxu0 0.0
    %3788 = vmatpush1.msra.mxu0 0.0
    %3789 = vmatprep.subr.mxu0 0.0
    %3790 = vmatpush1.msra.mxu0 0.0
    %3791 = vmatprep.subr.mxu0 0.0
    %3792 = vmatpush1.msra.mxu0 0.0
    %3793 = vmatprep.subr.mxu0 0.0
    %3794 = vmatpush1.msra.mxu0 0.0
    %3795 = vmatprep.subr.mxu0 0.0
    %3796 = vmatpush1.msra.mxu0 0.0
    %3797 = vmatprep.subr.mxu0 0.0
    %3798 = vmatpush1.msra.mxu0 0.0
    %3799 = vmatprep.subr.mxu0 0.0
    %3800 = vmatpush1.msra.mxu0 0.0
    %3801 = vmatprep.subr.mxu0 0.0
    %3802 = vmatpush1.msra.mxu0 0.0
    %3803 = vmatprep.subr.mxu0 0.0
    %3804 = vmatpush1.msra.mxu0 0.0
    %3805 = vmatprep.subr.mxu0 0.0
    %3806 = vmatpush1.msra.mxu0 0.0
    %3807 = vmatprep.subr.mxu0 0.0
    %3808 = vmatpush1.msra.mxu0 0.0
    %3809 = vmatprep.subr.mxu0 0.0
    %3810 = vmatpush1.msra.mxu0 0.0
    %3811 = vmatprep.mubr.f32.mxu0 0.0
    %3812 = vmatmul.mubr.f32.gmra.mrb[0].mxu0 %v3745
    %v3813 = vpop.f32.mrb[0].mxu0
    %v3814 = vadd.f32 0.0, %v3813
    %v3815 = vpop.f32.mrb[0].mxu0
    %3816 = vdwg.mxu0
    %v3817 = vsel %vm91, %v3595, 0.0
    %v3818 = vsel %vm91, %v3668, 0.0
    %v3819 = vadd.f32 %v3817, %v3818
    %v3820 = vsel %vm91, %v3741, 0.0
    %v3821 = vadd.f32 %v3819, %v3820
    %v3822 = vsel %vm91, %v3814, 0.0
    %v3823 = vadd.f32 %v3821, %v3822
    %v3824 = vadd.f32 %v3823, %v1942
    %v3825 = vadd.f32 %v3824, %v1976
    %v3826 = vsel %vm91, %v3825, 0.0
    %3827 = vadd.xlane.f32.xlu0 %v3826
    %v3828 = vpop.xlane.xlu0 %3827
    %v3829 = vmul.f32 %v3828, %v1949
    %v3830 = vsub.f32 %v3825, %v3829
    %v3831 = vmul.f32 %v3830, %v3830
    %v3832 = vsel %vm91, %v3831, 0.0
    %3833 = vadd.xlane.f32.xlu0 %v3832
    %v3834 = vpop.xlane.xlu0 %3833
    %v3835 = vmul.f32 %v3834, %v1949
    %v3836 = vadd.f32 %v3835, 1e-05
    %v3837 = vrsqrt.pop %v3836
    %v3838 = vmul.f32 %v3830, %v3837
    %v3839 = vmul.f32 %v3838, %v1964
    %v3840 = vadd.f32 %v3839, %v1971
    %s3841 = scalar_lea.vmem [#allocation2], 8
    %3842 = vst.msk [vmem:[%s3841] sm:$0xff] %vm91, %v3840
    // Predicated region
    $region38: #{tpu_custom_call.1} parent=1 // pred_check
      _
    $region39: #{tpu_custom_call.1} parent=1 // pred_check_branch
      %3844 = sbr.rel (0) target = $region41
    $region40: #{tpu_custom_call.1} parent=1 // pred_region
      %s3846 = ssub.s32 256, 256
      %3847 = vsyncadd [#allocation3], %s3846
      %s3848 = sshll.u32 [#allocation2], 4
      %s3849 = int_to_ptr.vmem [resolvable:$true] %s3848
      %3854 = dma.vmem_to_hbm [thread:$0]  %s3849, 256, %s9, [#allocation3], 128, 128, 8
    $region41: #{tpu_custom_call.1} parent=1 // pred_fallthru
      _
    // Predicated region
    $region42: #{tpu_custom_call.1} parent=1 // pred_check
      _
    $region43: #{tpu_custom_call.1} parent=1 // pred_check_branch
      %3856 = sbr.rel (0) target = $region45
    $region44: #{tpu_custom_call.1} parent=1 // pred_region
      %3857 = dma.done [#allocation3], 256
    $region45: #{tpu_custom_call.1} parent=1 // pred_fallthru
      _
    %3858 = vsyncpa [#allocation3], 1

</llo_original>
